<compile_context>
chip_gen: v6e
topology: v6e:2x2x1
jax: 0.10.0
libtpu: 0.0.40
codegen_flags: <defaults>
</compile_context>

<pallas_src>
import jax
import jax.numpy as jnp
import numpy as np
from jax.experimental import pallas as pl
from jax.experimental.pallas import tpu as pltpu


# ---------------------------------------------------------------------------
# Fused kernel: expand 1x1 (+folded BN bias) + ReLU6 -> depthwise 3x3 + BN +
#               ReLU6 -> project 1x1 + BN (+ residual)
# ---------------------------------------------------------------------------
def _make_fused_kernel(*, stride, TH, Wp_pad, win_rows, has_expand, use_res,
                       mxu_dtype, out_dtype):
    win_len = win_rows * Wp_pad
    rows_cover = ((TH + 2) if stride == 1 else (2 * TH + 1)) * Wp_pad
    n_out = TH * Wp_pad                  # stride-1 flat outputs per tile
    Wc = Wp_pad // 2                     # stride-2 decimated row width
    step = TH * stride * Wp_pad          # flat window advance per row tile
    align = 8
    while step % (align * 2) == 0 and align < 4096:
        align *= 2

    def kernel(*refs):
        x_ref = refs[0]
        i = 1
        if has_expand:
            w_exp_ref = refs[i]
            i += 1
        w_dw_ref, b_dw_ref, w_proj_ref, b_proj_ref = refs[i:i + 4]
        o_ref = refs[i + 4]
        dw_scr = refs[i + 5] if stride == 2 else None

        r = pl.program_id(1)
        start = pl.multiple_of(r * step, align)

        # padded-flat input window for this row tile (one VMEM-resident read)
        xw = x_ref[0, pl.ds(start, win_len), :]            # (win_len, cin_eff)

        # --- expand 1x1 + BN + ReLU6.  The folded BN bias rides on a constant
        #     "valid pixel" input channel, so padding positions are exactly 0
        #     after the clip (no mask DMA / broadcast multiply needed).
        if has_expand:
            h = jnp.dot(xw.astype(mxu_dtype), w_exp_ref[...],
                        preferred_element_type=jnp.float32)
            h = jnp.clip(h, 0.0, 6.0)                       # (win_len, hidden)
        else:
            h = xw.astype(jnp.float32)                      # padding already 0

        # Hoisted column shifts: these two slices are the ONLY sublane-unaligned
        # reads; every tap below is an 8-aligned slice (row pitch Wp_pad % 8 == 0).
        h_sh = [h[kw:kw + rows_cover, :] for kw in range(3)]

        w_dw = w_dw_ref[...]                                # (9, hidden)
        b_dw = b_dw_ref[...]                                # (1, hidden)
        w_pr = w_proj_ref[...]                              # (hidden, cout)
        b_pr = b_proj_ref[...]                              # (1, cout)

        if stride == 1:
            # depthwise 3x3 + BN + ReLU6 on the padded flat grid
            acc = b_dw                                      # bias folded in init
            for kh in range(3):
                base = kh * Wp_pad                          # 8-aligned
                for kw in range(3):
                    k = 3 * kh + kw
                    acc = acc + h_sh[kw][base:base + n_out, :] * w_dw[k:k + 1, :]
            dw = jnp.clip(acc, 0.0, 6.0)                    # (n_out, hidden)

            # project 1x1 + BN (+ fused residual), one matmul + one bulk store
            out = jnp.dot(dw.astype(mxu_dtype), w_pr,
                          preferred_element_type=jnp.float32) + b_pr
            if use_res:
                res = x_ref[0, pl.ds(start + Wp_pad + 1, n_out), :]
                out = out + res[:, :out.shape[1]]
            o_ref[0] = out.astype(out_dtype)
        else:
            # stride 2: depthwise rows go into a VMEM scratch (aligned writes),
            # ONE strided read decimates to even columns BEFORE the single
            # project matmul; one bulk store for the whole tile.
            for t in range(TH):
                acc = b_dw
                for kh in range(3):
                    base = (2 * t + kh) * Wp_pad            # 8-aligned
                    for kw in range(3):
                        k = 3 * kh + kw
                        acc = acc + (h_sh[kw][base:base + Wp_pad, :]
                                     * w_dw[k:k + 1, :])
                dw_scr[t * Wp_pad:(t + 1) * Wp_pad, :] = jnp.clip(acc, 0.0, 6.0)
            dw = dw_scr[pl.ds(0, TH * Wc, stride=2), :]     # even columns only
            out = jnp.dot(dw.astype(mxu_dtype), w_pr,
                          preferred_element_type=jnp.float32) + b_pr
            o_ref[0] = out.astype(out_dtype)

    return kernel


# ---------------------------------------------------------------------------
# Wrapper: builds specs / grid and calls the fused kernel (NHWC in / NHWC out)
# ---------------------------------------------------------------------------
def inverted_residual_forward_nhwc(x_nhwc, params, *, stride, use_res,
                                   mxu_dtype=jnp.bfloat16, row_tile=16):
    B, H, W, cin = x_nhwc.shape
    has_expand = "w_exp" in params
    hidden = params["w_dw"].shape[1]
    cout = params["w_proj"].shape[1]

    Wp_pad = -(-(W + 2) // 8) * 8            # 8-aligned flat row stride
    Ho = (H - 1) // stride + 1
    Wo = (W - 1) // stride + 1
    F_rows = H + 4                           # 1 top pad + 3 bottom pad/slack rows
    F = F_rows * Wp_pad

    # Constant "valid pixel" channel carries the folded expand-BN bias so the
    # ReLU6'd hidden activation is exactly zero at every spatial-padding pixel.
    if has_expand:
        x_aug = jnp.concatenate(
            [x_nhwc, jnp.ones((B, H, W, 1), x_nhwc.dtype)], axis=-1)
    else:
        x_aug = x_nhwc
    cin_eff = x_aug.shape[-1]
    xp = jnp.pad(x_aug, ((0, 0), (1, F_rows - 1 - H),
                         (1, Wp_pad - 1 - W), (0, 0)))
    xpf = xp.reshape(B, F, cin_eff)          # only the small Cin input is padded

    # ---- row-tile selection: keep the live hidden window inside a VMEM budget
    #      derived from the actual chip (v7x: 64 MiB, v5e/v6e: 128 MiB).
    try:
        vmem_cap = int(pltpu.get_tpu_info().vmem_capacity_bytes)
    except Exception:
        vmem_cap = 64 * 1024 * 1024          # be conservative (v7x-sized)
    live_budget = vmem_cap // 5

    if stride == 2:
        row_tile = min(row_tile, 8)          # bounds the unrolled per-row loop

    def live_bytes(th):                      # h + shifted copies + acc/dw (f32)
        wr = (th + 3) if stride == 1 else (2 * th + 2)
        return (4 * wr + 2 * th) * Wp_pad * hidden * 4

    out_cols = Wp_pad if stride == 1 else Wp_pad // 2

    def th_ok(t):                            # out-block second-minor must be %8
        return (Ho // t == 1) or ((t * out_cols) % 8 == 0)

    cands = [t for t in range(min(row_tile, Ho), 0, -1) if Ho % t == 0]
    valid = [t for t in cands if th_ok(t)]
    if not valid:
        valid = [Ho]                         # whole image, single row tile
    TH = next((t for t in valid if live_bytes(t) <= live_budget), valid[-1])
    R = Ho // TH                             # grid=(B,R); both axes "parallel"
    win_rows = (TH + 3) if stride == 1 else (2 * TH + 2)
    win_len = win_rows * Wp_pad

    in_specs = [pl.BlockSpec((1, F, cin_eff), lambda b, r: (b, 0, 0))]
    args = [xpf]
    if has_expand:
        in_specs.append(pl.BlockSpec(params["w_exp"].shape, lambda b, r: (0, 0)))
        args.append(params["w_exp"])
    for name in ("w_dw", "b_dw", "w_proj", "b_proj"):
        in_specs.append(pl.BlockSpec(params[name].shape, lambda b, r: (0, 0)))
        args.append(params[name])

    out_shape = jax.ShapeDtypeStruct((B, Ho * out_cols, cout), x_nhwc.dtype)
    out_spec = pl.BlockSpec((1, TH * out_cols, cout), lambda b, r: (b, r, 0))
    scratch = ([pltpu.VMEM((TH * Wp_pad, hidden), jnp.float32)]
               if stride == 2 else [])

    # generous (but physically capped) scoped-VMEM limit for the bigger tiles
    def _tile_bytes(r_, c_, itm):
        return ((r_ + 7) // 8 * 8) * ((c_ + 127) // 128 * 128) * itm
    w_itm = jnp.dtype(mxu_dtype).itemsize
    est = 2 * _tile_bytes(F, cin_eff, 4)
    est += 2 * _tile_bytes(TH * out_cols, cout, 4)
    if has_expand:
        est += 2 * _tile_bytes(*params["w_exp"].shape, w_itm)
    est += 2 * (_tile_bytes(*params["w_dw"].shape, 4)
                + _tile_bytes(*params["b_dw"].shape, 4)
                + _tile_bytes(*params["w_proj"].shape, w_itm)
                + _tile_bytes(*params["b_proj"].shape, 4))
    if stride == 2:
        est += _tile_bytes(TH * Wp_pad, hidden, 4)
    est += live_bytes(TH) + 2 * _tile_bytes(win_len, cin_eff, 4)
    vmem_limit = int(min(max(64 * 1024 * 1024, 2 * est),
                         max(32 * 1024 * 1024, vmem_cap - 8 * 1024 * 1024)))

    kernel = _make_fused_kernel(stride=stride, TH=TH, Wp_pad=Wp_pad,
                                win_rows=win_rows, has_expand=has_expand,
                                use_res=use_res, mxu_dtype=mxu_dtype,
                                out_dtype=x_nhwc.dtype)

    y = pl.pallas_call(
        kernel,
        out_shape=out_shape,
        grid=(B, R),
        in_specs=in_specs,
        out_specs=out_spec,
        scratch_shapes=scratch,
        compiler_params=pltpu.CompilerParams(
            dimension_semantics=("parallel", "parallel"),
            vmem_limit_bytes=vmem_limit),
    )(*args)

    # drop padded columns (stride 2 columns are already decimated in-kernel)
    y = y.reshape(B, Ho, out_cols, cout)[:, :, :Wo, :]
    return y


# ---------------------------------------------------------------------------
# InvertedResidual module (parameters built deterministically in-script)
# ---------------------------------------------------------------------------
class InvertedResidualPallas:
    def __init__(self, inp, oup, stride, expand_ratio, key,
                 mxu_dtype=jnp.bfloat16):
        assert stride in (1, 2)
        self.inp, self.oup = inp, oup
        self.stride = stride
        self.expand_ratio = expand_ratio
        self.hidden = int(round(inp * expand_ratio))
        self.use_res_connect = (stride == 1) and (inp == oup)
        self.eps = 1e-5
        self.mxu_dtype = mxu_dtype
        hidden = self.hidden

        ks = jax.random.split(key, 6)

        def bn_params(k, c):
            k1, k2, k3, k4 = jax.random.split(k, 4)
            gamma = 1.0 + 0.1 * jax.random.normal(k1, (c,), jnp.float32)
            beta = 0.1 * jax.random.normal(k2, (c,), jnp.float32)
            mean = 0.1 * jax.random.normal(k3, (c,), jnp.float32)
            var = 1.0 + 0.1 * jnp.abs(jax.random.normal(k4, (c,), jnp.float32))
            return gamma, beta, mean, var

        raw = {}
        if expand_ratio != 1:
            raw["w_exp"] = 0.2 * jax.random.normal(
                ks[0], (hidden, inp, 1, 1), jnp.float32)
            raw["bn1"] = bn_params(ks[1], hidden)
        raw["w_dw"] = 0.2 * jax.random.normal(
            ks[2], (hidden, 1, 3, 3), jnp.float32)
        raw["bn2"] = bn_params(ks[3], hidden)
        raw["w_proj"] = 0.2 * jax.random.normal(
            ks[4], (oup, hidden, 1, 1), jnp.float32)
        raw["bn3"] = bn_params(ks[5], oup)
        self.raw = raw

        def fold(gamma, beta, mean, var):
            s = gamma / jnp.sqrt(var + self.eps)
            return s, beta - mean * s

        params = {}
        if expand_ratio != 1:
            s1, b1 = fold(*raw["bn1"])
            w_exp = (raw["w_exp"][:, :, 0, 0] * s1[:, None]).T   # (inp, hidden)
            # folded BN bias appended as the weight row for the constant channel
            params["w_exp"] = jnp.concatenate(
                [w_exp, b1[None, :]], axis=0).astype(mxu_dtype)  # (inp+1, hidden)
        s2, b2 = fold(*raw["bn2"])
        # (hidden, 1, 3, 3) -> (9, hidden), taps ordered 3*kh + kw
        params["w_dw"] = ((raw["w_dw"][:, 0, :, :].reshape(hidden, 9)
                           * s2[:, None]).T).astype(jnp.float32)
        params["b_dw"] = b2[None, :].astype(jnp.float32)
        s3, b3 = fold(*raw["bn3"])
        params["w_proj"] = ((raw["w_proj"][:, :, 0, 0]
                             * s3[:, None]).T).astype(mxu_dtype)  # (hidden, oup)
        params["b_proj"] = b3[None, :].astype(jnp.float32)
        self.params = params

    def __call__(self, x_nchw):
        B, C, H, W = x_nchw.shape
        assert C == self.inp
        # NCHW <-> NHWC only at the module boundary; a chain of blocks should
        # stay in NHWC and skip these two transposes entirely.
        x = jnp.transpose(x_nchw, (0, 2, 3, 1))
        y = inverted_residual_forward_nhwc(
            x, self.params, stride=self.stride, use_res=self.use_res_connect,
            mxu_dtype=self.mxu_dtype)
        return jnp.transpose(y, (0, 3, 1, 2))


# ---------------------------------------------------------------------------
# Pure-JAX reference (mirrors the PyTorch module, NCHW) for verification
# ---------------------------------------------------------------------------
def reference_forward(x, mod):
    eps = mod.eps
    dn = ("NCHW", "OIHW", "NCHW")

    def bn(y, g, b, m, v):
        g, b, m, v = (t[None, :, None, None] for t in (g, b, m, v))
        return (y - m) / jnp.sqrt(v + eps) * g + b

    h = x
    if mod.expand_ratio != 1:
        h = jax.lax.conv_general_dilated(
            h, mod.raw["w_exp"], (1, 1), [(0, 0), (0, 0)],
            dimension_numbers=dn, precision=jax.lax.Precision.HIGHEST)
        h = jnp.clip(bn(h, *mod.raw["bn1"]), 0.0, 6.0)
    h = jax.lax.conv_general_dilated(
        h, mod.raw["w_dw"], (mod.stride, mod.stride), [(1, 1), (1, 1)],
        dimension_numbers=dn, feature_group_count=mod.hidden,
        precision=jax.lax.Precision.HIGHEST)
    h = jnp.clip(bn(h, *mod.raw["bn2"]), 0.0, 6.0)
    h = jax.lax.conv_general_dilated(
        h, mod.raw["w_proj"], (1, 1), [(0, 0), (0, 0)],
        dimension_numbers=dn, precision=jax.lax.Precision.HIGHEST)
    h = bn(h, *mod.raw["bn3"])
    if mod.use_res_connect:
        h = x + h
    return h


# ---------------------------------------------------------------------------
if __name__ == "__main__":
    key = jax.random.PRNGKey(0)
    cases = [
        # (inp, oup, stride, expand_ratio, B, H, W)
        (4, 4, 1, 6, 2, 16, 16),   # expand + residual connection
        (4, 8, 2, 6, 2, 16, 16),   # stride-2 downsampling
        (8, 8, 1, 1, 2, 8, 8),     # expand_ratio == 1 (no expand conv) + residual
    ]
    for inp, oup, stride, expand_ratio, B, H, W in cases:
        key, kx, kp = jax.random.split(key, 3)
        x = jax.random.normal(kx, (B, inp, H, W), jnp.float32)

        # exact-math path (f32 MXU inputs): tight tolerance vs. the f32 reference
        mod32 = InvertedResidualPallas(inp, oup, stride, expand_ratio, kp,
                                       mxu_dtype=jnp.float32)
        y32 = jax.block_until_ready(mod32(x))
        y_ref = reference_forward(x, mod32)
        np.testing.assert_allclose(np.asarray(y32), np.asarray(y_ref),
                                   rtol=1e-3, atol=1e-3)

        # performance path (bf16 MXU inputs, f32 accumulation): looser tolerance
        # reflects the deliberate bf16 rounding of the matmul operands.
        mod16 = InvertedResidualPallas(inp, oup, stride, expand_ratio, kp,
                                       mxu_dtype=jnp.bfloat16)
        y16 = jax.block_until_ready(mod16(x))
        np.testing.assert_allclose(np.asarray(y16), np.asarray(y_ref),
                                   rtol=5e-2, atol=5e-2)

    print("KERNEL_OK")
</pallas_src>

<mosaic_0001>
module attributes {stable_mosaic.version = 11 : i64} {
  func.func @kernel(%arg0: i32, %arg1: i32, %arg2: memref<1x480x5xf32, #tpu.memory_space<vmem>>, %arg3: memref<5x24xf32, #tpu.memory_space<vmem>>, %arg4: memref<9x24xf32, #tpu.memory_space<vmem>>, %arg5: memref<1x24xf32, #tpu.memory_space<vmem>>, %arg6: memref<24x4xf32, #tpu.memory_space<vmem>>, %arg7: memref<1x4xf32, #tpu.memory_space<vmem>>, %arg8: memref<1x384x4xf32, #tpu.memory_space<vmem>>) attributes {dimension_semantics = [#tpu.dimension_semantics<parallel>, #tpu.dimension_semantics<parallel>], iteration_bounds = array<i64: 2, 1>, scalar_prefetch = 0 : i64, scratch_operands = 0 : i64, tpu.core_type = #tpu.core_type<tc>, window_params = [{transform_indices = @transform_0, window_bounds = array<i64: 1, 480, 5>}, {pipeline_mode = #tpu.pipeline_mode<synchronous>, transform_indices = @transform_1, window_bounds = array<i64: 5, 24>}, {pipeline_mode = #tpu.pipeline_mode<synchronous>, transform_indices = @transform_2, window_bounds = array<i64: 9, 24>}, {pipeline_mode = #tpu.pipeline_mode<synchronous>, transform_indices = @transform_3, window_bounds = array<i64: 1, 24>}, {pipeline_mode = #tpu.pipeline_mode<synchronous>, transform_indices = @transform_4, window_bounds = array<i64: 24, 4>}, {pipeline_mode = #tpu.pipeline_mode<synchronous>, transform_indices = @transform_5, window_bounds = array<i64: 1, 4>}, {transform_indices = @transform_6, window_bounds = array<i64: 1, 384, 4>}]} {
    %c384_i32 = arith.constant 384 : i32
    %0 = arith.muli %arg1, %c384_i32 : i32
    %1 = tpu.assume_multiple %0, 128 : i32
    %c0 = arith.constant 0 : index
    %2 = arith.index_cast %1 : i32 to index
    %c0_0 = arith.constant 0 : index
    %3 = vector.load %arg2[%c0, %2, %c0_0] : memref<1x480x5xf32, #tpu.memory_space<vmem>>, vector<1x456x5xf32>
    %4 = vector.shape_cast %3 : vector<1x456x5xf32> to vector<456x5xf32>
    %c0_1 = arith.constant 0 : index
    %c0_2 = arith.constant 0 : index
    %5 = vector.load %arg3[%c0_1, %c0_2] : memref<5x24xf32, #tpu.memory_space<vmem>>, vector<5x24xf32>
    %cst = arith.constant dense<0.000000e+00> : vector<456x24xf32>
    %6 = tpu.matmul %4, %5, %cst {dimension_numbers = #tpu.dot_dimension_numbers<[1], [0], [0], [1], [0, 0, 1, 1], [], []>} : vector<456x5xf32>, vector<5x24xf32>, vector<456x24xf32> -> vector<456x24xf32>
    %cst_3 = arith.constant 0.000000e+00 : f32
    %cst_4 = arith.constant 6.000000e+00 : f32
    %7 = vector.broadcast %cst_3 : f32 to vector<456x24xf32>
    %8 = arith.maximumf %7, %6 : vector<456x24xf32>
    %9 = vector.broadcast %cst_4 : f32 to vector<456x24xf32>
    %10 = arith.minimumf %9, %8 : vector<456x24xf32>
    %11 = vector.extract_strided_slice %10 {offsets = [0, 0], sizes = [432, 24], strides = [1, 1]} : vector<456x24xf32> to vector<432x24xf32>
    %12 = vector.extract_strided_slice %10 {offsets = [1, 0], sizes = [432, 24], strides = [1, 1]} : vector<456x24xf32> to vector<432x24xf32>
    %13 = vector.extract_strided_slice %10 {offsets = [2, 0], sizes = [432, 24], strides = [1, 1]} : vector<456x24xf32> to vector<432x24xf32>
    %c0_5 = arith.constant 0 : index
    %c0_6 = arith.constant 0 : index
    %14 = vector.load %arg4[%c0_5, %c0_6] : memref<9x24xf32, #tpu.memory_space<vmem>>, vector<9x24xf32>
    %c0_7 = arith.constant 0 : index
    %c0_8 = arith.constant 0 : index
    %15 = vector.load %arg5[%c0_7, %c0_8] : memref<1x24xf32, #tpu.memory_space<vmem>>, vector<1x24xf32>
    %c0_9 = arith.constant 0 : index
    %c0_10 = arith.constant 0 : index
    %16 = vector.load %arg6[%c0_9, %c0_10] : memref<24x4xf32, #tpu.memory_space<vmem>>, vector<24x4xf32>
    %c0_11 = arith.constant 0 : index
    %c0_12 = arith.constant 0 : index
    %17 = vector.load %arg7[%c0_11, %c0_12] : memref<1x4xf32, #tpu.memory_space<vmem>>, vector<1x4xf32>
    %18 = vector.extract_strided_slice %11 {offsets = [0, 0], sizes = [384, 24], strides = [1, 1]} : vector<432x24xf32> to vector<384x24xf32>
    %19 = vector.extract_strided_slice %14 {offsets = [0, 0], sizes = [1, 24], strides = [1, 1]} : vector<9x24xf32> to vector<1x24xf32>
    %20 = vector.broadcast %19 : vector<1x24xf32> to vector<384x24xf32>
    %21 = arith.mulf %18, %20 : vector<384x24xf32>
    %22 = vector.broadcast %15 : vector<1x24xf32> to vector<384x24xf32>
    %23 = arith.addf %22, %21 : vector<384x24xf32>
    %24 = vector.extract_strided_slice %12 {offsets = [0, 0], sizes = [384, 24], strides = [1, 1]} : vector<432x24xf32> to vector<384x24xf32>
    %25 = vector.extract_strided_slice %14 {offsets = [1, 0], sizes = [1, 24], strides = [1, 1]} : vector<9x24xf32> to vector<1x24xf32>
    %26 = vector.broadcast %25 : vector<1x24xf32> to vector<384x24xf32>
    %27 = arith.mulf %24, %26 : vector<384x24xf32>
    %28 = arith.addf %23, %27 : vector<384x24xf32>
    %29 = vector.extract_strided_slice %13 {offsets = [0, 0], sizes = [384, 24], strides = [1, 1]} : vector<432x24xf32> to vector<384x24xf32>
    %30 = vector.extract_strided_slice %14 {offsets = [2, 0], sizes = [1, 24], strides = [1, 1]} : vector<9x24xf32> to vector<1x24xf32>
    %31 = vector.broadcast %30 : vector<1x24xf32> to vector<384x24xf32>
    %32 = arith.mulf %29, %31 : vector<384x24xf32>
    %33 = arith.addf %28, %32 : vector<384x24xf32>
    %34 = vector.extract_strided_slice %11 {offsets = [24, 0], sizes = [384, 24], strides = [1, 1]} : vector<432x24xf32> to vector<384x24xf32>
    %35 = vector.extract_strided_slice %14 {offsets = [3, 0], sizes = [1, 24], strides = [1, 1]} : vector<9x24xf32> to vector<1x24xf32>
    %36 = vector.broadcast %35 : vector<1x24xf32> to vector<384x24xf32>
    %37 = arith.mulf %34, %36 : vector<384x24xf32>
    %38 = arith.addf %33, %37 : vector<384x24xf32>
    %39 = vector.extract_strided_slice %12 {offsets = [24, 0], sizes = [384, 24], strides = [1, 1]} : vector<432x24xf32> to vector<384x24xf32>
    %40 = vector.extract_strided_slice %14 {offsets = [4, 0], sizes = [1, 24], strides = [1, 1]} : vector<9x24xf32> to vector<1x24xf32>
    %41 = vector.broadcast %40 : vector<1x24xf32> to vector<384x24xf32>
    %42 = arith.mulf %39, %41 : vector<384x24xf32>
    %43 = arith.addf %38, %42 : vector<384x24xf32>
    %44 = vector.extract_strided_slice %13 {offsets = [24, 0], sizes = [384, 24], strides = [1, 1]} : vector<432x24xf32> to vector<384x24xf32>
    %45 = vector.extract_strided_slice %14 {offsets = [5, 0], sizes = [1, 24], strides = [1, 1]} : vector<9x24xf32> to vector<1x24xf32>
    %46 = vector.broadcast %45 : vector<1x24xf32> to vector<384x24xf32>
    %47 = arith.mulf %44, %46 : vector<384x24xf32>
    %48 = arith.addf %43, %47 : vector<384x24xf32>
    %49 = vector.extract_strided_slice %11 {offsets = [48, 0], sizes = [384, 24], strides = [1, 1]} : vector<432x24xf32> to vector<384x24xf32>
    %50 = vector.extract_strided_slice %14 {offsets = [6, 0], sizes = [1, 24], strides = [1, 1]} : vector<9x24xf32> to vector<1x24xf32>
    %51 = vector.broadcast %50 : vector<1x24xf32> to vector<384x24xf32>
    %52 = arith.mulf %49, %51 : vector<384x24xf32>
    %53 = arith.addf %48, %52 : vector<384x24xf32>
    %54 = vector.extract_strided_slice %12 {offsets = [48, 0], sizes = [384, 24], strides = [1, 1]} : vector<432x24xf32> to vector<384x24xf32>
    %55 = vector.extract_strided_slice %14 {offsets = [7, 0], sizes = [1, 24], strides = [1, 1]} : vector<9x24xf32> to vector<1x24xf32>
    %56 = vector.broadcast %55 : vector<1x24xf32> to vector<384x24xf32>
    %57 = arith.mulf %54, %56 : vector<384x24xf32>
    %58 = arith.addf %53, %57 : vector<384x24xf32>
    %59 = vector.extract_strided_slice %13 {offsets = [48, 0], sizes = [384, 24], strides = [1, 1]} : vector<432x24xf32> to vector<384x24xf32>
    %60 = vector.extract_strided_slice %14 {offsets = [8, 0], sizes = [1, 24], strides = [1, 1]} : vector<9x24xf32> to vector<1x24xf32>
    %61 = vector.broadcast %60 : vector<1x24xf32> to vector<384x24xf32>
    %62 = arith.mulf %59, %61 : vector<384x24xf32>
    %63 = arith.addf %58, %62 : vector<384x24xf32>
    %cst_13 = arith.constant 0.000000e+00 : f32
    %cst_14 = arith.constant 6.000000e+00 : f32
    %64 = vector.broadcast %cst_13 : f32 to vector<384x24xf32>
    %65 = arith.maximumf %64, %63 : vector<384x24xf32>
    %66 = vector.broadcast %cst_14 : f32 to vector<384x24xf32>
    %67 = arith.minimumf %66, %65 : vector<384x24xf32>
    %cst_15 = arith.constant dense<0.000000e+00> : vector<384x4xf32>
    %68 = tpu.matmul %67, %16, %cst_15 {dimension_numbers = #tpu.dot_dimension_numbers<[1], [0], [0], [1], [0, 0, 1, 1], [], []>} : vector<384x24xf32>, vector<24x4xf32>, vector<384x4xf32> -> vector<384x4xf32>
    %69 = vector.broadcast %17 : vector<1x4xf32> to vector<384x4xf32>
    %70 = arith.addf %68, %69 : vector<384x4xf32>
    %c24_i32 = arith.constant 24 : i32
    %71 = arith.addi %1, %c24_i32 : i32
    %c1_i32 = arith.constant 1 : i32
    %72 = arith.addi %71, %c1_i32 : i32
    %c0_16 = arith.constant 0 : index
    %73 = arith.index_cast %72 : i32 to index
    %c0_17 = arith.constant 0 : index
    %74 = vector.load %arg2[%c0_16, %73, %c0_17] : memref<1x480x5xf32, #tpu.memory_space<vmem>>, vector<1x384x5xf32>
    %75 = vector.shape_cast %74 : vector<1x384x5xf32> to vector<384x5xf32>
    %76 = vector.extract_strided_slice %75 {offsets = [0, 0], sizes = [384, 4], strides = [1, 1]} : vector<384x5xf32> to vector<384x4xf32>
    %77 = arith.addf %70, %76 : vector<384x4xf32>
    %c0_18 = arith.constant 0 : index
    %c0_19 = arith.constant 0 : index
    %c0_20 = arith.constant 0 : index
    %78 = vector.load %arg8[%c0_18, %c0_19, %c0_20] : memref<1x384x4xf32, #tpu.memory_space<vmem>>, vector<1x384x4xf32>
    %79 = vector.shape_cast %78 : vector<1x384x4xf32> to vector<384x4xf32>
    %80 = vector.shape_cast %77 : vector<384x4xf32> to vector<1x384x4xf32>
    tpu.vector_store %arg8[%c0_18, %c0_19, %c0_20], %80 {strides = array<i32>} : memref<1x384x4xf32, #tpu.memory_space<vmem>>, vector<1x384x4xf32>,
    return
  }
  func.func @transform_0(%arg0: i32, %arg1: i32) -> (i32, i32, i32) {
    %c0_i32 = arith.constant 0 : i32
    %c0_i32_0 = arith.constant 0 : i32
    %c0_i32_1 = arith.constant 0 : i32
    return %arg0, %c0_i32, %c0_i32_0 : i32, i32, i32
  }
  func.func @transform_1(%arg0: i32, %arg1: i32) -> (i32, i32) {
    %c0_i32 = arith.constant 0 : i32
    %c0_i32_0 = arith.constant 0 : i32
    %c0_i32_1 = arith.constant 0 : i32
    return %c0_i32, %c0_i32_0 : i32, i32
  }
  func.func @transform_2(%arg0: i32, %arg1: i32) -> (i32, i32) {
    %c0_i32 = arith.constant 0 : i32
    %c0_i32_0 = arith.constant 0 : i32
    %c0_i32_1 = arith.constant 0 : i32
    return %c0_i32, %c0_i32_0 : i32, i32
  }
  func.func @transform_3(%arg0: i32, %arg1: i32) -> (i32, i32) {
    %c0_i32 = arith.constant 0 : i32
    %c0_i32_0 = arith.constant 0 : i32
    %c0_i32_1 = arith.constant 0 : i32
    return %c0_i32, %c0_i32_0 : i32, i32
  }
  func.func @transform_4(%arg0: i32, %arg1: i32) -> (i32, i32) {
    %c0_i32 = arith.constant 0 : i32
    %c0_i32_0 = arith.constant 0 : i32
    %c0_i32_1 = arith.constant 0 : i32
    return %c0_i32, %c0_i32_0 : i32, i32
  }
  func.func @transform_5(%arg0: i32, %arg1: i32) -> (i32, i32) {
    %c0_i32 = arith.constant 0 : i32
    %c0_i32_0 = arith.constant 0 : i32
    %c0_i32_1 = arith.constant 0 : i32
    return %c0_i32, %c0_i32_0 : i32, i32
  }
  func.func @transform_6(%arg0: i32, %arg1: i32) -> (i32, i32, i32) {
    %c0_i32 = arith.constant 0 : i32
    %c0_i32_0 = arith.constant 0 : i32
    return %arg0, %arg1, %c0_i32 : i32, i32, i32
  }
}

</mosaic_0001>

<llo_original>
// kernel: tpu_custom_call.1
$region0: #{tpu_custom_call.1}
  #allocation0 [shape = 'u32[]', space=smem, size = 0x4, offset = 0x4, fixed_abs, tag = 'smem constant byte address 0x4 - core index']
  #allocation1 [shape = 'u32[144,128]{1,0:T(1,128)}', space=vmem, size = 0x12000, scoped, tag = 'internal scratch']
  %s0 = inlined_call_operand.vmem [shape: f32[2,480,5], index: 0, kind: input, shape index: {}]
  %s1 = inlined_call_operand.vmem [shape: f32[5,24], index: 1, kind: input, shape index: {}]
  %s2 = inlined_call_operand.vmem [shape: f32[9,24], index: 2, kind: input, shape index: {}]
  %s3 = inlined_call_operand.vmem [shape: f32[1,24], index: 3, kind: input, shape index: {}]
  %s4 = inlined_call_operand.vmem [shape: f32[24,4], index: 4, kind: input, shape index: {}]
  %s5 = inlined_call_operand.vmem [shape: f32[1,4], index: 5, kind: input, shape index: {}]
  %s6 = inlined_call_operand.vmem [shape: f32[2,384,4], index: 6, kind: output, shape index: {}]
  %s7 = sld [smem:[#allocation0]]
  $region57: #{tpu_custom_call.1} parent=0
    _
  %s9 = ssub.s32 1, %s7
  %s10 = scalar_select 0, %s9, %s7
  loop: start=0, step=1, limit=4
  $region2: #{tpu_custom_call.1} parent=0 // loop_pre_header
    _
  $region3: #{tpu_custom_call.1} parent=0 // loop_header
    %s12 = sphi 0, %s16
    %p13 = scmp.ge.s32.totalorder %s12, 4
    %s19 = sphi 0, %s31
    %s20 = sphi 0, %s27
    %s21 = sphi 0, %s19
    %s22 = sphi 0, %s20
    %s23 = sphi 0, %s21
    %s24 = sphi 0, %s22
    %s34 = sphi 0, %s36
    %s37 = sphi 0, %s34
    %s38 = sphi 0, %s37
    %s54 = sphi 0, %s38
    %s58 = sphi 0, %s58
    %s60 = sphi 0, %s58
    %s61 = sphi 0, %s60
    %s75 = sphi 0, %s61
    %s79 = sphi 0, %s79
    %s81 = sphi 0, %s79
    %s82 = sphi 0, %s81
    %s96 = sphi 0, %s82
    %s100 = sphi 0, %s100
    %s102 = sphi 0, %s100
    %s103 = sphi 0, %s102
    %s117 = sphi 0, %s103
    %s121 = sphi 0, %s121
    %s123 = sphi 0, %s121
    %s124 = sphi 0, %s123
    %s138 = sphi 0, %s124
    %s142 = sphi 0, %s142
    %s144 = sphi 0, %s142
    %s145 = sphi 0, %s144
    %s159 = sphi 0, %s145
    %s167 = sphi 0, %s169
    %s170 = sphi 0, %s167
    %s171 = sphi 0, %s170
    %s187 = sphi 0, %s171
  $region4: #{tpu_custom_call.1} parent=0 // loop_header_branch
    %15 = sbr.rel (%p13) target = $region8
  $region5: #{tpu_custom_call.1} parent=0 // loop_body
    %s17 = ssub.s32 %s12, 1
    %s18 = ssub.s32 %s12, 2
    %s25 = sadd.s32 1, %s20
    %p26 = scmp.ge.s32.totalorder %s25, 1
    %s27 = scalar_select %p26, 0, %s25
    %s28 = sadd.s32 1, %s19
    %s29 = scalar_select %p26, %s28, %s19
    %p30 = scmp.ge.s32.totalorder %s29, 2
    %s31 = scalar_select %p30, 0, %s29
    %s32 = ssub.s32 %s19, %s31
    %p33 = scmp.eq.s32.totalorder %s32, 0
    %s35 = sadd.s32 %s34, 1
    %s36 = scalar_select %p33, %s34, %s35
    %p39 = pneg %p33
    %p40 = scmp.eq.s32.totalorder %s12, 1
    %p41 = por %p39, %p40
    %p42 = scmp.ne.s32.totalorder %s34, %s37
    %p43 = scmp.eq.s32.totalorder %s12, 0
    %p44 = por %p42, %p43
    %p45 = scmp.ne.s32.totalorder %s34, %s37
    %p46 = scmp.eq.s32.totalorder %s17, 1
    %p47 = por %p45, %p46
    %p48 = scmp.ne.s32.totalorder %s37, %s38
    %p49 = scmp.eq.s32.totalorder %s17, 0
    %p50 = por %p48, %p49
    %p51 = scmp.ne.s32.totalorder %s37, %s38
    %p52 = scmp.eq.s32.totalorder %s18, 1
    %p53 = por %p51, %p52
    %p55 = scmp.ne.s32.totalorder %s38, %s54
    %p56 = scmp.eq.s32.totalorder %s18, 0
    %p57 = por %p55, %p56
    %s59 = sadd.s32 %s58, 1
    %p62 = scmp.eq.s32.totalorder %s12, 1
    %p63 = scmp.ne.s32.totalorder %s58, %s60
    %p64 = scmp.eq.s32.totalorder %s12, 0
    %p65 = por %p63, %p64
    %p66 = scmp.ne.s32.totalorder %s58, %s60
    %p67 = scmp.eq.s32.totalorder %s17, 1
    %p68 = por %p66, %p67
    %p69 = scmp.ne.s32.totalorder %s60, %s61
    %p70 = scmp.eq.s32.totalorder %s17, 0
    %p71 = por %p69, %p70
    %p72 = scmp.ne.s32.totalorder %s60, %s61
    %p73 = scmp.eq.s32.totalorder %s18, 1
    %p74 = por %p72, %p73
    %p76 = scmp.ne.s32.totalorder %s61, %s75
    %p77 = scmp.eq.s32.totalorder %s18, 0
    %p78 = por %p76, %p77
    %s80 = sadd.s32 %s79, 1
    %p83 = scmp.eq.s32.totalorder %s12, 1
    %p84 = scmp.ne.s32.totalorder %s79, %s81
    %p85 = scmp.eq.s32.totalorder %s12, 0
    %p86 = por %p84, %p85
    %p87 = scmp.ne.s32.totalorder %s79, %s81
    %p88 = scmp.eq.s32.totalorder %s17, 1
    %p89 = por %p87, %p88
    %p90 = scmp.ne.s32.totalorder %s81, %s82
    %p91 = scmp.eq.s32.totalorder %s17, 0
    %p92 = por %p90, %p91
    %p93 = scmp.ne.s32.totalorder %s81, %s82
    %p94 = scmp.eq.s32.totalorder %s18, 1
    %p95 = por %p93, %p94
    %p97 = scmp.ne.s32.totalorder %s82, %s96
    %p98 = scmp.eq.s32.totalorder %s18, 0
    %p99 = por %p97, %p98
    %s101 = sadd.s32 %s100, 1
    %p104 = scmp.eq.s32.totalorder %s12, 1
    %p105 = scmp.ne.s32.totalorder %s100, %s102
    %p106 = scmp.eq.s32.totalorder %s12, 0
    %p107 = por %p105, %p106
    %p108 = scmp.ne.s32.totalorder %s100, %s102
    %p109 = scmp.eq.s32.totalorder %s17, 1
    %p110 = por %p108, %p109
    %p111 = scmp.ne.s32.totalorder %s102, %s103
    %p112 = scmp.eq.s32.totalorder %s17, 0
    %p113 = por %p111, %p112
    %p114 = scmp.ne.s32.totalorder %s102, %s103
    %p115 = scmp.eq.s32.totalorder %s18, 1
    %p116 = por %p114, %p115
    %p118 = scmp.ne.s32.totalorder %s103, %s117
    %p119 = scmp.eq.s32.totalorder %s18, 0
    %p120 = por %p118, %p119
    %s122 = sadd.s32 %s121, 1
    %p125 = scmp.eq.s32.totalorder %s12, 1
    %p126 = scmp.ne.s32.totalorder %s121, %s123
    %p127 = scmp.eq.s32.totalorder %s12, 0
    %p128 = por %p126, %p127
    %p129 = scmp.ne.s32.totalorder %s121, %s123
    %p130 = scmp.eq.s32.totalorder %s17, 1
    %p131 = por %p129, %p130
    %p132 = scmp.ne.s32.totalorder %s123, %s124
    %p133 = scmp.eq.s32.totalorder %s17, 0
    %p134 = por %p132, %p133
    %p135 = scmp.ne.s32.totalorder %s123, %s124
    %p136 = scmp.eq.s32.totalorder %s18, 1
    %p137 = por %p135, %p136
    %p139 = scmp.ne.s32.totalorder %s124, %s138
    %p140 = scmp.eq.s32.totalorder %s18, 0
    %p141 = por %p139, %p140
    %s143 = sadd.s32 %s142, 1
    %p146 = scmp.eq.s32.totalorder %s12, 1
    %p147 = scmp.ne.s32.totalorder %s142, %s144
    %p148 = scmp.eq.s32.totalorder %s12, 0
    %p149 = por %p147, %p148
    %p150 = scmp.ne.s32.totalorder %s142, %s144
    %p151 = scmp.eq.s32.totalorder %s17, 1
    %p152 = por %p150, %p151
    %p153 = scmp.ne.s32.totalorder %s144, %s145
    %p154 = scmp.eq.s32.totalorder %s17, 0
    %p155 = por %p153, %p154
    %p156 = scmp.ne.s32.totalorder %s144, %s145
    %p157 = scmp.eq.s32.totalorder %s18, 1
    %p158 = por %p156, %p157
    %p160 = scmp.ne.s32.totalorder %s145, %s159
    %p161 = scmp.eq.s32.totalorder %s18, 0
    %p162 = por %p160, %p161
    %s163 = ssub.s32 %s19, %s31
    %s164 = ssub.s32 %s20, %s27
    %s165 = sor.u32 %s163, %s164
    %p166 = scmp.eq.s32.totalorder %s165, 0
    %s168 = sadd.s32 %s167, 1
    %s169 = scalar_select %p166, %s167, %s168
    %p172 = pneg %p166
    %p173 = scmp.eq.s32.totalorder %s12, 1
    %p174 = por %p172, %p173
    %p175 = scmp.ne.s32.totalorder %s167, %s170
    %p176 = scmp.eq.s32.totalorder %s12, 0
    %p177 = por %p175, %p176
    %p178 = scmp.ne.s32.totalorder %s167, %s170
    %p179 = scmp.eq.s32.totalorder %s17, 1
    %p180 = por %p178, %p179
    %p181 = scmp.ne.s32.totalorder %s170, %s171
    %p182 = scmp.eq.s32.totalorder %s17, 0
    %p183 = por %p181, %p182
    %p184 = scmp.ne.s32.totalorder %s170, %s171
    %p185 = scmp.eq.s32.totalorder %s18, 1
    %p186 = por %p184, %p185
    %p188 = scmp.ne.s32.totalorder %s171, %s187
    %p189 = scmp.eq.s32.totalorder %s18, 0
    %p190 = por %p188, %p189
    %p191 = scmp.le.s32.totalorder 1, %s12
    %p192 = scmp.lt.s32.totalorder %s12, 3
    %p193 = pnand %p191, %p192
    %p194 = pneg %p193
    // Predicated region
    $region9: #{tpu_custom_call.1} parent=5 // pred_check
      _
    $region10: #{tpu_custom_call.1} parent=5 // pred_check_branch
      %196 = sbr.rel (%p193) target = $region12
    $region11: #{tpu_custom_call.1} parent=5 // pred_region
      %s197 = ssub.s32 %s12, 1
      // Predicated region
      $region13: #{tpu_custom_call.1} parent=11 // pred_check
        %p198 = pneg %p71
      $region14: #{tpu_custom_call.1} parent=11 // pred_check_branch
        %200 = sbr.rel (%p198) target = $region16
      $region15: #{tpu_custom_call.1} parent=11 // pred_region
        _
      $region16: #{tpu_custom_call.1} parent=11 // pred_fallthru
        _
      // Predicated region
      $region17: #{tpu_custom_call.1} parent=11 // pred_check
        %p201 = pneg %p92
      $region18: #{tpu_custom_call.1} parent=11 // pred_check_branch
        %203 = sbr.rel (%p201) target = $region20
      $region19: #{tpu_custom_call.1} parent=11 // pred_region
        _
      $region20: #{tpu_custom_call.1} parent=11 // pred_fallthru
        _
      // Predicated region
      $region21: #{tpu_custom_call.1} parent=11 // pred_check
        %p204 = pneg %p113
      $region22: #{tpu_custom_call.1} parent=11 // pred_check_branch
        %206 = sbr.rel (%p204) target = $region24
      $region23: #{tpu_custom_call.1} parent=11 // pred_region
        _
      $region24: #{tpu_custom_call.1} parent=11 // pred_fallthru
        _
      // Predicated region
      $region25: #{tpu_custom_call.1} parent=11 // pred_check
        %p207 = pneg %p134
      $region26: #{tpu_custom_call.1} parent=11 // pred_check_branch
        %209 = sbr.rel (%p207) target = $region28
      $region27: #{tpu_custom_call.1} parent=11 // pred_region
        _
      $region28: #{tpu_custom_call.1} parent=11 // pred_fallthru
        _
      // Predicated region
      $region29: #{tpu_custom_call.1} parent=11 // pred_check
        %p210 = pneg %p155
      $region30: #{tpu_custom_call.1} parent=11 // pred_check_branch
        %212 = sbr.rel (%p210) target = $region32
      $region31: #{tpu_custom_call.1} parent=11 // pred_region
        _
      $region32: #{tpu_custom_call.1} parent=11 // pred_fallthru
        _
    $region12: #{tpu_custom_call.1} parent=5 // pred_fallthru
      _
    %p213 = scmp.lt.s32.totalorder %s12, 2
    // Predicated region
    $region33: #{tpu_custom_call.1} parent=5 // pred_check
      %p214 = pneg %p213
    $region34: #{tpu_custom_call.1} parent=5 // pred_check_branch
      %216 = sbr.rel (%p214) target = $region36
    $region35: #{tpu_custom_call.1} parent=5 // pred_region
      // Predicated region
      $region37: #{tpu_custom_call.1} parent=35 // pred_check
        %p217 = pneg %p44
      $region38: #{tpu_custom_call.1} parent=35 // pred_check_branch
        %219 = sbr.rel (%p217) target = $region40
      $region39: #{tpu_custom_call.1} parent=35 // pred_region
        %p220 = scmp.lt.s32.totalorder %s19, 1
        %s221 = scalar_select %p220, %s19, 1
        %s222 = smul.addr %s221, 60
        %s223 = smul.addr %s222, 8
        %s224 = scalar_lea.vmem %s0, %s223
      $region40: #{tpu_custom_call.1} parent=35 // pred_fallthru
        _
    $region36: #{tpu_custom_call.1} parent=5 // pred_fallthru
      _
    %p225 = scmp.le.s32.totalorder 1, %s12
    %p226 = scmp.lt.s32.totalorder %s12, 3
    %p227 = pnand %p225, %p226
    %p228 = pneg %p227
    // Predicated region
    $region41: #{tpu_custom_call.1} parent=5 // pred_check
      _
    $region42: #{tpu_custom_call.1} parent=5 // pred_check_branch
      %230 = sbr.rel (%p227) target = $region44
    $region43: #{tpu_custom_call.1} parent=5 // pred_region
      %s231 = ssub.s32 %s12, 1
      %p232 = scmp.lt.s32.totalorder %s21, 1
      %s233 = scalar_select %p232, %s21, 1
      %s234 = smul.addr %s233, 60
      %s235 = smul.addr %s234, 8
      %s236 = scalar_lea.vmem %s0, %s235
      %p237 = pneg %p50
      %p238 = pneg %p47
      %p239 = pneg %p71
      %p240 = pneg %p68
      %p241 = pneg %p92
      %p242 = pneg %p89
      %p243 = pneg %p113
      %p244 = pneg %p110
      %p245 = pneg %p134
      %p246 = pneg %p131
      %p247 = pneg %p155
      %p248 = pneg %p152
      %p249 = pneg %p183
      %p250 = pneg %p180
      %s251 = smul.u32 48, %s22
      %p252 = scmp.lt.s32.totalorder %s21, 1
      %s253 = scalar_select %p252, %s21, 1
      %p254 = scmp.lt.s32.totalorder %s251, 47
      %s255 = scalar_select %p254, %s251, 47
      %s256 = smul.addr %s253, 48
      %s257 = sadd.s32 %s255, %s256
      %s258 = smul.addr %s257, 8
      %s259 = scalar_lea.vmem %s6, %s258
      %p260 = scmp.lt.s32.totalorder %s21, 1
      %s261 = scalar_select %p260, %s21, 1
      %s262 = smul.addr %s261, 60
      %s263 = smul.addr %s262, 8
      %s264 = scalar_lea.vmem %s0, %s263
      %s265 = smul.u32 48, %s22
      %p266 = scmp.lt.s32.totalorder %s21, 1
      %s267 = scalar_select %p266, %s21, 1
      %p268 = scmp.lt.s32.totalorder %s265, 47
      %s269 = scalar_select %p268, %s265, 47
      %s270 = smul.addr %s267, 48
      %s271 = sadd.s32 %s269, %s270
      %s272 = smul.addr %s271, 8
      %s273 = scalar_lea.vmem %s6, %s272
      %s274 = smul.u32 48, %s22
      %s275 = smul.u32 %s22, 384
      %s276 = scalar_lea.vmem %s264, %s275
      %v277 = vld [vmem:[%s276] sm:$0xff]
      %v278 = vld [vmem:[%s276 + $0x8] sm:$0xff]
      %v279 = vld [vmem:[%s276 + $0x10] sm:$0xff]
      %v280 = vld [vmem:[%s276 + $0x18] sm:$0xff]
      %v281 = vld [vmem:[%s276 + $0x20] sm:$0xff]
      %v282 = vld [vmem:[%s276 + $0x28] sm:$0xff]
      %v283 = vld [vmem:[%s276 + $0x30] sm:$0xff]
      %v284 = vld [vmem:[%s276 + $0x38] sm:$0xff]
      %v285 = vld [vmem:[%s276 + $0x40] sm:$0xff]
      %v286 = vld [vmem:[%s276 + $0x48] sm:$0xff]
      %v287 = vld [vmem:[%s276 + $0x50] sm:$0xff]
      %v288 = vld [vmem:[%s276 + $0x58] sm:$0xff]
      %v289 = vld [vmem:[%s276 + $0x60] sm:$0xff]
      %v290 = vld [vmem:[%s276 + $0x68] sm:$0xff]
      %v291 = vld [vmem:[%s276 + $0x70] sm:$0xff]
      %v292 = vld [vmem:[%s276 + $0x78] sm:$0xff]
      %v293 = vld [vmem:[%s276 + $0x80] sm:$0xff]
      %v294 = vld [vmem:[%s276 + $0x88] sm:$0xff]
      %v295 = vld [vmem:[%s276 + $0x90] sm:$0xff]
      %v296 = vld [vmem:[%s276 + $0x98] sm:$0xff]
      %v297 = vld [vmem:[%s276 + $0xa0] sm:$0xff]
      %v298 = vld [vmem:[%s276 + $0xa8] sm:$0xff]
      %v299 = vld [vmem:[%s276 + $0xb0] sm:$0xff]
      %v300 = vld [vmem:[%s276 + $0xb8] sm:$0xff]
      %v301 = vld [vmem:[%s276 + $0xc0] sm:$0xff]
      %v302 = vld [vmem:[%s276 + $0xc8] sm:$0xff]
      %v303 = vld [vmem:[%s276 + $0xd0] sm:$0xff]
      %v304 = vld [vmem:[%s276 + $0xd8] sm:$0xff]
      %v305 = vld [vmem:[%s276 + $0xe0] sm:$0xff]
      %v306 = vld [vmem:[%s276 + $0xe8] sm:$0xff]
      %v307 = vld [vmem:[%s276 + $0xf0] sm:$0xff]
      %v308 = vld [vmem:[%s276 + $0xf8] sm:$0xff]
      %v309 = vld [vmem:[%s276 + $0x100] sm:$0xff]
      %v310 = vld [vmem:[%s276 + $0x108] sm:$0xff]
      %v311 = vld [vmem:[%s276 + $0x110] sm:$0xff]
      %v312 = vld [vmem:[%s276 + $0x118] sm:$0xff]
      %v313 = vld [vmem:[%s276 + $0x120] sm:$0xff]
      %v314 = vld [vmem:[%s276 + $0x128] sm:$0xff]
      %v315 = vld [vmem:[%s276 + $0x130] sm:$0xff]
      %v316 = vld [vmem:[%s276 + $0x138] sm:$0xff]
      %v317 = vld [vmem:[%s276 + $0x140] sm:$0xff]
      %v318 = vld [vmem:[%s276 + $0x148] sm:$0xff]
      %v319 = vld [vmem:[%s276 + $0x150] sm:$0xff]
      %v320 = vld [vmem:[%s276 + $0x158] sm:$0xff]
      %v321 = vld [vmem:[%s276 + $0x160] sm:$0xff]
      %v322 = vld [vmem:[%s276 + $0x168] sm:$0xff]
      %v323 = vld [vmem:[%s276 + $0x170] sm:$0xff]
      %v324 = vld [vmem:[%s276 + $0x178] sm:$0xff]
      %v325 = vld [vmem:[%s276 + $0x180] sm:$0xff]
      %v326 = vld [vmem:[%s276 + $0x188] sm:$0xff]
      %v327 = vld [vmem:[%s276 + $0x190] sm:$0xff]
      %v328 = vld [vmem:[%s276 + $0x198] sm:$0xff]
      %v329 = vld [vmem:[%s276 + $0x1a0] sm:$0xff]
      %v330 = vld [vmem:[%s276 + $0x1a8] sm:$0xff]
      %v331 = vld [vmem:[%s276 + $0x1b0] sm:$0xff]
      %v332 = vld [vmem:[%s276 + $0x1b8] sm:$0xff]
      %v333 = vld [vmem:[%s276 + $0x1c0] sm:$0xff]
      %v334 = vld [vmem:[%s1] sm:$0x1f]
      %vm335 = vcmask 39936
      %v337 = vsel %vm335, %v277, 0
      %v340 = vsel %vm335, %v278, 0
      %v343 = vsel %vm335, %v279, 0
      %v346 = vsel %vm335, %v280, 0
      %v349 = vsel %vm335, %v281, 0
      %v352 = vsel %vm335, %v282, 0
      %v355 = vsel %vm335, %v283, 0
      %v358 = vsel %vm335, %v284, 0
      %v361 = vsel %vm335, %v285, 0
      %v364 = vsel %vm335, %v286, 0
      %v367 = vsel %vm335, %v287, 0
      %v370 = vsel %vm335, %v288, 0
      %v373 = vsel %vm335, %v289, 0
      %v376 = vsel %vm335, %v290, 0
      %v379 = vsel %vm335, %v291, 0
      %v382 = vsel %vm335, %v292, 0
      %v385 = vsel %vm335, %v293, 0
      %v388 = vsel %vm335, %v294, 0
      %v391 = vsel %vm335, %v295, 0
      %v394 = vsel %vm335, %v296, 0
      %v397 = vsel %vm335, %v297, 0
      %v400 = vsel %vm335, %v298, 0
      %v403 = vsel %vm335, %v299, 0
      %v406 = vsel %vm335, %v300, 0
      %v409 = vsel %vm335, %v301, 0
      %v412 = vsel %vm335, %v302, 0
      %v415 = vsel %vm335, %v303, 0
      %v418 = vsel %vm335, %v304, 0
      %v421 = vsel %vm335, %v305, 0
      %v424 = vsel %vm335, %v306, 0
      %v427 = vsel %vm335, %v307, 0
      %v430 = vsel %vm335, %v308, 0
      %v433 = vsel %vm335, %v309, 0
      %v436 = vsel %vm335, %v310, 0
      %v439 = vsel %vm335, %v311, 0
      %v442 = vsel %vm335, %v312, 0
      %v445 = vsel %vm335, %v313, 0
      %v448 = vsel %vm335, %v314, 0
      %v451 = vsel %vm335, %v315, 0
      %v454 = vsel %vm335, %v316, 0
      %v457 = vsel %vm335, %v317, 0
      %v460 = vsel %vm335, %v318, 0
      %v463 = vsel %vm335, %v319, 0
      %v466 = vsel %vm335, %v320, 0
      %v469 = vsel %vm335, %v321, 0
      %v472 = vsel %vm335, %v322, 0
      %v475 = vsel %vm335, %v323, 0
      %v478 = vsel %vm335, %v324, 0
      %v481 = vsel %vm335, %v325, 0
      %v484 = vsel %vm335, %v326, 0
      %v487 = vsel %vm335, %v327, 0
      %v490 = vsel %vm335, %v328, 0
      %v493 = vsel %vm335, %v329, 0
      %v496 = vsel %vm335, %v330, 0
      %v499 = vsel %vm335, %v331, 0
      %v502 = vsel %vm335, %v332, 0
      %v505 = vsel %vm335, %v333, 0
      %vm507 = vcmask 1044480
      %v509 = vsel %vm507, %v334, 0
      %511 = vmatprep.subr.mxu0 0.0
      %512 = vmatpush1.msra.mxu0 0.0
      %513 = vmatprep.subr.mxu0 0.0
      %514 = vmatpush1.msra.mxu0 0.0
      %515 = vmatprep.subr.mxu0 0.0
      %516 = vmatpush1.msra.mxu0 0.0
      %517 = vmatprep.subr.mxu0 0.0
      %518 = vmatpush1.msra.mxu0 0.0
      %519 = vmatprep.subr.mxu0 0.0
      %520 = vmatpush1.msra.mxu0 0.0
      %521 = vmatprep.subr.mxu0 0.0
      %522 = vmatpush1.msra.mxu0 0.0
      %523 = vmatprep.subr.mxu0 0.0
      %524 = vmatpush1.msra.mxu0 0.0
      %525 = vmatprep.subr.mxu0 0.0
      %526 = vmatpush1.msra.mxu0 0.0
      %527 = vmatprep.subr.mxu0 0.0
      %528 = vmatpush1.msra.mxu0 0.0
      %529 = vmatprep.subr.mxu0 0.0
      %530 = vmatpush1.msra.mxu0 0.0
      %531 = vmatprep.subr.mxu0 0.0
      %532 = vmatpush1.msra.mxu0 0.0
      %533 = vmatprep.subr.mxu0 0.0
      %534 = vmatpush1.msra.mxu0 0.0
      %535 = vmatprep.subr.mxu0 0.0
      %536 = vmatpush1.msra.mxu0 0.0
      %537 = vmatprep.subr.mxu0 0.0
      %538 = vmatpush1.msra.mxu0 0.0
      %539 = vmatprep.subr.mxu0 0.0
      %540 = vmatpush1.msra.mxu0 0.0
      %541 = vmatprep.subr.mxu0 0.0
      %542 = vmatpush1.msra.mxu0 %v509
      %543 = vmatprep.subr.mxu0 0.0
      %544 = vmatpush2.msra.mxu0 0.0
      %545 = vmatprep.subr.mxu0 0.0
      %546 = vmatpush2.msra.mxu0 0.0
      %547 = vmatprep.subr.mxu0 0.0
      %548 = vmatpush2.msra.mxu0 0.0
      %549 = vmatprep.subr.mxu0 0.0
      %550 = vmatpush2.msra.mxu0 0.0
      %551 = vmatprep.subr.mxu0 0.0
      %552 = vmatpush2.msra.mxu0 0.0
      %553 = vmatprep.subr.mxu0 0.0
      %554 = vmatpush2.msra.mxu0 0.0
      %555 = vmatprep.subr.mxu0 0.0
      %556 = vmatpush2.msra.mxu0 0.0
      %557 = vmatprep.subr.mxu0 0.0
      %558 = vmatpush2.msra.mxu0 0.0
      %559 = vmatprep.subr.mxu0 0.0
      %560 = vmatpush2.msra.mxu0 0.0
      %561 = vmatprep.subr.mxu0 0.0
      %562 = vmatpush2.msra.mxu0 0.0
      %563 = vmatprep.subr.mxu0 0.0
      %564 = vmatpush2.msra.mxu0 0.0
      %565 = vmatprep.subr.mxu0 0.0
      %566 = vmatpush2.msra.mxu0 0.0
      %567 = vmatprep.subr.mxu0 0.0
      %568 = vmatpush2.msra.mxu0 0.0
      %569 = vmatprep.subr.mxu0 0.0
      %570 = vmatpush2.msra.mxu0 0.0
      %571 = vmatprep.subr.mxu0 0.0
      %572 = vmatpush2.msra.mxu0 0.0
      %573 = vmatprep.subr.mxu0 0.0
      %574 = vmatpush2.msra.mxu0 0.0
      %575 = vmatprep.mubr.f32.mxu0 0.0
      %576 = vmatmul.mubr.f32.gmra.mxu0 %v337
      %v577 = vpop.f32.mrf.mxu0
      %v578 = vadd.f32 0.0, %v577
      %v579 = vpop.f32.mrf.mxu0
      %580 = vmatprep.mubr.f32.mxu0 0.0
      %581 = vmatmul.mubr.f32.gmra.mxu0 %v340
      %v582 = vpop.f32.mrf.mxu0
      %v583 = vadd.f32 0.0, %v582
      %v584 = vpop.f32.mrf.mxu0
      %585 = vmatprep.mubr.f32.mxu0 0.0
      %586 = vmatmul.mubr.f32.gmra.mxu0 %v343
      %v587 = vpop.f32.mrf.mxu0
      %v588 = vadd.f32 0.0, %v587
      %v589 = vpop.f32.mrf.mxu0
      %590 = vmatprep.mubr.f32.mxu0 0.0
      %591 = vmatmul.mubr.f32.gmra.mxu0 %v346
      %v592 = vpop.f32.mrf.mxu0
      %v593 = vadd.f32 0.0, %v592
      %v594 = vpop.f32.mrf.mxu0
      %595 = vmatprep.mubr.f32.mxu0 0.0
      %596 = vmatmul.mubr.f32.gmra.mxu0 %v349
      %v597 = vpop.f32.mrf.mxu0
      %v598 = vadd.f32 0.0, %v597
      %v599 = vpop.f32.mrf.mxu0
      %600 = vmatprep.mubr.f32.mxu0 0.0
      %601 = vmatmul.mubr.f32.gmra.mxu0 %v352
      %v602 = vpop.f32.mrf.mxu0
      %v603 = vadd.f32 0.0, %v602
      %v604 = vpop.f32.mrf.mxu0
      %605 = vmatprep.mubr.f32.mxu0 0.0
      %606 = vmatmul.mubr.f32.gmra.mxu0 %v355
      %v607 = vpop.f32.mrf.mxu0
      %v608 = vadd.f32 0.0, %v607
      %v609 = vpop.f32.mrf.mxu0
      %610 = vmatprep.mubr.f32.mxu0 0.0
      %611 = vmatmul.mubr.f32.gmra.mxu0 %v358
      %v612 = vpop.f32.mrf.mxu0
      %v613 = vadd.f32 0.0, %v612
      %v614 = vpop.f32.mrf.mxu0
      %615 = vmatprep.mubr.f32.mxu0 0.0
      %616 = vmatmul.mubr.f32.gmra.mxu0 %v361
      %v617 = vpop.f32.mrf.mxu0
      %v618 = vadd.f32 0.0, %v617
      %v619 = vpop.f32.mrf.mxu0
      %620 = vmatprep.mubr.f32.mxu0 0.0
      %621 = vmatmul.mubr.f32.gmra.mxu0 %v364
      %v622 = vpop.f32.mrf.mxu0
      %v623 = vadd.f32 0.0, %v622
      %v624 = vpop.f32.mrf.mxu0
      %625 = vmatprep.mubr.f32.mxu0 0.0
      %626 = vmatmul.mubr.f32.gmra.mxu0 %v367
      %v627 = vpop.f32.mrf.mxu0
      %v628 = vadd.f32 0.0, %v627
      %v629 = vpop.f32.mrf.mxu0
      %630 = vmatprep.mubr.f32.mxu0 0.0
      %631 = vmatmul.mubr.f32.gmra.mxu0 %v370
      %v632 = vpop.f32.mrf.mxu0
      %v633 = vadd.f32 0.0, %v632
      %v634 = vpop.f32.mrf.mxu0
      %635 = vmatprep.mubr.f32.mxu0 0.0
      %636 = vmatmul.mubr.f32.gmra.mxu0 %v373
      %v637 = vpop.f32.mrf.mxu0
      %v638 = vadd.f32 0.0, %v637
      %v639 = vpop.f32.mrf.mxu0
      %640 = vmatprep.mubr.f32.mxu0 0.0
      %641 = vmatmul.mubr.f32.gmra.mxu0 %v376
      %v642 = vpop.f32.mrf.mxu0
      %v643 = vadd.f32 0.0, %v642
      %v644 = vpop.f32.mrf.mxu0
      %645 = vmatprep.mubr.f32.mxu0 0.0
      %646 = vmatmul.mubr.f32.gmra.mxu0 %v379
      %v647 = vpop.f32.mrf.mxu0
      %v648 = vadd.f32 0.0, %v647
      %v649 = vpop.f32.mrf.mxu0
      %650 = vmatprep.mubr.f32.mxu0 0.0
      %651 = vmatmul.mubr.f32.gmra.mxu0 %v382
      %v652 = vpop.f32.mrf.mxu0
      %v653 = vadd.f32 0.0, %v652
      %v654 = vpop.f32.mrf.mxu0
      %655 = vmatprep.mubr.f32.mxu0 0.0
      %656 = vmatmul.mubr.f32.gmra.mxu0 %v385
      %v657 = vpop.f32.mrf.mxu0
      %v658 = vadd.f32 0.0, %v657
      %v659 = vpop.f32.mrf.mxu0
      %660 = vmatprep.mubr.f32.mxu0 0.0
      %661 = vmatmul.mubr.f32.gmra.mxu0 %v388
      %v662 = vpop.f32.mrf.mxu0
      %v663 = vadd.f32 0.0, %v662
      %v664 = vpop.f32.mrf.mxu0
      %665 = vmatprep.mubr.f32.mxu0 0.0
      %666 = vmatmul.mubr.f32.gmra.mxu0 %v391
      %v667 = vpop.f32.mrf.mxu0
      %v668 = vadd.f32 0.0, %v667
      %v669 = vpop.f32.mrf.mxu0
      %670 = vmatprep.mubr.f32.mxu0 0.0
      %671 = vmatmul.mubr.f32.gmra.mxu0 %v394
      %v672 = vpop.f32.mrf.mxu0
      %v673 = vadd.f32 0.0, %v672
      %v674 = vpop.f32.mrf.mxu0
      %675 = vmatprep.mubr.f32.mxu0 0.0
      %676 = vmatmul.mubr.f32.gmra.mxu0 %v397
      %v677 = vpop.f32.mrf.mxu0
      %v678 = vadd.f32 0.0, %v677
      %v679 = vpop.f32.mrf.mxu0
      %680 = vmatprep.mubr.f32.mxu0 0.0
      %681 = vmatmul.mubr.f32.gmra.mxu0 %v400
      %v682 = vpop.f32.mrf.mxu0
      %v683 = vadd.f32 0.0, %v682
      %v684 = vpop.f32.mrf.mxu0
      %685 = vmatprep.mubr.f32.mxu0 0.0
      %686 = vmatmul.mubr.f32.gmra.mxu0 %v403
      %v687 = vpop.f32.mrf.mxu0
      %v688 = vadd.f32 0.0, %v687
      %v689 = vpop.f32.mrf.mxu0
      %690 = vmatprep.mubr.f32.mxu0 0.0
      %691 = vmatmul.mubr.f32.gmra.mxu0 %v406
      %v692 = vpop.f32.mrf.mxu0
      %v693 = vadd.f32 0.0, %v692
      %v694 = vpop.f32.mrf.mxu0
      %695 = vmatprep.mubr.f32.mxu0 0.0
      %696 = vmatmul.mubr.f32.gmra.mxu0 %v409
      %v697 = vpop.f32.mrf.mxu0
      %v698 = vadd.f32 0.0, %v697
      %v699 = vpop.f32.mrf.mxu0
      %700 = vmatprep.mubr.f32.mxu0 0.0
      %701 = vmatmul.mubr.f32.gmra.mxu0 %v412
      %v702 = vpop.f32.mrf.mxu0
      %v703 = vadd.f32 0.0, %v702
      %v704 = vpop.f32.mrf.mxu0
      %705 = vmatprep.mubr.f32.mxu0 0.0
      %706 = vmatmul.mubr.f32.gmra.mxu0 %v415
      %v707 = vpop.f32.mrf.mxu0
      %v708 = vadd.f32 0.0, %v707
      %v709 = vpop.f32.mrf.mxu0
      %710 = vmatprep.mubr.f32.mxu0 0.0
      %711 = vmatmul.mubr.f32.gmra.mxu0 %v418
      %v712 = vpop.f32.mrf.mxu0
      %v713 = vadd.f32 0.0, %v712
      %v714 = vpop.f32.mrf.mxu0
      %715 = vmatprep.mubr.f32.mxu0 0.0
      %716 = vmatmul.mubr.f32.gmra.mxu0 %v421
      %v717 = vpop.f32.mrf.mxu0
      %v718 = vadd.f32 0.0, %v717
      %v719 = vpop.f32.mrf.mxu0
      %720 = vmatprep.mubr.f32.mxu0 0.0
      %721 = vmatmul.mubr.f32.gmra.mxu0 %v424
      %v722 = vpop.f32.mrf.mxu0
      %v723 = vadd.f32 0.0, %v722
      %v724 = vpop.f32.mrf.mxu0
      %725 = vmatprep.mubr.f32.mxu0 0.0
      %726 = vmatmul.mubr.f32.gmra.mxu0 %v427
      %v727 = vpop.f32.mrf.mxu0
      %v728 = vadd.f32 0.0, %v727
      %v729 = vpop.f32.mrf.mxu0
      %730 = vmatprep.mubr.f32.mxu0 0.0
      %731 = vmatmul.mubr.f32.gmra.mxu0 %v430
      %v732 = vpop.f32.mrf.mxu0
      %v733 = vadd.f32 0.0, %v732
      %v734 = vpop.f32.mrf.mxu0
      %735 = vmatprep.mubr.f32.mxu0 0.0
      %736 = vmatmul.mubr.f32.gmra.mxu0 %v433
      %v737 = vpop.f32.mrf.mxu0
      %v738 = vadd.f32 0.0, %v737
      %v739 = vpop.f32.mrf.mxu0
      %740 = vmatprep.mubr.f32.mxu0 0.0
      %741 = vmatmul.mubr.f32.gmra.mxu0 %v436
      %v742 = vpop.f32.mrf.mxu0
      %v743 = vadd.f32 0.0, %v742
      %v744 = vpop.f32.mrf.mxu0
      %745 = vmatprep.mubr.f32.mxu0 0.0
      %746 = vmatmul.mubr.f32.gmra.mxu0 %v439
      %v747 = vpop.f32.mrf.mxu0
      %v748 = vadd.f32 0.0, %v747
      %v749 = vpop.f32.mrf.mxu0
      %750 = vmatprep.mubr.f32.mxu0 0.0
      %751 = vmatmul.mubr.f32.gmra.mxu0 %v442
      %v752 = vpop.f32.mrf.mxu0
      %v753 = vadd.f32 0.0, %v752
      %v754 = vpop.f32.mrf.mxu0
      %755 = vmatprep.mubr.f32.mxu0 0.0
      %756 = vmatmul.mubr.f32.gmra.mxu0 %v445
      %v757 = vpop.f32.mrf.mxu0
      %v758 = vadd.f32 0.0, %v757
      %v759 = vpop.f32.mrf.mxu0
      %760 = vmatprep.mubr.f32.mxu0 0.0
      %761 = vmatmul.mubr.f32.gmra.mxu0 %v448
      %v762 = vpop.f32.mrf.mxu0
      %v763 = vadd.f32 0.0, %v762
      %v764 = vpop.f32.mrf.mxu0
      %765 = vmatprep.mubr.f32.mxu0 0.0
      %766 = vmatmul.mubr.f32.gmra.mxu0 %v451
      %v767 = vpop.f32.mrf.mxu0
      %v768 = vadd.f32 0.0, %v767
      %v769 = vpop.f32.mrf.mxu0
      %770 = vmatprep.mubr.f32.mxu0 0.0
      %771 = vmatmul.mubr.f32.gmra.mxu0 %v454
      %v772 = vpop.f32.mrf.mxu0
      %v773 = vadd.f32 0.0, %v772
      %v774 = vpop.f32.mrf.mxu0
      %775 = vmatprep.mubr.f32.mxu0 0.0
      %776 = vmatmul.mubr.f32.gmra.mxu0 %v457
      %v777 = vpop.f32.mrf.mxu0
      %v778 = vadd.f32 0.0, %v777
      %v779 = vpop.f32.mrf.mxu0
      %780 = vmatprep.mubr.f32.mxu0 0.0
      %781 = vmatmul.mubr.f32.gmra.mxu0 %v460
      %v782 = vpop.f32.mrf.mxu0
      %v783 = vadd.f32 0.0, %v782
      %v784 = vpop.f32.mrf.mxu0
      %785 = vmatprep.mubr.f32.mxu0 0.0
      %786 = vmatmul.mubr.f32.gmra.mxu0 %v463
      %v787 = vpop.f32.mrf.mxu0
      %v788 = vadd.f32 0.0, %v787
      %v789 = vpop.f32.mrf.mxu0
      %790 = vmatprep.mubr.f32.mxu0 0.0
      %791 = vmatmul.mubr.f32.gmra.mxu0 %v466
      %v792 = vpop.f32.mrf.mxu0
      %v793 = vadd.f32 0.0, %v792
      %v794 = vpop.f32.mrf.mxu0
      %795 = vmatprep.mubr.f32.mxu0 0.0
      %796 = vmatmul.mubr.f32.gmra.mxu0 %v469
      %v797 = vpop.f32.mrf.mxu0
      %v798 = vadd.f32 0.0, %v797
      %v799 = vpop.f32.mrf.mxu0
      %800 = vmatprep.mubr.f32.mxu0 0.0
      %801 = vmatmul.mubr.f32.gmra.mxu0 %v472
      %v802 = vpop.f32.mrf.mxu0
      %v803 = vadd.f32 0.0, %v802
      %v804 = vpop.f32.mrf.mxu0
      %805 = vmatprep.mubr.f32.mxu0 0.0
      %806 = vmatmul.mubr.f32.gmra.mxu0 %v475
      %v807 = vpop.f32.mrf.mxu0
      %v808 = vadd.f32 0.0, %v807
      %v809 = vpop.f32.mrf.mxu0
      %810 = vmatprep.mubr.f32.mxu0 0.0
      %811 = vmatmul.mubr.f32.gmra.mxu0 %v478
      %v812 = vpop.f32.mrf.mxu0
      %v813 = vadd.f32 0.0, %v812
      %v814 = vpop.f32.mrf.mxu0
      %815 = vmatprep.mubr.f32.mxu0 0.0
      %816 = vmatmul.mubr.f32.gmra.mxu0 %v481
      %v817 = vpop.f32.mrf.mxu0
      %v818 = vadd.f32 0.0, %v817
      %v819 = vpop.f32.mrf.mxu0
      %820 = vmatprep.mubr.f32.mxu0 0.0
      %821 = vmatmul.mubr.f32.gmra.mxu0 %v484
      %v822 = vpop.f32.mrf.mxu0
      %v823 = vadd.f32 0.0, %v822
      %v824 = vpop.f32.mrf.mxu0
      %825 = vmatprep.mubr.f32.mxu0 0.0
      %826 = vmatmul.mubr.f32.gmra.mxu0 %v487
      %v827 = vpop.f32.mrf.mxu0
      %v828 = vadd.f32 0.0, %v827
      %v829 = vpop.f32.mrf.mxu0
      %830 = vmatprep.mubr.f32.mxu0 0.0
      %831 = vmatmul.mubr.f32.gmra.mxu0 %v490
      %v832 = vpop.f32.mrf.mxu0
      %v833 = vadd.f32 0.0, %v832
      %v834 = vpop.f32.mrf.mxu0
      %835 = vmatprep.mubr.f32.mxu0 0.0
      %836 = vmatmul.mubr.f32.gmra.mxu0 %v493
      %v837 = vpop.f32.mrf.mxu0
      %v838 = vadd.f32 0.0, %v837
      %v839 = vpop.f32.mrf.mxu0
      %840 = vmatprep.mubr.f32.mxu0 0.0
      %841 = vmatmul.mubr.f32.gmra.mxu0 %v496
      %v842 = vpop.f32.mrf.mxu0
      %v843 = vadd.f32 0.0, %v842
      %v844 = vpop.f32.mrf.mxu0
      %845 = vmatprep.mubr.f32.mxu0 0.0
      %846 = vmatmul.mubr.f32.gmra.mxu0 %v499
      %v847 = vpop.f32.mrf.mxu0
      %v848 = vadd.f32 0.0, %v847
      %v849 = vpop.f32.mrf.mxu0
      %850 = vmatprep.mubr.f32.mxu0 0.0
      %851 = vmatmul.mubr.f32.gmra.mxu0 %v502
      %v852 = vpop.f32.mrf.mxu0
      %v853 = vpop.f32.mrf.mxu0
      %854 = vmatprep.mubr.f32.mxu0 0.0
      %855 = vmatmul.mubr.f32.gmra.mxu0 %v505
      %v856 = vpop.f32.mrf.mxu0
      %v857 = vpop.f32.mrf.mxu0
      %858 = vdwg.mxu0
      %v859 = vmax.f32 %v578, 0.0
      %v860 = vmax.f32 %v583, 0.0
      %v861 = vmax.f32 %v588, 0.0
      %v862 = vmax.f32 %v593, 0.0
      %v863 = vmax.f32 %v598, 0.0
      %v864 = vmax.f32 %v603, 0.0
      %v865 = vmax.f32 %v608, 0.0
      %v866 = vmax.f32 %v613, 0.0
      %v867 = vmax.f32 %v618, 0.0
      %v868 = vmax.f32 %v623, 0.0
      %v869 = vmax.f32 %v628, 0.0
      %v870 = vmax.f32 %v633, 0.0
      %v871 = vmax.f32 %v638, 0.0
      %v872 = vmax.f32 %v643, 0.0
      %v873 = vmax.f32 %v648, 0.0
      %v874 = vmax.f32 %v653, 0.0
      %v875 = vmax.f32 %v658, 0.0
      %v876 = vmax.f32 %v663, 0.0
      %v877 = vmax.f32 %v668, 0.0
      %v878 = vmax.f32 %v673, 0.0
      %v879 = vmax.f32 %v678, 0.0
      %v880 = vmax.f32 %v683, 0.0
      %v881 = vmax.f32 %v688, 0.0
      %v882 = vmax.f32 %v693, 0.0
      %v883 = vmax.f32 %v698, 0.0
      %v884 = vmax.f32 %v703, 0.0
      %v885 = vmax.f32 %v708, 0.0
      %v886 = vmax.f32 %v713, 0.0
      %v887 = vmax.f32 %v718, 0.0
      %v888 = vmax.f32 %v723, 0.0
      %v889 = vmax.f32 %v728, 0.0
      %v890 = vmax.f32 %v733, 0.0
      %v891 = vmax.f32 %v738, 0.0
      %v892 = vmax.f32 %v743, 0.0
      %v893 = vmax.f32 %v748, 0.0
      %v894 = vmax.f32 %v753, 0.0
      %v895 = vmax.f32 %v758, 0.0
      %v896 = vmax.f32 %v763, 0.0
      %v897 = vmax.f32 %v768, 0.0
      %v898 = vmax.f32 %v773, 0.0
      %v899 = vmax.f32 %v778, 0.0
      %v900 = vmax.f32 %v783, 0.0
      %v901 = vmax.f32 %v788, 0.0
      %v902 = vmax.f32 %v793, 0.0
      %v903 = vmax.f32 %v798, 0.0
      %v904 = vmax.f32 %v803, 0.0
      %v905 = vmax.f32 %v808, 0.0
      %v906 = vmax.f32 %v813, 0.0
      %v907 = vmax.f32 %v818, 0.0
      %v908 = vmax.f32 %v823, 0.0
      %v909 = vmax.f32 %v828, 0.0
      %v910 = vmax.f32 %v833, 0.0
      %v911 = vmax.f32 %v838, 0.0
      %v912 = vmax.f32 %v843, 0.0
      %v913 = vmax.f32 %v848, 0.0
      %v914 = vmin.f32 %v859, 6.0
      %v915 = vmin.f32 %v860, 6.0
      %v916 = vmin.f32 %v861, 6.0
      %v917 = vmin.f32 %v862, 6.0
      %v918 = vmin.f32 %v863, 6.0
      %v919 = vmin.f32 %v864, 6.0
      %v920 = vmin.f32 %v865, 6.0
      %v921 = vmin.f32 %v866, 6.0
      %v922 = vmin.f32 %v867, 6.0
      %v923 = vmin.f32 %v868, 6.0
      %v924 = vmin.f32 %v869, 6.0
      %v925 = vmin.f32 %v870, 6.0
      %v926 = vmin.f32 %v871, 6.0
      %v927 = vmin.f32 %v872, 6.0
      %v928 = vmin.f32 %v873, 6.0
      %v929 = vmin.f32 %v874, 6.0
      %v930 = vmin.f32 %v875, 6.0
      %v931 = vmin.f32 %v876, 6.0
      %v932 = vmin.f32 %v877, 6.0
      %v933 = vmin.f32 %v878, 6.0
      %v934 = vmin.f32 %v879, 6.0
      %v935 = vmin.f32 %v880, 6.0
      %v936 = vmin.f32 %v881, 6.0
      %v937 = vmin.f32 %v882, 6.0
      %v938 = vmin.f32 %v883, 6.0
      %v939 = vmin.f32 %v884, 6.0
      %v940 = vmin.f32 %v885, 6.0
      %v941 = vmin.f32 %v886, 6.0
      %v942 = vmin.f32 %v887, 6.0
      %v943 = vmin.f32 %v888, 6.0
      %v944 = vmin.f32 %v889, 6.0
      %v945 = vmin.f32 %v890, 6.0
      %v946 = vmin.f32 %v891, 6.0
      %v947 = vmin.f32 %v892, 6.0
      %v948 = vmin.f32 %v893, 6.0
      %v949 = vmin.f32 %v894, 6.0
      %v950 = vmin.f32 %v895, 6.0
      %v951 = vmin.f32 %v896, 6.0
      %v952 = vmin.f32 %v897, 6.0
      %v953 = vmin.f32 %v898, 6.0
      %v954 = vmin.f32 %v899, 6.0
      %v955 = vmin.f32 %v900, 6.0
      %v956 = vmin.f32 %v901, 6.0
      %v957 = vmin.f32 %v902, 6.0
      %v958 = vmin.f32 %v903, 6.0
      %v959 = vmin.f32 %v904, 6.0
      %v960 = vmin.f32 %v905, 6.0
      %v961 = vmin.f32 %v906, 6.0
      %v962 = vmin.f32 %v907, 6.0
      %v963 = vmin.f32 %v908, 6.0
      %v964 = vmin.f32 %v909, 6.0
      %v965 = vmin.f32 %v910, 6.0
      %v966 = vmin.f32 %v911, 6.0
      %v967 = vmin.f32 %v912, 6.0
      %v968 = vmin.f32 %v913, 6.0
      %v969 = vld [vmem:[%s2] sm:$0xff]
      %v970 = vld [vmem:[%s2 + $0x8] sm:$0x1]
      %v971 = vld [vmem:[%s3] sm:$0x1]
      %v972 = vld [vmem:[%s4] sm:$0xff]
      %v973 = vld [vmem:[%s4 + $0x8] sm:$0xff]
      %v974 = vld [vmem:[%s4 + $0x10] sm:$0xff]
      %v975 = vld [vmem:[%s5] sm:$0x1]
      %v976 = vlaneseq
      %v977 = vshrl.u32 %v976, 7
      %v978 = vsub.s32 0, %v977
      %v979 = vrot.slane %v969, %v978
      %v980 = vmul.f32 %v914, %v979
      %v981 = vmul.f32 %v915, %v979
      %v982 = vmul.f32 %v916, %v979
      %v983 = vmul.f32 %v917, %v979
      %v984 = vmul.f32 %v918, %v979
      %v985 = vmul.f32 %v919, %v979
      %v986 = vmul.f32 %v920, %v979
      %v987 = vmul.f32 %v921, %v979
      %v988 = vmul.f32 %v922, %v979
      %v989 = vmul.f32 %v923, %v979
      %v990 = vmul.f32 %v924, %v979
      %v991 = vmul.f32 %v925, %v979
      %v992 = vmul.f32 %v926, %v979
      %v993 = vmul.f32 %v927, %v979
      %v994 = vmul.f32 %v928, %v979
      %v995 = vmul.f32 %v929, %v979
      %v996 = vmul.f32 %v930, %v979
      %v997 = vmul.f32 %v931, %v979
      %v998 = vmul.f32 %v932, %v979
      %v999 = vmul.f32 %v933, %v979
      %v1000 = vmul.f32 %v934, %v979
      %v1001 = vmul.f32 %v935, %v979
      %v1002 = vmul.f32 %v936, %v979
      %v1003 = vmul.f32 %v937, %v979
      %v1004 = vmul.f32 %v938, %v979
      %v1005 = vmul.f32 %v939, %v979
      %v1006 = vmul.f32 %v940, %v979
      %v1007 = vmul.f32 %v941, %v979
      %v1008 = vmul.f32 %v942, %v979
      %v1009 = vmul.f32 %v943, %v979
      %v1010 = vmul.f32 %v944, %v979
      %v1011 = vmul.f32 %v945, %v979
      %v1012 = vmul.f32 %v946, %v979
      %v1013 = vmul.f32 %v947, %v979
      %v1014 = vmul.f32 %v948, %v979
      %v1015 = vmul.f32 %v949, %v979
      %v1016 = vmul.f32 %v950, %v979
      %v1017 = vmul.f32 %v951, %v979
      %v1018 = vmul.f32 %v952, %v979
      %v1019 = vmul.f32 %v953, %v979
      %v1020 = vmul.f32 %v954, %v979
      %v1021 = vmul.f32 %v955, %v979
      %v1022 = vmul.f32 %v956, %v979
      %v1023 = vmul.f32 %v957, %v979
      %v1024 = vmul.f32 %v958, %v979
      %v1025 = vmul.f32 %v959, %v979
      %v1026 = vmul.f32 %v960, %v979
      %v1027 = vmul.f32 %v961, %v979
      %v1029 = vlaneseq
      %v1030 = vshrl.u32 %v1029, 7
      %v1031 = vsub.s32 0, %v1030
      %v1032 = vrot.slane %v971, %v1031
      %v1034 = vadd.f32 %v1032, %v980
      %v1035 = vadd.f32 %v1032, %v981
      %v1036 = vadd.f32 %v1032, %v982
      %v1037 = vadd.f32 %v1032, %v983
      %v1038 = vadd.f32 %v1032, %v984
      %v1039 = vadd.f32 %v1032, %v985
      %v1040 = vadd.f32 %v1032, %v986
      %v1041 = vadd.f32 %v1032, %v987
      %v1042 = vadd.f32 %v1032, %v988
      %v1043 = vadd.f32 %v1032, %v989
      %v1044 = vadd.f32 %v1032, %v990
      %v1045 = vadd.f32 %v1032, %v991
      %v1046 = vadd.f32 %v1032, %v992
      %v1047 = vadd.f32 %v1032, %v993
      %v1048 = vadd.f32 %v1032, %v994
      %v1049 = vadd.f32 %v1032, %v995
      %v1050 = vadd.f32 %v1032, %v996
      %v1051 = vadd.f32 %v1032, %v997
      %v1052 = vadd.f32 %v1032, %v998
      %v1053 = vadd.f32 %v1032, %v999
      %v1054 = vadd.f32 %v1032, %v1000
      %v1055 = vadd.f32 %v1032, %v1001
      %v1056 = vadd.f32 %v1032, %v1002
      %v1057 = vadd.f32 %v1032, %v1003
      %v1058 = vadd.f32 %v1032, %v1004
      %v1059 = vadd.f32 %v1032, %v1005
      %v1060 = vadd.f32 %v1032, %v1006
      %v1061 = vadd.f32 %v1032, %v1007
      %v1062 = vadd.f32 %v1032, %v1008
      %v1063 = vadd.f32 %v1032, %v1009
      %v1064 = vadd.f32 %v1032, %v1010
      %v1065 = vadd.f32 %v1032, %v1011
      %v1066 = vadd.f32 %v1032, %v1012
      %v1067 = vadd.f32 %v1032, %v1013
      %v1068 = vadd.f32 %v1032, %v1014
      %v1069 = vadd.f32 %v1032, %v1015
      %v1070 = vadd.f32 %v1032, %v1016
      %v1071 = vadd.f32 %v1032, %v1017
      %v1072 = vadd.f32 %v1032, %v1018
      %v1073 = vadd.f32 %v1032, %v1019
      %v1074 = vadd.f32 %v1032, %v1020
      %v1075 = vadd.f32 %v1032, %v1021
      %v1076 = vadd.f32 %v1032, %v1022
      %v1077 = vadd.f32 %v1032, %v1023
      %v1078 = vadd.f32 %v1032, %v1024
      %v1079 = vadd.f32 %v1032, %v1025
      %v1080 = vadd.f32 %v1032, %v1026
      %v1081 = vadd.f32 %v1032, %v1027
      %v1082 = vlaneseq
      %v1083 = vshrl.u32 %v1082, 7
      %v1084 = vsub.s32 1, %v1083
      %v1085 = vrot.slane %v969, %v1084
      %v1086 = vmul.f32 %v914, %v1085
      %v1087 = vmul.f32 %v915, %v1085
      %v1088 = vmul.f32 %v916, %v1085
      %v1089 = vmul.f32 %v917, %v1085
      %v1090 = vmul.f32 %v918, %v1085
      %v1091 = vmul.f32 %v919, %v1085
      %v1092 = vmul.f32 %v920, %v1085
      %v1093 = vmul.f32 %v921, %v1085
      %v1094 = vmul.f32 %v922, %v1085
      %v1095 = vmul.f32 %v923, %v1085
      %v1096 = vmul.f32 %v924, %v1085
      %v1097 = vmul.f32 %v925, %v1085
      %v1098 = vmul.f32 %v926, %v1085
      %v1099 = vmul.f32 %v927, %v1085
      %v1100 = vmul.f32 %v928, %v1085
      %v1101 = vmul.f32 %v929, %v1085
      %v1102 = vmul.f32 %v930, %v1085
      %v1103 = vmul.f32 %v931, %v1085
      %v1104 = vmul.f32 %v932, %v1085
      %v1105 = vmul.f32 %v933, %v1085
      %v1106 = vmul.f32 %v934, %v1085
      %v1107 = vmul.f32 %v935, %v1085
      %v1108 = vmul.f32 %v936, %v1085
      %v1109 = vmul.f32 %v937, %v1085
      %v1110 = vmul.f32 %v938, %v1085
      %v1111 = vmul.f32 %v939, %v1085
      %v1112 = vmul.f32 %v940, %v1085
      %v1113 = vmul.f32 %v941, %v1085
      %v1114 = vmul.f32 %v942, %v1085
      %v1115 = vmul.f32 %v943, %v1085
      %v1116 = vmul.f32 %v944, %v1085
      %v1117 = vmul.f32 %v945, %v1085
      %v1118 = vmul.f32 %v946, %v1085
      %v1119 = vmul.f32 %v947, %v1085
      %v1120 = vmul.f32 %v948, %v1085
      %v1121 = vmul.f32 %v949, %v1085
      %v1122 = vmul.f32 %v950, %v1085
      %v1123 = vmul.f32 %v951, %v1085
      %v1124 = vmul.f32 %v952, %v1085
      %v1125 = vmul.f32 %v953, %v1085
      %v1126 = vmul.f32 %v954, %v1085
      %v1127 = vmul.f32 %v955, %v1085
      %v1128 = vmul.f32 %v956, %v1085
      %v1129 = vmul.f32 %v957, %v1085
      %v1130 = vmul.f32 %v958, %v1085
      %v1131 = vmul.f32 %v959, %v1085
      %v1132 = vmul.f32 %v960, %v1085
      %v1133 = vmul.f32 %v961, %v1085
      %v1134 = vmul.f32 %v962, %v1085
      %vm1184 = vcmask 1046528
      %v1185 = vrot.slane %v1086, 1
      %v1186 = vrot.slane %v1087, 1
      %v1187 = vsel %vm1184, %v1185, %v1186
      %v1188 = vrot.slane %v1088, 1
      %v1189 = vsel %vm1184, %v1186, %v1188
      %v1190 = vrot.slane %v1089, 1
      %v1191 = vsel %vm1184, %v1188, %v1190
      %v1192 = vrot.slane %v1090, 1
      %v1193 = vsel %vm1184, %v1190, %v1192
      %v1194 = vrot.slane %v1091, 1
      %v1195 = vsel %vm1184, %v1192, %v1194
      %v1196 = vrot.slane %v1092, 1
      %v1197 = vsel %vm1184, %v1194, %v1196
      %v1198 = vrot.slane %v1093, 1
      %v1199 = vsel %vm1184, %v1196, %v1198
      %v1200 = vrot.slane %v1094, 1
      %v1201 = vsel %vm1184, %v1198, %v1200
      %v1202 = vrot.slane %v1095, 1
      %v1203 = vsel %vm1184, %v1200, %v1202
      %v1204 = vrot.slane %v1096, 1
      %v1205 = vsel %vm1184, %v1202, %v1204
      %v1206 = vrot.slane %v1097, 1
      %v1207 = vsel %vm1184, %v1204, %v1206
      %v1208 = vrot.slane %v1098, 1
      %v1209 = vsel %vm1184, %v1206, %v1208
      %v1210 = vrot.slane %v1099, 1
      %v1211 = vsel %vm1184, %v1208, %v1210
      %v1212 = vrot.slane %v1100, 1
      %v1213 = vsel %vm1184, %v1210, %v1212
      %v1214 = vrot.slane %v1101, 1
      %v1215 = vsel %vm1184, %v1212, %v1214
      %v1216 = vrot.slane %v1102, 1
      %v1217 = vsel %vm1184, %v1214, %v1216
      %v1218 = vrot.slane %v1103, 1
      %v1219 = vsel %vm1184, %v1216, %v1218
      %v1220 = vrot.slane %v1104, 1
      %v1221 = vsel %vm1184, %v1218, %v1220
      %v1222 = vrot.slane %v1105, 1
      %v1223 = vsel %vm1184, %v1220, %v1222
      %v1224 = vrot.slane %v1106, 1
      %v1225 = vsel %vm1184, %v1222, %v1224
      %v1226 = vrot.slane %v1107, 1
      %v1227 = vsel %vm1184, %v1224, %v1226
      %v1228 = vrot.slane %v1108, 1
      %v1229 = vsel %vm1184, %v1226, %v1228
      %v1230 = vrot.slane %v1109, 1
      %v1231 = vsel %vm1184, %v1228, %v1230
      %v1232 = vrot.slane %v1110, 1
      %v1233 = vsel %vm1184, %v1230, %v1232
      %v1234 = vrot.slane %v1111, 1
      %v1235 = vsel %vm1184, %v1232, %v1234
      %v1236 = vrot.slane %v1112, 1
      %v1237 = vsel %vm1184, %v1234, %v1236
      %v1238 = vrot.slane %v1113, 1
      %v1239 = vsel %vm1184, %v1236, %v1238
      %v1240 = vrot.slane %v1114, 1
      %v1241 = vsel %vm1184, %v1238, %v1240
      %v1242 = vrot.slane %v1115, 1
      %v1243 = vsel %vm1184, %v1240, %v1242
      %v1244 = vrot.slane %v1116, 1
      %v1245 = vsel %vm1184, %v1242, %v1244
      %v1246 = vrot.slane %v1117, 1
      %v1247 = vsel %vm1184, %v1244, %v1246
      %v1248 = vrot.slane %v1118, 1
      %v1249 = vsel %vm1184, %v1246, %v1248
      %v1250 = vrot.slane %v1119, 1
      %v1251 = vsel %vm1184, %v1248, %v1250
      %v1252 = vrot.slane %v1120, 1
      %v1253 = vsel %vm1184, %v1250, %v1252
      %v1254 = vrot.slane %v1121, 1
      %v1255 = vsel %vm1184, %v1252, %v1254
      %v1256 = vrot.slane %v1122, 1
      %v1257 = vsel %vm1184, %v1254, %v1256
      %v1258 = vrot.slane %v1123, 1
      %v1259 = vsel %vm1184, %v1256, %v1258
      %v1260 = vrot.slane %v1124, 1
      %v1261 = vsel %vm1184, %v1258, %v1260
      %v1262 = vrot.slane %v1125, 1
      %v1263 = vsel %vm1184, %v1260, %v1262
      %v1264 = vrot.slane %v1126, 1
      %v1265 = vsel %vm1184, %v1262, %v1264
      %v1266 = vrot.slane %v1127, 1
      %v1267 = vsel %vm1184, %v1264, %v1266
      %v1268 = vrot.slane %v1128, 1
      %v1269 = vsel %vm1184, %v1266, %v1268
      %v1270 = vrot.slane %v1129, 1
      %v1271 = vsel %vm1184, %v1268, %v1270
      %v1272 = vrot.slane %v1130, 1
      %v1273 = vsel %vm1184, %v1270, %v1272
      %v1274 = vrot.slane %v1131, 1
      %v1275 = vsel %vm1184, %v1272, %v1274
      %v1276 = vrot.slane %v1132, 1
      %v1277 = vsel %vm1184, %v1274, %v1276
      %v1278 = vrot.slane %v1133, 1
      %v1279 = vsel %vm1184, %v1276, %v1278
      %v1280 = vrot.slane %v1134, 1
      %v1281 = vsel %vm1184, %v1278, %v1280
      %v1330 = vadd.f32 %v1034, %v1187
      %v1331 = vadd.f32 %v1035, %v1189
      %v1332 = vadd.f32 %v1036, %v1191
      %v1333 = vadd.f32 %v1037, %v1193
      %v1334 = vadd.f32 %v1038, %v1195
      %v1335 = vadd.f32 %v1039, %v1197
      %v1336 = vadd.f32 %v1040, %v1199
      %v1337 = vadd.f32 %v1041, %v1201
      %v1338 = vadd.f32 %v1042, %v1203
      %v1339 = vadd.f32 %v1043, %v1205
      %v1340 = vadd.f32 %v1044, %v1207
      %v1341 = vadd.f32 %v1045, %v1209
      %v1342 = vadd.f32 %v1046, %v1211
      %v1343 = vadd.f32 %v1047, %v1213
      %v1344 = vadd.f32 %v1048, %v1215
      %v1345 = vadd.f32 %v1049, %v1217
      %v1346 = vadd.f32 %v1050, %v1219
      %v1347 = vadd.f32 %v1051, %v1221
      %v1348 = vadd.f32 %v1052, %v1223
      %v1349 = vadd.f32 %v1053, %v1225
      %v1350 = vadd.f32 %v1054, %v1227
      %v1351 = vadd.f32 %v1055, %v1229
      %v1352 = vadd.f32 %v1056, %v1231
      %v1353 = vadd.f32 %v1057, %v1233
      %v1354 = vadd.f32 %v1058, %v1235
      %v1355 = vadd.f32 %v1059, %v1237
      %v1356 = vadd.f32 %v1060, %v1239
      %v1357 = vadd.f32 %v1061, %v1241
      %v1358 = vadd.f32 %v1062, %v1243
      %v1359 = vadd.f32 %v1063, %v1245
      %v1360 = vadd.f32 %v1064, %v1247
      %v1361 = vadd.f32 %v1065, %v1249
      %v1362 = vadd.f32 %v1066, %v1251
      %v1363 = vadd.f32 %v1067, %v1253
      %v1364 = vadd.f32 %v1068, %v1255
      %v1365 = vadd.f32 %v1069, %v1257
      %v1366 = vadd.f32 %v1070, %v1259
      %v1367 = vadd.f32 %v1071, %v1261
      %v1368 = vadd.f32 %v1072, %v1263
      %v1369 = vadd.f32 %v1073, %v1265
      %v1370 = vadd.f32 %v1074, %v1267
      %v1371 = vadd.f32 %v1075, %v1269
      %v1372 = vadd.f32 %v1076, %v1271
      %v1373 = vadd.f32 %v1077, %v1273
      %v1374 = vadd.f32 %v1078, %v1275
      %v1375 = vadd.f32 %v1079, %v1277
      %v1376 = vadd.f32 %v1080, %v1279
      %v1377 = vadd.f32 %v1081, %v1281
      %v1378 = vlaneseq
      %v1379 = vshrl.u32 %v1378, 7
      %v1380 = vsub.s32 2, %v1379
      %v1381 = vrot.slane %v969, %v1380
      %v1382 = vmul.f32 %v914, %v1381
      %v1383 = vmul.f32 %v915, %v1381
      %v1384 = vmul.f32 %v916, %v1381
      %v1385 = vmul.f32 %v917, %v1381
      %v1386 = vmul.f32 %v918, %v1381
      %v1387 = vmul.f32 %v919, %v1381
      %v1388 = vmul.f32 %v920, %v1381
      %v1389 = vmul.f32 %v921, %v1381
      %v1390 = vmul.f32 %v922, %v1381
      %v1391 = vmul.f32 %v923, %v1381
      %v1392 = vmul.f32 %v924, %v1381
      %v1393 = vmul.f32 %v925, %v1381
      %v1394 = vmul.f32 %v926, %v1381
      %v1395 = vmul.f32 %v927, %v1381
      %v1396 = vmul.f32 %v928, %v1381
      %v1397 = vmul.f32 %v929, %v1381
      %v1398 = vmul.f32 %v930, %v1381
      %v1399 = vmul.f32 %v931, %v1381
      %v1400 = vmul.f32 %v932, %v1381
      %v1401 = vmul.f32 %v933, %v1381
      %v1402 = vmul.f32 %v934, %v1381
      %v1403 = vmul.f32 %v935, %v1381
      %v1404 = vmul.f32 %v936, %v1381
      %v1405 = vmul.f32 %v937, %v1381
      %v1406 = vmul.f32 %v938, %v1381
      %v1407 = vmul.f32 %v939, %v1381
      %v1408 = vmul.f32 %v940, %v1381
      %v1409 = vmul.f32 %v941, %v1381
      %v1410 = vmul.f32 %v942, %v1381
      %v1411 = vmul.f32 %v943, %v1381
      %v1412 = vmul.f32 %v944, %v1381
      %v1413 = vmul.f32 %v945, %v1381
      %v1414 = vmul.f32 %v946, %v1381
      %v1415 = vmul.f32 %v947, %v1381
      %v1416 = vmul.f32 %v948, %v1381
      %v1417 = vmul.f32 %v949, %v1381
      %v1418 = vmul.f32 %v950, %v1381
      %v1419 = vmul.f32 %v951, %v1381
      %v1420 = vmul.f32 %v952, %v1381
      %v1421 = vmul.f32 %v953, %v1381
      %v1422 = vmul.f32 %v954, %v1381
      %v1423 = vmul.f32 %v955, %v1381
      %v1424 = vmul.f32 %v956, %v1381
      %v1425 = vmul.f32 %v957, %v1381
      %v1426 = vmul.f32 %v958, %v1381
      %v1427 = vmul.f32 %v959, %v1381
      %v1428 = vmul.f32 %v960, %v1381
      %v1429 = vmul.f32 %v961, %v1381
      %v1430 = vmul.f32 %v962, %v1381
      %vm1480 = vcmask 1045504
      %v1481 = vrot.slane %v1382, 2
      %v1482 = vrot.slane %v1383, 2
      %v1483 = vsel %vm1480, %v1481, %v1482
      %v1484 = vrot.slane %v1384, 2
      %v1485 = vsel %vm1480, %v1482, %v1484
      %v1486 = vrot.slane %v1385, 2
      %v1487 = vsel %vm1480, %v1484, %v1486
      %v1488 = vrot.slane %v1386, 2
      %v1489 = vsel %vm1480, %v1486, %v1488
      %v1490 = vrot.slane %v1387, 2
      %v1491 = vsel %vm1480, %v1488, %v1490
      %v1492 = vrot.slane %v1388, 2
      %v1493 = vsel %vm1480, %v1490, %v1492
      %v1494 = vrot.slane %v1389, 2
      %v1495 = vsel %vm1480, %v1492, %v1494
      %v1496 = vrot.slane %v1390, 2
      %v1497 = vsel %vm1480, %v1494, %v1496
      %v1498 = vrot.slane %v1391, 2
      %v1499 = vsel %vm1480, %v1496, %v1498
      %v1500 = vrot.slane %v1392, 2
      %v1501 = vsel %vm1480, %v1498, %v1500
      %v1502 = vrot.slane %v1393, 2
      %v1503 = vsel %vm1480, %v1500, %v1502
      %v1504 = vrot.slane %v1394, 2
      %v1505 = vsel %vm1480, %v1502, %v1504
      %v1506 = vrot.slane %v1395, 2
      %v1507 = vsel %vm1480, %v1504, %v1506
      %v1508 = vrot.slane %v1396, 2
      %v1509 = vsel %vm1480, %v1506, %v1508
      %v1510 = vrot.slane %v1397, 2
      %v1511 = vsel %vm1480, %v1508, %v1510
      %v1512 = vrot.slane %v1398, 2
      %v1513 = vsel %vm1480, %v1510, %v1512
      %v1514 = vrot.slane %v1399, 2
      %v1515 = vsel %vm1480, %v1512, %v1514
      %v1516 = vrot.slane %v1400, 2
      %v1517 = vsel %vm1480, %v1514, %v1516
      %v1518 = vrot.slane %v1401, 2
      %v1519 = vsel %vm1480, %v1516, %v1518
      %v1520 = vrot.slane %v1402, 2
      %v1521 = vsel %vm1480, %v1518, %v1520
      %v1522 = vrot.slane %v1403, 2
      %v1523 = vsel %vm1480, %v1520, %v1522
      %v1524 = vrot.slane %v1404, 2
      %v1525 = vsel %vm1480, %v1522, %v1524
      %v1526 = vrot.slane %v1405, 2
      %v1527 = vsel %vm1480, %v1524, %v1526
      %v1528 = vrot.slane %v1406, 2
      %v1529 = vsel %vm1480, %v1526, %v1528
      %v1530 = vrot.slane %v1407, 2
      %v1531 = vsel %vm1480, %v1528, %v1530
      %v1532 = vrot.slane %v1408, 2
      %v1533 = vsel %vm1480, %v1530, %v1532
      %v1534 = vrot.slane %v1409, 2
      %v1535 = vsel %vm1480, %v1532, %v1534
      %v1536 = vrot.slane %v1410, 2
      %v1537 = vsel %vm1480, %v1534, %v1536
      %v1538 = vrot.slane %v1411, 2
      %v1539 = vsel %vm1480, %v1536, %v1538
      %v1540 = vrot.slane %v1412, 2
      %v1541 = vsel %vm1480, %v1538, %v1540
      %v1542 = vrot.slane %v1413, 2
      %v1543 = vsel %vm1480, %v1540, %v1542
      %v1544 = vrot.slane %v1414, 2
      %v1545 = vsel %vm1480, %v1542, %v1544
      %v1546 = vrot.slane %v1415, 2
      %v1547 = vsel %vm1480, %v1544, %v1546
      %v1548 = vrot.slane %v1416, 2
      %v1549 = vsel %vm1480, %v1546, %v1548
      %v1550 = vrot.slane %v1417, 2
      %v1551 = vsel %vm1480, %v1548, %v1550
      %v1552 = vrot.slane %v1418, 2
      %v1553 = vsel %vm1480, %v1550, %v1552
      %v1554 = vrot.slane %v1419, 2
      %v1555 = vsel %vm1480, %v1552, %v1554
      %v1556 = vrot.slane %v1420, 2
      %v1557 = vsel %vm1480, %v1554, %v1556
      %v1558 = vrot.slane %v1421, 2
      %v1559 = vsel %vm1480, %v1556, %v1558
      %v1560 = vrot.slane %v1422, 2
      %v1561 = vsel %vm1480, %v1558, %v1560
      %v1562 = vrot.slane %v1423, 2
      %v1563 = vsel %vm1480, %v1560, %v1562
      %v1564 = vrot.slane %v1424, 2
      %v1565 = vsel %vm1480, %v1562, %v1564
      %v1566 = vrot.slane %v1425, 2
      %v1567 = vsel %vm1480, %v1564, %v1566
      %v1568 = vrot.slane %v1426, 2
      %v1569 = vsel %vm1480, %v1566, %v1568
      %v1570 = vrot.slane %v1427, 2
      %v1571 = vsel %vm1480, %v1568, %v1570
      %v1572 = vrot.slane %v1428, 2
      %v1573 = vsel %vm1480, %v1570, %v1572
      %v1574 = vrot.slane %v1429, 2
      %v1575 = vsel %vm1480, %v1572, %v1574
      %v1576 = vrot.slane %v1430, 2
      %v1577 = vsel %vm1480, %v1574, %v1576
      %v1626 = vadd.f32 %v1330, %v1483
      %v1627 = vadd.f32 %v1331, %v1485
      %v1628 = vadd.f32 %v1332, %v1487
      %v1629 = vadd.f32 %v1333, %v1489
      %v1630 = vadd.f32 %v1334, %v1491
      %v1631 = vadd.f32 %v1335, %v1493
      %v1632 = vadd.f32 %v1336, %v1495
      %v1633 = vadd.f32 %v1337, %v1497
      %v1634 = vadd.f32 %v1338, %v1499
      %v1635 = vadd.f32 %v1339, %v1501
      %v1636 = vadd.f32 %v1340, %v1503
      %v1637 = vadd.f32 %v1341, %v1505
      %v1638 = vadd.f32 %v1342, %v1507
      %v1639 = vadd.f32 %v1343, %v1509
      %v1640 = vadd.f32 %v1344, %v1511
      %v1641 = vadd.f32 %v1345, %v1513
      %v1642 = vadd.f32 %v1346, %v1515
      %v1643 = vadd.f32 %v1347, %v1517
      %v1644 = vadd.f32 %v1348, %v1519
      %v1645 = vadd.f32 %v1349, %v1521
      %v1646 = vadd.f32 %v1350, %v1523
      %v1647 = vadd.f32 %v1351, %v1525
      %v1648 = vadd.f32 %v1352, %v1527
      %v1649 = vadd.f32 %v1353, %v1529
      %v1650 = vadd.f32 %v1354, %v1531
      %v1651 = vadd.f32 %v1355, %v1533
      %v1652 = vadd.f32 %v1356, %v1535
      %v1653 = vadd.f32 %v1357, %v1537
      %v1654 = vadd.f32 %v1358, %v1539
      %v1655 = vadd.f32 %v1359, %v1541
      %v1656 = vadd.f32 %v1360, %v1543
      %v1657 = vadd.f32 %v1361, %v1545
      %v1658 = vadd.f32 %v1362, %v1547
      %v1659 = vadd.f32 %v1363, %v1549
      %v1660 = vadd.f32 %v1364, %v1551
      %v1661 = vadd.f32 %v1365, %v1553
      %v1662 = vadd.f32 %v1366, %v1555
      %v1663 = vadd.f32 %v1367, %v1557
      %v1664 = vadd.f32 %v1368, %v1559
      %v1665 = vadd.f32 %v1369, %v1561
      %v1666 = vadd.f32 %v1370, %v1563
      %v1667 = vadd.f32 %v1371, %v1565
      %v1668 = vadd.f32 %v1372, %v1567
      %v1669 = vadd.f32 %v1373, %v1569
      %v1670 = vadd.f32 %v1374, %v1571
      %v1671 = vadd.f32 %v1375, %v1573
      %v1672 = vadd.f32 %v1376, %v1575
      %v1673 = vadd.f32 %v1377, %v1577
      %v1674 = vlaneseq
      %v1675 = vshrl.u32 %v1674, 7
      %v1676 = vsub.s32 3, %v1675
      %v1677 = vrot.slane %v969, %v1676
      %v1678 = vmul.f32 %v917, %v1677
      %v1679 = vmul.f32 %v918, %v1677
      %v1680 = vmul.f32 %v919, %v1677
      %v1681 = vmul.f32 %v920, %v1677
      %v1682 = vmul.f32 %v921, %v1677
      %v1683 = vmul.f32 %v922, %v1677
      %v1684 = vmul.f32 %v923, %v1677
      %v1685 = vmul.f32 %v924, %v1677
      %v1686 = vmul.f32 %v925, %v1677
      %v1687 = vmul.f32 %v926, %v1677
      %v1688 = vmul.f32 %v927, %v1677
      %v1689 = vmul.f32 %v928, %v1677
      %v1690 = vmul.f32 %v929, %v1677
      %v1691 = vmul.f32 %v930, %v1677
      %v1692 = vmul.f32 %v931, %v1677
      %v1693 = vmul.f32 %v932, %v1677
      %v1694 = vmul.f32 %v933, %v1677
      %v1695 = vmul.f32 %v934, %v1677
      %v1696 = vmul.f32 %v935, %v1677
      %v1697 = vmul.f32 %v936, %v1677
      %v1698 = vmul.f32 %v937, %v1677
      %v1699 = vmul.f32 %v938, %v1677
      %v1700 = vmul.f32 %v939, %v1677
      %v1701 = vmul.f32 %v940, %v1677
      %v1702 = vmul.f32 %v941, %v1677
      %v1703 = vmul.f32 %v942, %v1677
      %v1704 = vmul.f32 %v943, %v1677
      %v1705 = vmul.f32 %v944, %v1677
      %v1706 = vmul.f32 %v945, %v1677
      %v1707 = vmul.f32 %v946, %v1677
      %v1708 = vmul.f32 %v947, %v1677
      %v1709 = vmul.f32 %v948, %v1677
      %v1710 = vmul.f32 %v949, %v1677
      %v1711 = vmul.f32 %v950, %v1677
      %v1712 = vmul.f32 %v951, %v1677
      %v1713 = vmul.f32 %v952, %v1677
      %v1714 = vmul.f32 %v953, %v1677
      %v1715 = vmul.f32 %v954, %v1677
      %v1716 = vmul.f32 %v955, %v1677
      %v1717 = vmul.f32 %v956, %v1677
      %v1718 = vmul.f32 %v957, %v1677
      %v1719 = vmul.f32 %v958, %v1677
      %v1720 = vmul.f32 %v959, %v1677
      %v1721 = vmul.f32 %v960, %v1677
      %v1722 = vmul.f32 %v961, %v1677
      %v1723 = vmul.f32 %v962, %v1677
      %v1724 = vmul.f32 %v963, %v1677
      %v1725 = vmul.f32 %v964, %v1677
      %v1726 = vadd.f32 %v1626, %v1678
      %v1727 = vadd.f32 %v1627, %v1679
      %v1728 = vadd.f32 %v1628, %v1680
      %v1729 = vadd.f32 %v1629, %v1681
      %v1730 = vadd.f32 %v1630, %v1682
      %v1731 = vadd.f32 %v1631, %v1683
      %v1732 = vadd.f32 %v1632, %v1684
      %v1733 = vadd.f32 %v1633, %v1685
      %v1734 = vadd.f32 %v1634, %v1686
      %v1735 = vadd.f32 %v1635, %v1687
      %v1736 = vadd.f32 %v1636, %v1688
      %v1737 = vadd.f32 %v1637, %v1689
      %v1738 = vadd.f32 %v1638, %v1690
      %v1739 = vadd.f32 %v1639, %v1691
      %v1740 = vadd.f32 %v1640, %v1692
      %v1741 = vadd.f32 %v1641, %v1693
      %v1742 = vadd.f32 %v1642, %v1694
      %v1743 = vadd.f32 %v1643, %v1695
      %v1744 = vadd.f32 %v1644, %v1696
      %v1745 = vadd.f32 %v1645, %v1697
      %v1746 = vadd.f32 %v1646, %v1698
      %v1747 = vadd.f32 %v1647, %v1699
      %v1748 = vadd.f32 %v1648, %v1700
      %v1749 = vadd.f32 %v1649, %v1701
      %v1750 = vadd.f32 %v1650, %v1702
      %v1751 = vadd.f32 %v1651, %v1703
      %v1752 = vadd.f32 %v1652, %v1704
      %v1753 = vadd.f32 %v1653, %v1705
      %v1754 = vadd.f32 %v1654, %v1706
      %v1755 = vadd.f32 %v1655, %v1707
      %v1756 = vadd.f32 %v1656, %v1708
      %v1757 = vadd.f32 %v1657, %v1709
      %v1758 = vadd.f32 %v1658, %v1710
      %v1759 = vadd.f32 %v1659, %v1711
      %v1760 = vadd.f32 %v1660, %v1712
      %v1761 = vadd.f32 %v1661, %v1713
      %v1762 = vadd.f32 %v1662, %v1714
      %v1763 = vadd.f32 %v1663, %v1715
      %v1764 = vadd.f32 %v1664, %v1716
      %v1765 = vadd.f32 %v1665, %v1717
      %v1766 = vadd.f32 %v1666, %v1718
      %v1767 = vadd.f32 %v1667, %v1719
      %v1768 = vadd.f32 %v1668, %v1720
      %v1769 = vadd.f32 %v1669, %v1721
      %v1770 = vadd.f32 %v1670, %v1722
      %v1771 = vadd.f32 %v1671, %v1723
      %v1772 = vadd.f32 %v1672, %v1724
      %v1773 = vadd.f32 %v1673, %v1725
      %v1774 = vlaneseq
      %v1775 = vshrl.u32 %v1774, 7
      %v1776 = vsub.s32 4, %v1775
      %v1777 = vrot.slane %v969, %v1776
      %v1778 = vmul.f32 %v917, %v1777
      %v1779 = vmul.f32 %v918, %v1777
      %v1780 = vmul.f32 %v919, %v1777
      %v1781 = vmul.f32 %v920, %v1777
      %v1782 = vmul.f32 %v921, %v1777
      %v1783 = vmul.f32 %v922, %v1777
      %v1784 = vmul.f32 %v923, %v1777
      %v1785 = vmul.f32 %v924, %v1777
      %v1786 = vmul.f32 %v925, %v1777
      %v1787 = vmul.f32 %v926, %v1777
      %v1788 = vmul.f32 %v927, %v1777
      %v1789 = vmul.f32 %v928, %v1777
      %v1790 = vmul.f32 %v929, %v1777
      %v1791 = vmul.f32 %v930, %v1777
      %v1792 = vmul.f32 %v931, %v1777
      %v1793 = vmul.f32 %v932, %v1777
      %v1794 = vmul.f32 %v933, %v1777
      %v1795 = vmul.f32 %v934, %v1777
      %v1796 = vmul.f32 %v935, %v1777
      %v1797 = vmul.f32 %v936, %v1777
      %v1798 = vmul.f32 %v937, %v1777
      %v1799 = vmul.f32 %v938, %v1777
      %v1800 = vmul.f32 %v939, %v1777
      %v1801 = vmul.f32 %v940, %v1777
      %v1802 = vmul.f32 %v941, %v1777
      %v1803 = vmul.f32 %v942, %v1777
      %v1804 = vmul.f32 %v943, %v1777
      %v1805 = vmul.f32 %v944, %v1777
      %v1806 = vmul.f32 %v945, %v1777
      %v1807 = vmul.f32 %v946, %v1777
      %v1808 = vmul.f32 %v947, %v1777
      %v1809 = vmul.f32 %v948, %v1777
      %v1810 = vmul.f32 %v949, %v1777
      %v1811 = vmul.f32 %v950, %v1777
      %v1812 = vmul.f32 %v951, %v1777
      %v1813 = vmul.f32 %v952, %v1777
      %v1814 = vmul.f32 %v953, %v1777
      %v1815 = vmul.f32 %v954, %v1777
      %v1816 = vmul.f32 %v955, %v1777
      %v1817 = vmul.f32 %v956, %v1777
      %v1818 = vmul.f32 %v957, %v1777
      %v1819 = vmul.f32 %v958, %v1777
      %v1820 = vmul.f32 %v959, %v1777
      %v1821 = vmul.f32 %v960, %v1777
      %v1822 = vmul.f32 %v961, %v1777
      %v1823 = vmul.f32 %v962, %v1777
      %v1824 = vmul.f32 %v963, %v1777
      %v1825 = vmul.f32 %v964, %v1777
      %v1826 = vmul.f32 %v965, %v1777
      %v1876 = vrot.slane %v1778, 1
      %v1877 = vrot.slane %v1779, 1
      %v1878 = vsel %vm1184, %v1876, %v1877
      %v1879 = vrot.slane %v1780, 1
      %v1880 = vsel %vm1184, %v1877, %v1879
      %v1881 = vrot.slane %v1781, 1
      %v1882 = vsel %vm1184, %v1879, %v1881
      %v1883 = vrot.slane %v1782, 1
      %v1884 = vsel %vm1184, %v1881, %v1883
      %v1885 = vrot.slane %v1783, 1
      %v1886 = vsel %vm1184, %v1883, %v1885
      %v1887 = vrot.slane %v1784, 1
      %v1888 = vsel %vm1184, %v1885, %v1887
      %v1889 = vrot.slane %v1785, 1
      %v1890 = vsel %vm1184, %v1887, %v1889
      %v1891 = vrot.slane %v1786, 1
      %v1892 = vsel %vm1184, %v1889, %v1891
      %v1893 = vrot.slane %v1787, 1
      %v1894 = vsel %vm1184, %v1891, %v1893
      %v1895 = vrot.slane %v1788, 1
      %v1896 = vsel %vm1184, %v1893, %v1895
      %v1897 = vrot.slane %v1789, 1
      %v1898 = vsel %vm1184, %v1895, %v1897
      %v1899 = vrot.slane %v1790, 1
      %v1900 = vsel %vm1184, %v1897, %v1899
      %v1901 = vrot.slane %v1791, 1
      %v1902 = vsel %vm1184, %v1899, %v1901
      %v1903 = vrot.slane %v1792, 1
      %v1904 = vsel %vm1184, %v1901, %v1903
      %v1905 = vrot.slane %v1793, 1
      %v1906 = vsel %vm1184, %v1903, %v1905
      %v1907 = vrot.slane %v1794, 1
      %v1908 = vsel %vm1184, %v1905, %v1907
      %v1909 = vrot.slane %v1795, 1
      %v1910 = vsel %vm1184, %v1907, %v1909
      %v1911 = vrot.slane %v1796, 1
      %v1912 = vsel %vm1184, %v1909, %v1911
      %v1913 = vrot.slane %v1797, 1
      %v1914 = vsel %vm1184, %v1911, %v1913
      %v1915 = vrot.slane %v1798, 1
      %v1916 = vsel %vm1184, %v1913, %v1915
      %v1917 = vrot.slane %v1799, 1
      %v1918 = vsel %vm1184, %v1915, %v1917
      %v1919 = vrot.slane %v1800, 1
      %v1920 = vsel %vm1184, %v1917, %v1919
      %v1921 = vrot.slane %v1801, 1
      %v1922 = vsel %vm1184, %v1919, %v1921
      %v1923 = vrot.slane %v1802, 1
      %v1924 = vsel %vm1184, %v1921, %v1923
      %v1925 = vrot.slane %v1803, 1
      %v1926 = vsel %vm1184, %v1923, %v1925
      %v1927 = vrot.slane %v1804, 1
      %v1928 = vsel %vm1184, %v1925, %v1927
      %v1929 = vrot.slane %v1805, 1
      %v1930 = vsel %vm1184, %v1927, %v1929
      %v1931 = vrot.slane %v1806, 1
      %v1932 = vsel %vm1184, %v1929, %v1931
      %v1933 = vrot.slane %v1807, 1
      %v1934 = vsel %vm1184, %v1931, %v1933
      %v1935 = vrot.slane %v1808, 1
      %v1936 = vsel %vm1184, %v1933, %v1935
      %v1937 = vrot.slane %v1809, 1
      %v1938 = vsel %vm1184, %v1935, %v1937
      %v1939 = vrot.slane %v1810, 1
      %v1940 = vsel %vm1184, %v1937, %v1939
      %v1941 = vrot.slane %v1811, 1
      %v1942 = vsel %vm1184, %v1939, %v1941
      %v1943 = vrot.slane %v1812, 1
      %v1944 = vsel %vm1184, %v1941, %v1943
      %v1945 = vrot.slane %v1813, 1
      %v1946 = vsel %vm1184, %v1943, %v1945
      %v1947 = vrot.slane %v1814, 1
      %v1948 = vsel %vm1184, %v1945, %v1947
      %v1949 = vrot.slane %v1815, 1
      %v1950 = vsel %vm1184, %v1947, %v1949
      %v1951 = vrot.slane %v1816, 1
      %v1952 = vsel %vm1184, %v1949, %v1951
      %v1953 = vrot.slane %v1817, 1
      %v1954 = vsel %vm1184, %v1951, %v1953
      %v1955 = vrot.slane %v1818, 1
      %v1956 = vsel %vm1184, %v1953, %v1955
      %v1957 = vrot.slane %v1819, 1
      %v1958 = vsel %vm1184, %v1955, %v1957
      %v1959 = vrot.slane %v1820, 1
      %v1960 = vsel %vm1184, %v1957, %v1959
      %v1961 = vrot.slane %v1821, 1
      %v1962 = vsel %vm1184, %v1959, %v1961
      %v1963 = vrot.slane %v1822, 1
      %v1964 = vsel %vm1184, %v1961, %v1963
      %v1965 = vrot.slane %v1823, 1
      %v1966 = vsel %vm1184, %v1963, %v1965
      %v1967 = vrot.slane %v1824, 1
      %v1968 = vsel %vm1184, %v1965, %v1967
      %v1969 = vrot.slane %v1825, 1
      %v1970 = vsel %vm1184, %v1967, %v1969
      %v1971 = vrot.slane %v1826, 1
      %v1972 = vsel %vm1184, %v1969, %v1971
      %v2021 = vadd.f32 %v1726, %v1878
      %v2022 = vadd.f32 %v1727, %v1880
      %v2023 = vadd.f32 %v1728, %v1882
      %v2024 = vadd.f32 %v1729, %v1884
      %v2025 = vadd.f32 %v1730, %v1886
      %v2026 = vadd.f32 %v1731, %v1888
      %v2027 = vadd.f32 %v1732, %v1890
      %v2028 = vadd.f32 %v1733, %v1892
      %v2029 = vadd.f32 %v1734, %v1894
      %v2030 = vadd.f32 %v1735, %v1896
      %v2031 = vadd.f32 %v1736, %v1898
      %v2032 = vadd.f32 %v1737, %v1900
      %v2033 = vadd.f32 %v1738, %v1902
      %v2034 = vadd.f32 %v1739, %v1904
      %v2035 = vadd.f32 %v1740, %v1906
      %v2036 = vadd.f32 %v1741, %v1908
      %v2037 = vadd.f32 %v1742, %v1910
      %v2038 = vadd.f32 %v1743, %v1912
      %v2039 = vadd.f32 %v1744, %v1914
      %v2040 = vadd.f32 %v1745, %v1916
      %v2041 = vadd.f32 %v1746, %v1918
      %v2042 = vadd.f32 %v1747, %v1920
      %v2043 = vadd.f32 %v1748, %v1922
      %v2044 = vadd.f32 %v1749, %v1924
      %v2045 = vadd.f32 %v1750, %v1926
      %v2046 = vadd.f32 %v1751, %v1928
      %v2047 = vadd.f32 %v1752, %v1930
      %v2048 = vadd.f32 %v1753, %v1932
      %v2049 = vadd.f32 %v1754, %v1934
      %v2050 = vadd.f32 %v1755, %v1936
      %v2051 = vadd.f32 %v1756, %v1938
      %v2052 = vadd.f32 %v1757, %v1940
      %v2053 = vadd.f32 %v1758, %v1942
      %v2054 = vadd.f32 %v1759, %v1944
      %v2055 = vadd.f32 %v1760, %v1946
      %v2056 = vadd.f32 %v1761, %v1948
      %v2057 = vadd.f32 %v1762, %v1950
      %v2058 = vadd.f32 %v1763, %v1952
      %v2059 = vadd.f32 %v1764, %v1954
      %v2060 = vadd.f32 %v1765, %v1956
      %v2061 = vadd.f32 %v1766, %v1958
      %v2062 = vadd.f32 %v1767, %v1960
      %v2063 = vadd.f32 %v1768, %v1962
      %v2064 = vadd.f32 %v1769, %v1964
      %v2065 = vadd.f32 %v1770, %v1966
      %v2066 = vadd.f32 %v1771, %v1968
      %v2067 = vadd.f32 %v1772, %v1970
      %v2068 = vadd.f32 %v1773, %v1972
      %v2069 = vlaneseq
      %v2070 = vshrl.u32 %v2069, 7
      %v2071 = vsub.s32 5, %v2070
      %v2072 = vrot.slane %v969, %v2071
      %v2073 = vmul.f32 %v917, %v2072
      %v2074 = vmul.f32 %v918, %v2072
      %v2075 = vmul.f32 %v919, %v2072
      %v2076 = vmul.f32 %v920, %v2072
      %v2077 = vmul.f32 %v921, %v2072
      %v2078 = vmul.f32 %v922, %v2072
      %v2079 = vmul.f32 %v923, %v2072
      %v2080 = vmul.f32 %v924, %v2072
      %v2081 = vmul.f32 %v925, %v2072
      %v2082 = vmul.f32 %v926, %v2072
      %v2083 = vmul.f32 %v927, %v2072
      %v2084 = vmul.f32 %v928, %v2072
      %v2085 = vmul.f32 %v929, %v2072
      %v2086 = vmul.f32 %v930, %v2072
      %v2087 = vmul.f32 %v931, %v2072
      %v2088 = vmul.f32 %v932, %v2072
      %v2089 = vmul.f32 %v933, %v2072
      %v2090 = vmul.f32 %v934, %v2072
      %v2091 = vmul.f32 %v935, %v2072
      %v2092 = vmul.f32 %v936, %v2072
      %v2093 = vmul.f32 %v937, %v2072
      %v2094 = vmul.f32 %v938, %v2072
      %v2095 = vmul.f32 %v939, %v2072
      %v2096 = vmul.f32 %v940, %v2072
      %v2097 = vmul.f32 %v941, %v2072
      %v2098 = vmul.f32 %v942, %v2072
      %v2099 = vmul.f32 %v943, %v2072
      %v2100 = vmul.f32 %v944, %v2072
      %v2101 = vmul.f32 %v945, %v2072
      %v2102 = vmul.f32 %v946, %v2072
      %v2103 = vmul.f32 %v947, %v2072
      %v2104 = vmul.f32 %v948, %v2072
      %v2105 = vmul.f32 %v949, %v2072
      %v2106 = vmul.f32 %v950, %v2072
      %v2107 = vmul.f32 %v951, %v2072
      %v2108 = vmul.f32 %v952, %v2072
      %v2109 = vmul.f32 %v953, %v2072
      %v2110 = vmul.f32 %v954, %v2072
      %v2111 = vmul.f32 %v955, %v2072
      %v2112 = vmul.f32 %v956, %v2072
      %v2113 = vmul.f32 %v957, %v2072
      %v2114 = vmul.f32 %v958, %v2072
      %v2115 = vmul.f32 %v959, %v2072
      %v2116 = vmul.f32 %v960, %v2072
      %v2117 = vmul.f32 %v961, %v2072
      %v2118 = vmul.f32 %v962, %v2072
      %v2119 = vmul.f32 %v963, %v2072
      %v2120 = vmul.f32 %v964, %v2072
      %v2121 = vmul.f32 %v965, %v2072
      %v2171 = vrot.slane %v2073, 2
      %v2172 = vrot.slane %v2074, 2
      %v2173 = vsel %vm1480, %v2171, %v2172
      %v2174 = vrot.slane %v2075, 2
      %v2175 = vsel %vm1480, %v2172, %v2174
      %v2176 = vrot.slane %v2076, 2
      %v2177 = vsel %vm1480, %v2174, %v2176
      %v2178 = vrot.slane %v2077, 2
      %v2179 = vsel %vm1480, %v2176, %v2178
      %v2180 = vrot.slane %v2078, 2
      %v2181 = vsel %vm1480, %v2178, %v2180
      %v2182 = vrot.slane %v2079, 2
      %v2183 = vsel %vm1480, %v2180, %v2182
      %v2184 = vrot.slane %v2080, 2
      %v2185 = vsel %vm1480, %v2182, %v2184
      %v2186 = vrot.slane %v2081, 2
      %v2187 = vsel %vm1480, %v2184, %v2186
      %v2188 = vrot.slane %v2082, 2
      %v2189 = vsel %vm1480, %v2186, %v2188
      %v2190 = vrot.slane %v2083, 2
      %v2191 = vsel %vm1480, %v2188, %v2190
      %v2192 = vrot.slane %v2084, 2
      %v2193 = vsel %vm1480, %v2190, %v2192
      %v2194 = vrot.slane %v2085, 2
      %v2195 = vsel %vm1480, %v2192, %v2194
      %v2196 = vrot.slane %v2086, 2
      %v2197 = vsel %vm1480, %v2194, %v2196
      %v2198 = vrot.slane %v2087, 2
      %v2199 = vsel %vm1480, %v2196, %v2198
      %v2200 = vrot.slane %v2088, 2
      %v2201 = vsel %vm1480, %v2198, %v2200
      %v2202 = vrot.slane %v2089, 2
      %v2203 = vsel %vm1480, %v2200, %v2202
      %v2204 = vrot.slane %v2090, 2
      %v2205 = vsel %vm1480, %v2202, %v2204
      %v2206 = vrot.slane %v2091, 2
      %v2207 = vsel %vm1480, %v2204, %v2206
      %v2208 = vrot.slane %v2092, 2
      %v2209 = vsel %vm1480, %v2206, %v2208
      %v2210 = vrot.slane %v2093, 2
      %v2211 = vsel %vm1480, %v2208, %v2210
      %v2212 = vrot.slane %v2094, 2
      %v2213 = vsel %vm1480, %v2210, %v2212
      %v2214 = vrot.slane %v2095, 2
      %v2215 = vsel %vm1480, %v2212, %v2214
      %v2216 = vrot.slane %v2096, 2
      %v2217 = vsel %vm1480, %v2214, %v2216
      %v2218 = vrot.slane %v2097, 2
      %v2219 = vsel %vm1480, %v2216, %v2218
      %v2220 = vrot.slane %v2098, 2
      %v2221 = vsel %vm1480, %v2218, %v2220
      %v2222 = vrot.slane %v2099, 2
      %v2223 = vsel %vm1480, %v2220, %v2222
      %v2224 = vrot.slane %v2100, 2
      %v2225 = vsel %vm1480, %v2222, %v2224
      %v2226 = vrot.slane %v2101, 2
      %v2227 = vsel %vm1480, %v2224, %v2226
      %v2228 = vrot.slane %v2102, 2
      %v2229 = vsel %vm1480, %v2226, %v2228
      %v2230 = vrot.slane %v2103, 2
      %v2231 = vsel %vm1480, %v2228, %v2230
      %v2232 = vrot.slane %v2104, 2
      %v2233 = vsel %vm1480, %v2230, %v2232
      %v2234 = vrot.slane %v2105, 2
      %v2235 = vsel %vm1480, %v2232, %v2234
      %v2236 = vrot.slane %v2106, 2
      %v2237 = vsel %vm1480, %v2234, %v2236
      %v2238 = vrot.slane %v2107, 2
      %v2239 = vsel %vm1480, %v2236, %v2238
      %v2240 = vrot.slane %v2108, 2
      %v2241 = vsel %vm1480, %v2238, %v2240
      %v2242 = vrot.slane %v2109, 2
      %v2243 = vsel %vm1480, %v2240, %v2242
      %v2244 = vrot.slane %v2110, 2
      %v2245 = vsel %vm1480, %v2242, %v2244
      %v2246 = vrot.slane %v2111, 2
      %v2247 = vsel %vm1480, %v2244, %v2246
      %v2248 = vrot.slane %v2112, 2
      %v2249 = vsel %vm1480, %v2246, %v2248
      %v2250 = vrot.slane %v2113, 2
      %v2251 = vsel %vm1480, %v2248, %v2250
      %v2252 = vrot.slane %v2114, 2
      %v2253 = vsel %vm1480, %v2250, %v2252
      %v2254 = vrot.slane %v2115, 2
      %v2255 = vsel %vm1480, %v2252, %v2254
      %v2256 = vrot.slane %v2116, 2
      %v2257 = vsel %vm1480, %v2254, %v2256
      %v2258 = vrot.slane %v2117, 2
      %v2259 = vsel %vm1480, %v2256, %v2258
      %v2260 = vrot.slane %v2118, 2
      %v2261 = vsel %vm1480, %v2258, %v2260
      %v2262 = vrot.slane %v2119, 2
      %v2263 = vsel %vm1480, %v2260, %v2262
      %v2264 = vrot.slane %v2120, 2
      %v2265 = vsel %vm1480, %v2262, %v2264
      %v2266 = vrot.slane %v2121, 2
      %v2267 = vsel %vm1480, %v2264, %v2266
      %v2316 = vadd.f32 %v2021, %v2173
      %v2317 = vadd.f32 %v2022, %v2175
      %v2318 = vadd.f32 %v2023, %v2177
      %v2319 = vadd.f32 %v2024, %v2179
      %v2320 = vadd.f32 %v2025, %v2181
      %v2321 = vadd.f32 %v2026, %v2183
      %v2322 = vadd.f32 %v2027, %v2185
      %v2323 = vadd.f32 %v2028, %v2187
      %v2324 = vadd.f32 %v2029, %v2189
      %v2325 = vadd.f32 %v2030, %v2191
      %v2326 = vadd.f32 %v2031, %v2193
      %v2327 = vadd.f32 %v2032, %v2195
      %v2328 = vadd.f32 %v2033, %v2197
      %v2329 = vadd.f32 %v2034, %v2199
      %v2330 = vadd.f32 %v2035, %v2201
      %v2331 = vadd.f32 %v2036, %v2203
      %v2332 = vadd.f32 %v2037, %v2205
      %v2333 = vadd.f32 %v2038, %v2207
      %v2334 = vadd.f32 %v2039, %v2209
      %v2335 = vadd.f32 %v2040, %v2211
      %v2336 = vadd.f32 %v2041, %v2213
      %v2337 = vadd.f32 %v2042, %v2215
      %v2338 = vadd.f32 %v2043, %v2217
      %v2339 = vadd.f32 %v2044, %v2219
      %v2340 = vadd.f32 %v2045, %v2221
      %v2341 = vadd.f32 %v2046, %v2223
      %v2342 = vadd.f32 %v2047, %v2225
      %v2343 = vadd.f32 %v2048, %v2227
      %v2344 = vadd.f32 %v2049, %v2229
      %v2345 = vadd.f32 %v2050, %v2231
      %v2346 = vadd.f32 %v2051, %v2233
      %v2347 = vadd.f32 %v2052, %v2235
      %v2348 = vadd.f32 %v2053, %v2237
      %v2349 = vadd.f32 %v2054, %v2239
      %v2350 = vadd.f32 %v2055, %v2241
      %v2351 = vadd.f32 %v2056, %v2243
      %v2352 = vadd.f32 %v2057, %v2245
      %v2353 = vadd.f32 %v2058, %v2247
      %v2354 = vadd.f32 %v2059, %v2249
      %v2355 = vadd.f32 %v2060, %v2251
      %v2356 = vadd.f32 %v2061, %v2253
      %v2357 = vadd.f32 %v2062, %v2255
      %v2358 = vadd.f32 %v2063, %v2257
      %v2359 = vadd.f32 %v2064, %v2259
      %v2360 = vadd.f32 %v2065, %v2261
      %v2361 = vadd.f32 %v2066, %v2263
      %v2362 = vadd.f32 %v2067, %v2265
      %v2363 = vadd.f32 %v2068, %v2267
      %v2364 = vlaneseq
      %v2365 = vshrl.u32 %v2364, 7
      %v2366 = vsub.s32 6, %v2365
      %v2367 = vrot.slane %v969, %v2366
      %v2368 = vmul.f32 %v920, %v2367
      %v2369 = vmul.f32 %v921, %v2367
      %v2370 = vmul.f32 %v922, %v2367
      %v2371 = vmul.f32 %v923, %v2367
      %v2372 = vmul.f32 %v924, %v2367
      %v2373 = vmul.f32 %v925, %v2367
      %v2374 = vmul.f32 %v926, %v2367
      %v2375 = vmul.f32 %v927, %v2367
      %v2376 = vmul.f32 %v928, %v2367
      %v2377 = vmul.f32 %v929, %v2367
      %v2378 = vmul.f32 %v930, %v2367
      %v2379 = vmul.f32 %v931, %v2367
      %v2380 = vmul.f32 %v932, %v2367
      %v2381 = vmul.f32 %v933, %v2367
      %v2382 = vmul.f32 %v934, %v2367
      %v2383 = vmul.f32 %v935, %v2367
      %v2384 = vmul.f32 %v936, %v2367
      %v2385 = vmul.f32 %v937, %v2367
      %v2386 = vmul.f32 %v938, %v2367
      %v2387 = vmul.f32 %v939, %v2367
      %v2388 = vmul.f32 %v940, %v2367
      %v2389 = vmul.f32 %v941, %v2367
      %v2390 = vmul.f32 %v942, %v2367
      %v2391 = vmul.f32 %v943, %v2367
      %v2392 = vmul.f32 %v944, %v2367
      %v2393 = vmul.f32 %v945, %v2367
      %v2394 = vmul.f32 %v946, %v2367
      %v2395 = vmul.f32 %v947, %v2367
      %v2396 = vmul.f32 %v948, %v2367
      %v2397 = vmul.f32 %v949, %v2367
      %v2398 = vmul.f32 %v950, %v2367
      %v2399 = vmul.f32 %v951, %v2367
      %v2400 = vmul.f32 %v952, %v2367
      %v2401 = vmul.f32 %v953, %v2367
      %v2402 = vmul.f32 %v954, %v2367
      %v2403 = vmul.f32 %v955, %v2367
      %v2404 = vmul.f32 %v956, %v2367
      %v2405 = vmul.f32 %v957, %v2367
      %v2406 = vmul.f32 %v958, %v2367
      %v2407 = vmul.f32 %v959, %v2367
      %v2408 = vmul.f32 %v960, %v2367
      %v2409 = vmul.f32 %v961, %v2367
      %v2410 = vmul.f32 %v962, %v2367
      %v2411 = vmul.f32 %v963, %v2367
      %v2412 = vmul.f32 %v964, %v2367
      %v2413 = vmul.f32 %v965, %v2367
      %v2414 = vmul.f32 %v966, %v2367
      %v2415 = vmul.f32 %v967, %v2367
      %v2416 = vadd.f32 %v2316, %v2368
      %v2417 = vadd.f32 %v2317, %v2369
      %v2418 = vadd.f32 %v2318, %v2370
      %v2419 = vadd.f32 %v2319, %v2371
      %v2420 = vadd.f32 %v2320, %v2372
      %v2421 = vadd.f32 %v2321, %v2373
      %v2422 = vadd.f32 %v2322, %v2374
      %v2423 = vadd.f32 %v2323, %v2375
      %v2424 = vadd.f32 %v2324, %v2376
      %v2425 = vadd.f32 %v2325, %v2377
      %v2426 = vadd.f32 %v2326, %v2378
      %v2427 = vadd.f32 %v2327, %v2379
      %v2428 = vadd.f32 %v2328, %v2380
      %v2429 = vadd.f32 %v2329, %v2381
      %v2430 = vadd.f32 %v2330, %v2382
      %v2431 = vadd.f32 %v2331, %v2383
      %v2432 = vadd.f32 %v2332, %v2384
      %v2433 = vadd.f32 %v2333, %v2385
      %v2434 = vadd.f32 %v2334, %v2386
      %v2435 = vadd.f32 %v2335, %v2387
      %v2436 = vadd.f32 %v2336, %v2388
      %v2437 = vadd.f32 %v2337, %v2389
      %v2438 = vadd.f32 %v2338, %v2390
      %v2439 = vadd.f32 %v2339, %v2391
      %v2440 = vadd.f32 %v2340, %v2392
      %v2441 = vadd.f32 %v2341, %v2393
      %v2442 = vadd.f32 %v2342, %v2394
      %v2443 = vadd.f32 %v2343, %v2395
      %v2444 = vadd.f32 %v2344, %v2396
      %v2445 = vadd.f32 %v2345, %v2397
      %v2446 = vadd.f32 %v2346, %v2398
      %v2447 = vadd.f32 %v2347, %v2399
      %v2448 = vadd.f32 %v2348, %v2400
      %v2449 = vadd.f32 %v2349, %v2401
      %v2450 = vadd.f32 %v2350, %v2402
      %v2451 = vadd.f32 %v2351, %v2403
      %v2452 = vadd.f32 %v2352, %v2404
      %v2453 = vadd.f32 %v2353, %v2405
      %v2454 = vadd.f32 %v2354, %v2406
      %v2455 = vadd.f32 %v2355, %v2407
      %v2456 = vadd.f32 %v2356, %v2408
      %v2457 = vadd.f32 %v2357, %v2409
      %v2458 = vadd.f32 %v2358, %v2410
      %v2459 = vadd.f32 %v2359, %v2411
      %v2460 = vadd.f32 %v2360, %v2412
      %v2461 = vadd.f32 %v2361, %v2413
      %v2462 = vadd.f32 %v2362, %v2414
      %v2463 = vadd.f32 %v2363, %v2415
      %v2464 = vlaneseq
      %v2465 = vshrl.u32 %v2464, 7
      %v2466 = vsub.s32 7, %v2465
      %v2467 = vrot.slane %v969, %v2466
      %v2468 = vmul.f32 %v920, %v2467
      %v2469 = vmul.f32 %v921, %v2467
      %v2470 = vmul.f32 %v922, %v2467
      %v2471 = vmul.f32 %v923, %v2467
      %v2472 = vmul.f32 %v924, %v2467
      %v2473 = vmul.f32 %v925, %v2467
      %v2474 = vmul.f32 %v926, %v2467
      %v2475 = vmul.f32 %v927, %v2467
      %v2476 = vmul.f32 %v928, %v2467
      %v2477 = vmul.f32 %v929, %v2467
      %v2478 = vmul.f32 %v930, %v2467
      %v2479 = vmul.f32 %v931, %v2467
      %v2480 = vmul.f32 %v932, %v2467
      %v2481 = vmul.f32 %v933, %v2467
      %v2482 = vmul.f32 %v934, %v2467
      %v2483 = vmul.f32 %v935, %v2467
      %v2484 = vmul.f32 %v936, %v2467
      %v2485 = vmul.f32 %v937, %v2467
      %v2486 = vmul.f32 %v938, %v2467
      %v2487 = vmul.f32 %v939, %v2467
      %v2488 = vmul.f32 %v940, %v2467
      %v2489 = vmul.f32 %v941, %v2467
      %v2490 = vmul.f32 %v942, %v2467
      %v2491 = vmul.f32 %v943, %v2467
      %v2492 = vmul.f32 %v944, %v2467
      %v2493 = vmul.f32 %v945, %v2467
      %v2494 = vmul.f32 %v946, %v2467
      %v2495 = vmul.f32 %v947, %v2467
      %v2496 = vmul.f32 %v948, %v2467
      %v2497 = vmul.f32 %v949, %v2467
      %v2498 = vmul.f32 %v950, %v2467
      %v2499 = vmul.f32 %v951, %v2467
      %v2500 = vmul.f32 %v952, %v2467
      %v2501 = vmul.f32 %v953, %v2467
      %v2502 = vmul.f32 %v954, %v2467
      %v2503 = vmul.f32 %v955, %v2467
      %v2504 = vmul.f32 %v956, %v2467
      %v2505 = vmul.f32 %v957, %v2467
      %v2506 = vmul.f32 %v958, %v2467
      %v2507 = vmul.f32 %v959, %v2467
      %v2508 = vmul.f32 %v960, %v2467
      %v2509 = vmul.f32 %v961, %v2467
      %v2510 = vmul.f32 %v962, %v2467
      %v2511 = vmul.f32 %v963, %v2467
      %v2512 = vmul.f32 %v964, %v2467
      %v2513 = vmul.f32 %v965, %v2467
      %v2514 = vmul.f32 %v966, %v2467
      %v2515 = vmul.f32 %v967, %v2467
      %v2516 = vmul.f32 %v968, %v2467
      %v2566 = vrot.slane %v2468, 1
      %v2567 = vrot.slane %v2469, 1
      %v2568 = vsel %vm1184, %v2566, %v2567
      %v2569 = vrot.slane %v2470, 1
      %v2570 = vsel %vm1184, %v2567, %v2569
      %v2571 = vrot.slane %v2471, 1
      %v2572 = vsel %vm1184, %v2569, %v2571
      %v2573 = vrot.slane %v2472, 1
      %v2574 = vsel %vm1184, %v2571, %v2573
      %v2575 = vrot.slane %v2473, 1
      %v2576 = vsel %vm1184, %v2573, %v2575
      %v2577 = vrot.slane %v2474, 1
      %v2578 = vsel %vm1184, %v2575, %v2577
      %v2579 = vrot.slane %v2475, 1
      %v2580 = vsel %vm1184, %v2577, %v2579
      %v2581 = vrot.slane %v2476, 1
      %v2582 = vsel %vm1184, %v2579, %v2581
      %v2583 = vrot.slane %v2477, 1
      %v2584 = vsel %vm1184, %v2581, %v2583
      %v2585 = vrot.slane %v2478, 1
      %v2586 = vsel %vm1184, %v2583, %v2585
      %v2587 = vrot.slane %v2479, 1
      %v2588 = vsel %vm1184, %v2585, %v2587
      %v2589 = vrot.slane %v2480, 1
      %v2590 = vsel %vm1184, %v2587, %v2589
      %v2591 = vrot.slane %v2481, 1
      %v2592 = vsel %vm1184, %v2589, %v2591
      %v2593 = vrot.slane %v2482, 1
      %v2594 = vsel %vm1184, %v2591, %v2593
      %v2595 = vrot.slane %v2483, 1
      %v2596 = vsel %vm1184, %v2593, %v2595
      %v2597 = vrot.slane %v2484, 1
      %v2598 = vsel %vm1184, %v2595, %v2597
      %v2599 = vrot.slane %v2485, 1
      %v2600 = vsel %vm1184, %v2597, %v2599
      %v2601 = vrot.slane %v2486, 1
      %v2602 = vsel %vm1184, %v2599, %v2601
      %v2603 = vrot.slane %v2487, 1
      %v2604 = vsel %vm1184, %v2601, %v2603
      %v2605 = vrot.slane %v2488, 1
      %v2606 = vsel %vm1184, %v2603, %v2605
      %v2607 = vrot.slane %v2489, 1
      %v2608 = vsel %vm1184, %v2605, %v2607
      %v2609 = vrot.slane %v2490, 1
      %v2610 = vsel %vm1184, %v2607, %v2609
      %v2611 = vrot.slane %v2491, 1
      %v2612 = vsel %vm1184, %v2609, %v2611
      %v2613 = vrot.slane %v2492, 1
      %v2614 = vsel %vm1184, %v2611, %v2613
      %v2615 = vrot.slane %v2493, 1
      %v2616 = vsel %vm1184, %v2613, %v2615
      %v2617 = vrot.slane %v2494, 1
      %v2618 = vsel %vm1184, %v2615, %v2617
      %v2619 = vrot.slane %v2495, 1
      %v2620 = vsel %vm1184, %v2617, %v2619
      %v2621 = vrot.slane %v2496, 1
      %v2622 = vsel %vm1184, %v2619, %v2621
      %v2623 = vrot.slane %v2497, 1
      %v2624 = vsel %vm1184, %v2621, %v2623
      %v2625 = vrot.slane %v2498, 1
      %v2626 = vsel %vm1184, %v2623, %v2625
      %v2627 = vrot.slane %v2499, 1
      %v2628 = vsel %vm1184, %v2625, %v2627
      %v2629 = vrot.slane %v2500, 1
      %v2630 = vsel %vm1184, %v2627, %v2629
      %v2631 = vrot.slane %v2501, 1
      %v2632 = vsel %vm1184, %v2629, %v2631
      %v2633 = vrot.slane %v2502, 1
      %v2634 = vsel %vm1184, %v2631, %v2633
      %v2635 = vrot.slane %v2503, 1
      %v2636 = vsel %vm1184, %v2633, %v2635
      %v2637 = vrot.slane %v2504, 1
      %v2638 = vsel %vm1184, %v2635, %v2637
      %v2639 = vrot.slane %v2505, 1
      %v2640 = vsel %vm1184, %v2637, %v2639
      %v2641 = vrot.slane %v2506, 1
      %v2642 = vsel %vm1184, %v2639, %v2641
      %v2643 = vrot.slane %v2507, 1
      %v2644 = vsel %vm1184, %v2641, %v2643
      %v2645 = vrot.slane %v2508, 1
      %v2646 = vsel %vm1184, %v2643, %v2645
      %v2647 = vrot.slane %v2509, 1
      %v2648 = vsel %vm1184, %v2645, %v2647
      %v2649 = vrot.slane %v2510, 1
      %v2650 = vsel %vm1184, %v2647, %v2649
      %v2651 = vrot.slane %v2511, 1
      %v2652 = vsel %vm1184, %v2649, %v2651
      %v2653 = vrot.slane %v2512, 1
      %v2654 = vsel %vm1184, %v2651, %v2653
      %v2655 = vrot.slane %v2513, 1
      %v2656 = vsel %vm1184, %v2653, %v2655
      %v2657 = vrot.slane %v2514, 1
      %v2658 = vsel %vm1184, %v2655, %v2657
      %v2659 = vrot.slane %v2515, 1
      %v2660 = vsel %vm1184, %v2657, %v2659
      %v2661 = vrot.slane %v2516, 1
      %v2662 = vsel %vm1184, %v2659, %v2661
      %v2711 = vadd.f32 %v2416, %v2568
      %v2712 = vadd.f32 %v2417, %v2570
      %v2713 = vadd.f32 %v2418, %v2572
      %v2714 = vadd.f32 %v2419, %v2574
      %v2715 = vadd.f32 %v2420, %v2576
      %v2716 = vadd.f32 %v2421, %v2578
      %v2717 = vadd.f32 %v2422, %v2580
      %v2718 = vadd.f32 %v2423, %v2582
      %v2719 = vadd.f32 %v2424, %v2584
      %v2720 = vadd.f32 %v2425, %v2586
      %v2721 = vadd.f32 %v2426, %v2588
      %v2722 = vadd.f32 %v2427, %v2590
      %v2723 = vadd.f32 %v2428, %v2592
      %v2724 = vadd.f32 %v2429, %v2594
      %v2725 = vadd.f32 %v2430, %v2596
      %v2726 = vadd.f32 %v2431, %v2598
      %v2727 = vadd.f32 %v2432, %v2600
      %v2728 = vadd.f32 %v2433, %v2602
      %v2729 = vadd.f32 %v2434, %v2604
      %v2730 = vadd.f32 %v2435, %v2606
      %v2731 = vadd.f32 %v2436, %v2608
      %v2732 = vadd.f32 %v2437, %v2610
      %v2733 = vadd.f32 %v2438, %v2612
      %v2734 = vadd.f32 %v2439, %v2614
      %v2735 = vadd.f32 %v2440, %v2616
      %v2736 = vadd.f32 %v2441, %v2618
      %v2737 = vadd.f32 %v2442, %v2620
      %v2738 = vadd.f32 %v2443, %v2622
      %v2739 = vadd.f32 %v2444, %v2624
      %v2740 = vadd.f32 %v2445, %v2626
      %v2741 = vadd.f32 %v2446, %v2628
      %v2742 = vadd.f32 %v2447, %v2630
      %v2743 = vadd.f32 %v2448, %v2632
      %v2744 = vadd.f32 %v2449, %v2634
      %v2745 = vadd.f32 %v2450, %v2636
      %v2746 = vadd.f32 %v2451, %v2638
      %v2747 = vadd.f32 %v2452, %v2640
      %v2748 = vadd.f32 %v2453, %v2642
      %v2749 = vadd.f32 %v2454, %v2644
      %v2750 = vadd.f32 %v2455, %v2646
      %v2751 = vadd.f32 %v2456, %v2648
      %v2752 = vadd.f32 %v2457, %v2650
      %v2753 = vadd.f32 %v2458, %v2652
      %v2754 = vadd.f32 %v2459, %v2654
      %v2755 = vadd.f32 %v2460, %v2656
      %v2756 = vadd.f32 %v2461, %v2658
      %v2757 = vadd.f32 %v2462, %v2660
      %v2758 = vadd.f32 %v2463, %v2662
      %v2759 = vlaneseq
      %v2760 = vshrl.u32 %v2759, 7
      %v2761 = vsub.s32 0, %v2760
      %v2762 = vrot.slane %v970, %v2761
      %v2763 = vmul.f32 %v920, %v2762
      %v2764 = vmul.f32 %v921, %v2762
      %v2765 = vmul.f32 %v922, %v2762
      %v2766 = vmul.f32 %v923, %v2762
      %v2767 = vmul.f32 %v924, %v2762
      %v2768 = vmul.f32 %v925, %v2762
      %v2769 = vmul.f32 %v926, %v2762
      %v2770 = vmul.f32 %v927, %v2762
      %v2771 = vmul.f32 %v928, %v2762
      %v2772 = vmul.f32 %v929, %v2762
      %v2773 = vmul.f32 %v930, %v2762
      %v2774 = vmul.f32 %v931, %v2762
      %v2775 = vmul.f32 %v932, %v2762
      %v2776 = vmul.f32 %v933, %v2762
      %v2777 = vmul.f32 %v934, %v2762
      %v2778 = vmul.f32 %v935, %v2762
      %v2779 = vmul.f32 %v936, %v2762
      %v2780 = vmul.f32 %v937, %v2762
      %v2781 = vmul.f32 %v938, %v2762
      %v2782 = vmul.f32 %v939, %v2762
      %v2783 = vmul.f32 %v940, %v2762
      %v2784 = vmul.f32 %v941, %v2762
      %v2785 = vmul.f32 %v942, %v2762
      %v2786 = vmul.f32 %v943, %v2762
      %v2787 = vmul.f32 %v944, %v2762
      %v2788 = vmul.f32 %v945, %v2762
      %v2789 = vmul.f32 %v946, %v2762
      %v2790 = vmul.f32 %v947, %v2762
      %v2791 = vmul.f32 %v948, %v2762
      %v2792 = vmul.f32 %v949, %v2762
      %v2793 = vmul.f32 %v950, %v2762
      %v2794 = vmul.f32 %v951, %v2762
      %v2795 = vmul.f32 %v952, %v2762
      %v2796 = vmul.f32 %v953, %v2762
      %v2797 = vmul.f32 %v954, %v2762
      %v2798 = vmul.f32 %v955, %v2762
      %v2799 = vmul.f32 %v956, %v2762
      %v2800 = vmul.f32 %v957, %v2762
      %v2801 = vmul.f32 %v958, %v2762
      %v2802 = vmul.f32 %v959, %v2762
      %v2803 = vmul.f32 %v960, %v2762
      %v2804 = vmul.f32 %v961, %v2762
      %v2805 = vmul.f32 %v962, %v2762
      %v2806 = vmul.f32 %v963, %v2762
      %v2807 = vmul.f32 %v964, %v2762
      %v2808 = vmul.f32 %v965, %v2762
      %v2809 = vmul.f32 %v966, %v2762
      %v2810 = vmul.f32 %v967, %v2762
      %v2811 = vmul.f32 %v968, %v2762
      %v2861 = vrot.slane %v2763, 2
      %v2862 = vrot.slane %v2764, 2
      %v2863 = vsel %vm1480, %v2861, %v2862
      %v2864 = vrot.slane %v2765, 2
      %v2865 = vsel %vm1480, %v2862, %v2864
      %v2866 = vrot.slane %v2766, 2
      %v2867 = vsel %vm1480, %v2864, %v2866
      %v2868 = vrot.slane %v2767, 2
      %v2869 = vsel %vm1480, %v2866, %v2868
      %v2870 = vrot.slane %v2768, 2
      %v2871 = vsel %vm1480, %v2868, %v2870
      %v2872 = vrot.slane %v2769, 2
      %v2873 = vsel %vm1480, %v2870, %v2872
      %v2874 = vrot.slane %v2770, 2
      %v2875 = vsel %vm1480, %v2872, %v2874
      %v2876 = vrot.slane %v2771, 2
      %v2877 = vsel %vm1480, %v2874, %v2876
      %v2878 = vrot.slane %v2772, 2
      %v2879 = vsel %vm1480, %v2876, %v2878
      %v2880 = vrot.slane %v2773, 2
      %v2881 = vsel %vm1480, %v2878, %v2880
      %v2882 = vrot.slane %v2774, 2
      %v2883 = vsel %vm1480, %v2880, %v2882
      %v2884 = vrot.slane %v2775, 2
      %v2885 = vsel %vm1480, %v2882, %v2884
      %v2886 = vrot.slane %v2776, 2
      %v2887 = vsel %vm1480, %v2884, %v2886
      %v2888 = vrot.slane %v2777, 2
      %v2889 = vsel %vm1480, %v2886, %v2888
      %v2890 = vrot.slane %v2778, 2
      %v2891 = vsel %vm1480, %v2888, %v2890
      %v2892 = vrot.slane %v2779, 2
      %v2893 = vsel %vm1480, %v2890, %v2892
      %v2894 = vrot.slane %v2780, 2
      %v2895 = vsel %vm1480, %v2892, %v2894
      %v2896 = vrot.slane %v2781, 2
      %v2897 = vsel %vm1480, %v2894, %v2896
      %v2898 = vrot.slane %v2782, 2
      %v2899 = vsel %vm1480, %v2896, %v2898
      %v2900 = vrot.slane %v2783, 2
      %v2901 = vsel %vm1480, %v2898, %v2900
      %v2902 = vrot.slane %v2784, 2
      %v2903 = vsel %vm1480, %v2900, %v2902
      %v2904 = vrot.slane %v2785, 2
      %v2905 = vsel %vm1480, %v2902, %v2904
      %v2906 = vrot.slane %v2786, 2
      %v2907 = vsel %vm1480, %v2904, %v2906
      %v2908 = vrot.slane %v2787, 2
      %v2909 = vsel %vm1480, %v2906, %v2908
      %v2910 = vrot.slane %v2788, 2
      %v2911 = vsel %vm1480, %v2908, %v2910
      %v2912 = vrot.slane %v2789, 2
      %v2913 = vsel %vm1480, %v2910, %v2912
      %v2914 = vrot.slane %v2790, 2
      %v2915 = vsel %vm1480, %v2912, %v2914
      %v2916 = vrot.slane %v2791, 2
      %v2917 = vsel %vm1480, %v2914, %v2916
      %v2918 = vrot.slane %v2792, 2
      %v2919 = vsel %vm1480, %v2916, %v2918
      %v2920 = vrot.slane %v2793, 2
      %v2921 = vsel %vm1480, %v2918, %v2920
      %v2922 = vrot.slane %v2794, 2
      %v2923 = vsel %vm1480, %v2920, %v2922
      %v2924 = vrot.slane %v2795, 2
      %v2925 = vsel %vm1480, %v2922, %v2924
      %v2926 = vrot.slane %v2796, 2
      %v2927 = vsel %vm1480, %v2924, %v2926
      %v2928 = vrot.slane %v2797, 2
      %v2929 = vsel %vm1480, %v2926, %v2928
      %v2930 = vrot.slane %v2798, 2
      %v2931 = vsel %vm1480, %v2928, %v2930
      %v2932 = vrot.slane %v2799, 2
      %v2933 = vsel %vm1480, %v2930, %v2932
      %v2934 = vrot.slane %v2800, 2
      %v2935 = vsel %vm1480, %v2932, %v2934
      %v2936 = vrot.slane %v2801, 2
      %v2937 = vsel %vm1480, %v2934, %v2936
      %v2938 = vrot.slane %v2802, 2
      %v2939 = vsel %vm1480, %v2936, %v2938
      %v2940 = vrot.slane %v2803, 2
      %v2941 = vsel %vm1480, %v2938, %v2940
      %v2942 = vrot.slane %v2804, 2
      %v2943 = vsel %vm1480, %v2940, %v2942
      %v2944 = vrot.slane %v2805, 2
      %v2945 = vsel %vm1480, %v2942, %v2944
      %v2946 = vrot.slane %v2806, 2
      %v2947 = vsel %vm1480, %v2944, %v2946
      %v2948 = vrot.slane %v2807, 2
      %v2949 = vsel %vm1480, %v2946, %v2948
      %v2950 = vrot.slane %v2808, 2
      %v2951 = vsel %vm1480, %v2948, %v2950
      %v2952 = vrot.slane %v2809, 2
      %v2953 = vsel %vm1480, %v2950, %v2952
      %v2954 = vrot.slane %v2810, 2
      %v2955 = vsel %vm1480, %v2952, %v2954
      %v2956 = vrot.slane %v2811, 2
      %v2957 = vsel %vm1480, %v2954, %v2956
      %v3006 = vadd.f32 %v2711, %v2863
      %v3007 = vadd.f32 %v2712, %v2865
      %v3008 = vadd.f32 %v2713, %v2867
      %v3009 = vadd.f32 %v2714, %v2869
      %v3010 = vadd.f32 %v2715, %v2871
      %v3011 = vadd.f32 %v2716, %v2873
      %v3012 = vadd.f32 %v2717, %v2875
      %v3013 = vadd.f32 %v2718, %v2877
      %v3014 = vadd.f32 %v2719, %v2879
      %v3015 = vadd.f32 %v2720, %v2881
      %v3016 = vadd.f32 %v2721, %v2883
      %v3017 = vadd.f32 %v2722, %v2885
      %v3018 = vadd.f32 %v2723, %v2887
      %v3019 = vadd.f32 %v2724, %v2889
      %v3020 = vadd.f32 %v2725, %v2891
      %v3021 = vadd.f32 %v2726, %v2893
      %v3022 = vadd.f32 %v2727, %v2895
      %v3023 = vadd.f32 %v2728, %v2897
      %v3024 = vadd.f32 %v2729, %v2899
      %v3025 = vadd.f32 %v2730, %v2901
      %v3026 = vadd.f32 %v2731, %v2903
      %v3027 = vadd.f32 %v2732, %v2905
      %v3028 = vadd.f32 %v2733, %v2907
      %v3029 = vadd.f32 %v2734, %v2909
      %v3030 = vadd.f32 %v2735, %v2911
      %v3031 = vadd.f32 %v2736, %v2913
      %v3032 = vadd.f32 %v2737, %v2915
      %v3033 = vadd.f32 %v2738, %v2917
      %v3034 = vadd.f32 %v2739, %v2919
      %v3035 = vadd.f32 %v2740, %v2921
      %v3036 = vadd.f32 %v2741, %v2923
      %v3037 = vadd.f32 %v2742, %v2925
      %v3038 = vadd.f32 %v2743, %v2927
      %v3039 = vadd.f32 %v2744, %v2929
      %v3040 = vadd.f32 %v2745, %v2931
      %v3041 = vadd.f32 %v2746, %v2933
      %v3042 = vadd.f32 %v2747, %v2935
      %v3043 = vadd.f32 %v2748, %v2937
      %v3044 = vadd.f32 %v2749, %v2939
      %v3045 = vadd.f32 %v2750, %v2941
      %v3046 = vadd.f32 %v2751, %v2943
      %v3047 = vadd.f32 %v2752, %v2945
      %v3048 = vadd.f32 %v2753, %v2947
      %v3049 = vadd.f32 %v2754, %v2949
      %v3050 = vadd.f32 %v2755, %v2951
      %v3051 = vadd.f32 %v2756, %v2953
      %v3052 = vadd.f32 %v2757, %v2955
      %v3053 = vadd.f32 %v2758, %v2957
      %v3054 = vmax.f32 %v3006, 0.0
      %v3055 = vmax.f32 %v3007, 0.0
      %v3056 = vmax.f32 %v3008, 0.0
      %v3057 = vmax.f32 %v3009, 0.0
      %v3058 = vmax.f32 %v3010, 0.0
      %v3059 = vmax.f32 %v3011, 0.0
      %v3060 = vmax.f32 %v3012, 0.0
      %v3061 = vmax.f32 %v3013, 0.0
      %v3062 = vmax.f32 %v3014, 0.0
      %v3063 = vmax.f32 %v3015, 0.0
      %v3064 = vmax.f32 %v3016, 0.0
      %v3065 = vmax.f32 %v3017, 0.0
      %v3066 = vmax.f32 %v3018, 0.0
      %v3067 = vmax.f32 %v3019, 0.0
      %v3068 = vmax.f32 %v3020, 0.0
      %v3069 = vmax.f32 %v3021, 0.0
      %v3070 = vmax.f32 %v3022, 0.0
      %v3071 = vmax.f32 %v3023, 0.0
      %v3072 = vmax.f32 %v3024, 0.0
      %v3073 = vmax.f32 %v3025, 0.0
      %v3074 = vmax.f32 %v3026, 0.0
      %v3075 = vmax.f32 %v3027, 0.0
      %v3076 = vmax.f32 %v3028, 0.0
      %v3077 = vmax.f32 %v3029, 0.0
      %v3078 = vmax.f32 %v3030, 0.0
      %v3079 = vmax.f32 %v3031, 0.0
      %v3080 = vmax.f32 %v3032, 0.0
      %v3081 = vmax.f32 %v3033, 0.0
      %v3082 = vmax.f32 %v3034, 0.0
      %v3083 = vmax.f32 %v3035, 0.0
      %v3084 = vmax.f32 %v3036, 0.0
      %v3085 = vmax.f32 %v3037, 0.0
      %v3086 = vmax.f32 %v3038, 0.0
      %v3087 = vmax.f32 %v3039, 0.0
      %v3088 = vmax.f32 %v3040, 0.0
      %v3089 = vmax.f32 %v3041, 0.0
      %v3090 = vmax.f32 %v3042, 0.0
      %v3091 = vmax.f32 %v3043, 0.0
      %v3092 = vmax.f32 %v3044, 0.0
      %v3093 = vmax.f32 %v3045, 0.0
      %v3094 = vmax.f32 %v3046, 0.0
      %v3095 = vmax.f32 %v3047, 0.0
      %v3096 = vmax.f32 %v3048, 0.0
      %v3097 = vmax.f32 %v3049, 0.0
      %v3098 = vmax.f32 %v3050, 0.0
      %v3099 = vmax.f32 %v3051, 0.0
      %v3100 = vmax.f32 %v3052, 0.0
      %v3101 = vmax.f32 %v3053, 0.0
      %v3102 = vmin.f32 %v3054, 6.0
      %v3103 = vmin.f32 %v3055, 6.0
      %v3104 = vmin.f32 %v3056, 6.0
      %v3105 = vmin.f32 %v3057, 6.0
      %v3106 = vmin.f32 %v3058, 6.0
      %v3107 = vmin.f32 %v3059, 6.0
      %v3108 = vmin.f32 %v3060, 6.0
      %v3109 = vmin.f32 %v3061, 6.0
      %v3110 = vmin.f32 %v3062, 6.0
      %v3111 = vmin.f32 %v3063, 6.0
      %v3112 = vmin.f32 %v3064, 6.0
      %v3113 = vmin.f32 %v3065, 6.0
      %v3114 = vmin.f32 %v3066, 6.0
      %v3115 = vmin.f32 %v3067, 6.0
      %v3116 = vmin.f32 %v3068, 6.0
      %v3117 = vmin.f32 %v3069, 6.0
      %v3118 = vmin.f32 %v3070, 6.0
      %v3119 = vmin.f32 %v3071, 6.0
      %v3120 = vmin.f32 %v3072, 6.0
      %v3121 = vmin.f32 %v3073, 6.0
      %v3122 = vmin.f32 %v3074, 6.0
      %v3123 = vmin.f32 %v3075, 6.0
      %v3124 = vmin.f32 %v3076, 6.0
      %v3125 = vmin.f32 %v3077, 6.0
      %v3126 = vmin.f32 %v3078, 6.0
      %v3127 = vmin.f32 %v3079, 6.0
      %v3128 = vmin.f32 %v3080, 6.0
      %v3129 = vmin.f32 %v3081, 6.0
      %v3130 = vmin.f32 %v3082, 6.0
      %v3131 = vmin.f32 %v3083, 6.0
      %v3132 = vmin.f32 %v3084, 6.0
      %v3133 = vmin.f32 %v3085, 6.0
      %v3134 = vmin.f32 %v3086, 6.0
      %v3135 = vmin.f32 %v3087, 6.0
      %v3136 = vmin.f32 %v3088, 6.0
      %v3137 = vmin.f32 %v3089, 6.0
      %v3138 = vmin.f32 %v3090, 6.0
      %v3139 = vmin.f32 %v3091, 6.0
      %v3140 = vmin.f32 %v3092, 6.0
      %v3141 = vmin.f32 %v3093, 6.0
      %v3142 = vmin.f32 %v3094, 6.0
      %v3143 = vmin.f32 %v3095, 6.0
      %v3144 = vmin.f32 %v3096, 6.0
      %v3145 = vmin.f32 %v3097, 6.0
      %v3146 = vmin.f32 %v3098, 6.0
      %v3147 = vmin.f32 %v3099, 6.0
      %v3148 = vmin.f32 %v3100, 6.0
      %v3149 = vmin.f32 %v3101, 6.0
      %v3151 = vlaneseq
      %v3152 = vshrl.u32 %v3151, 7
      %v3153 = vsub.s32 0, %v3152
      %v3154 = vrot.slane %v975, %v3153
      %vm3156 = vcmask 195584
      %v3158 = vsel %vm3156, %v3102, 0
      %v3161 = vsel %vm3156, %v3103, 0
      %v3164 = vsel %vm3156, %v3104, 0
      %v3167 = vsel %vm3156, %v3105, 0
      %v3170 = vsel %vm3156, %v3106, 0
      %v3173 = vsel %vm3156, %v3107, 0
      %v3176 = vsel %vm3156, %v3108, 0
      %v3179 = vsel %vm3156, %v3109, 0
      %v3182 = vsel %vm3156, %v3110, 0
      %v3185 = vsel %vm3156, %v3111, 0
      %v3188 = vsel %vm3156, %v3112, 0
      %v3191 = vsel %vm3156, %v3113, 0
      %v3194 = vsel %vm3156, %v3114, 0
      %v3197 = vsel %vm3156, %v3115, 0
      %v3200 = vsel %vm3156, %v3116, 0
      %v3203 = vsel %vm3156, %v3117, 0
      %v3206 = vsel %vm3156, %v3118, 0
      %v3209 = vsel %vm3156, %v3119, 0
      %v3212 = vsel %vm3156, %v3120, 0
      %v3215 = vsel %vm3156, %v3121, 0
      %v3218 = vsel %vm3156, %v3122, 0
      %v3221 = vsel %vm3156, %v3123, 0
      %v3224 = vsel %vm3156, %v3124, 0
      %v3227 = vsel %vm3156, %v3125, 0
      %v3230 = vsel %vm3156, %v3126, 0
      %v3233 = vsel %vm3156, %v3127, 0
      %v3236 = vsel %vm3156, %v3128, 0
      %v3239 = vsel %vm3156, %v3129, 0
      %v3242 = vsel %vm3156, %v3130, 0
      %v3245 = vsel %vm3156, %v3131, 0
      %v3248 = vsel %vm3156, %v3132, 0
      %v3251 = vsel %vm3156, %v3133, 0
      %v3254 = vsel %vm3156, %v3134, 0
      %v3257 = vsel %vm3156, %v3135, 0
      %v3260 = vsel %vm3156, %v3136, 0
      %v3263 = vsel %vm3156, %v3137, 0
      %v3266 = vsel %vm3156, %v3138, 0
      %v3269 = vsel %vm3156, %v3139, 0
      %v3272 = vsel %vm3156, %v3140, 0
      %v3275 = vsel %vm3156, %v3141, 0
      %v3278 = vsel %vm3156, %v3142, 0
      %v3281 = vsel %vm3156, %v3143, 0
      %v3284 = vsel %vm3156, %v3144, 0
      %v3287 = vsel %vm3156, %v3145, 0
      %v3290 = vsel %vm3156, %v3146, 0
      %v3293 = vsel %vm3156, %v3147, 0
      %v3296 = vsel %vm3156, %v3148, 0
      %v3299 = vsel %vm3156, %v3149, 0
      %3301 = vmatprep.subr.mxu0 0.0
      %3302 = vmatpush1.msra.mxu0 0.0
      %3303 = vmatprep.subr.mxu0 0.0
      %3304 = vmatpush1.msra.mxu0 0.0
      %3305 = vmatprep.subr.mxu0 0.0
      %3306 = vmatpush1.msra.mxu0 0.0
      %3307 = vmatprep.subr.mxu0 0.0
      %3308 = vmatpush1.msra.mxu0 0.0
      %3309 = vmatprep.subr.mxu0 0.0
      %3310 = vmatpush1.msra.mxu0 0.0
      %3311 = vmatprep.subr.mxu0 0.0
      %3312 = vmatpush1.msra.mxu0 0.0
      %3313 = vmatprep.subr.mxu0 0.0
      %3314 = vmatpush1.msra.mxu0 0.0
      %3315 = vmatprep.subr.mxu0 0.0
      %3316 = vmatpush1.msra.mxu0 0.0
      %3317 = vmatprep.subr.mxu0 0.0
      %3318 = vmatpush1.msra.mxu0 0.0
      %3319 = vmatprep.subr.mxu0 0.0
      %3320 = vmatpush1.msra.mxu0 0.0
      %3321 = vmatprep.subr.mxu0 0.0
      %3322 = vmatpush1.msra.mxu0 0.0
      %3323 = vmatprep.subr.mxu0 0.0
      %3324 = vmatpush1.msra.mxu0 0.0
      %3325 = vmatprep.subr.mxu0 0.0
      %3326 = vmatpush1.msra.mxu0 0.0
      %3327 = vmatprep.subr.mxu0 0.0
      %3328 = vmatpush1.msra.mxu0 %v974
      %3329 = vmatprep.subr.mxu0 0.0
      %3330 = vmatpush1.msra.mxu0 %v973
      %3331 = vmatprep.subr.mxu0 0.0
      %3332 = vmatpush1.msra.mxu0 %v972
      %3333 = vmatprep.subr.mxu0 0.0
      %3334 = vmatpush2.msra.mxu0 0.0
      %3335 = vmatprep.subr.mxu0 0.0
      %3336 = vmatpush2.msra.mxu0 0.0
      %3337 = vmatprep.subr.mxu0 0.0
      %3338 = vmatpush2.msra.mxu0 0.0
      %3339 = vmatprep.subr.mxu0 0.0
      %3340 = vmatpush2.msra.mxu0 0.0
      %3341 = vmatprep.subr.mxu0 0.0
      %3342 = vmatpush2.msra.mxu0 0.0
      %3343 = vmatprep.subr.mxu0 0.0
      %3344 = vmatpush2.msra.mxu0 0.0
      %3345 = vmatprep.subr.mxu0 0.0
      %3346 = vmatpush2.msra.mxu0 0.0
      %3347 = vmatprep.subr.mxu0 0.0
      %3348 = vmatpush2.msra.mxu0 0.0
      %3349 = vmatprep.subr.mxu0 0.0
      %3350 = vmatpush2.msra.mxu0 0.0
      %3351 = vmatprep.subr.mxu0 0.0
      %3352 = vmatpush2.msra.mxu0 0.0
      %3353 = vmatprep.subr.mxu0 0.0
      %3354 = vmatpush2.msra.mxu0 0.0
      %3355 = vmatprep.subr.mxu0 0.0
      %3356 = vmatpush2.msra.mxu0 0.0
      %3357 = vmatprep.subr.mxu0 0.0
      %3358 = vmatpush2.msra.mxu0 0.0
      %3359 = vmatprep.subr.mxu0 0.0
      %3360 = vmatpush2.msra.mxu0 0.0
      %3361 = vmatprep.subr.mxu0 0.0
      %3362 = vmatpush2.msra.mxu0 0.0
      %3363 = vmatprep.subr.mxu0 0.0
      %3364 = vmatpush2.msra.mxu0 0.0
      %3365 = vmatprep.mubr.f32.mxu0 0.0
      %3366 = vmatmul.mubr.f32.gmra.mxu0 %v3158
      %v3367 = vpop.f32.mrf.mxu0
      %v3368 = vadd.f32 %v3154, %v3367
      %v3369 = vpop.f32.mrf.mxu0
      %3370 = vmatprep.mubr.f32.mxu0 0.0
      %3371 = vmatmul.mubr.f32.gmra.mxu0 %v3161
      %v3372 = vpop.f32.mrf.mxu0
      %v3373 = vadd.f32 %v3154, %v3372
      %v3374 = vpop.f32.mrf.mxu0
      %3375 = vmatprep.mubr.f32.mxu0 0.0
      %3376 = vmatmul.mubr.f32.gmra.mxu0 %v3164
      %v3377 = vpop.f32.mrf.mxu0
      %v3378 = vadd.f32 %v3154, %v3377
      %v3379 = vpop.f32.mrf.mxu0
      %3380 = vmatprep.mubr.f32.mxu0 0.0
      %3381 = vmatmul.mubr.f32.gmra.mxu0 %v3167
      %v3382 = vpop.f32.mrf.mxu0
      %v3383 = vadd.f32 %v3154, %v3382
      %v3384 = vpop.f32.mrf.mxu0
      %3385 = vmatprep.mubr.f32.mxu0 0.0
      %3386 = vmatmul.mubr.f32.gmra.mxu0 %v3170
      %v3387 = vpop.f32.mrf.mxu0
      %v3388 = vadd.f32 %v3154, %v3387
      %v3389 = vpop.f32.mrf.mxu0
      %3390 = vmatprep.mubr.f32.mxu0 0.0
      %3391 = vmatmul.mubr.f32.gmra.mxu0 %v3173
      %v3392 = vpop.f32.mrf.mxu0
      %v3393 = vadd.f32 %v3154, %v3392
      %v3394 = vpop.f32.mrf.mxu0
      %3395 = vmatprep.mubr.f32.mxu0 0.0
      %3396 = vmatmul.mubr.f32.gmra.mxu0 %v3176
      %v3397 = vpop.f32.mrf.mxu0
      %v3398 = vadd.f32 %v3154, %v3397
      %v3399 = vpop.f32.mrf.mxu0
      %3400 = vmatprep.mubr.f32.mxu0 0.0
      %3401 = vmatmul.mubr.f32.gmra.mxu0 %v3179
      %v3402 = vpop.f32.mrf.mxu0
      %v3403 = vadd.f32 %v3154, %v3402
      %v3404 = vpop.f32.mrf.mxu0
      %3405 = vmatprep.mubr.f32.mxu0 0.0
      %3406 = vmatmul.mubr.f32.gmra.mxu0 %v3182
      %v3407 = vpop.f32.mrf.mxu0
      %v3408 = vadd.f32 %v3154, %v3407
      %v3409 = vpop.f32.mrf.mxu0
      %3410 = vmatprep.mubr.f32.mxu0 0.0
      %3411 = vmatmul.mubr.f32.gmra.mxu0 %v3185
      %v3412 = vpop.f32.mrf.mxu0
      %v3413 = vadd.f32 %v3154, %v3412
      %v3414 = vpop.f32.mrf.mxu0
      %3415 = vmatprep.mubr.f32.mxu0 0.0
      %3416 = vmatmul.mubr.f32.gmra.mxu0 %v3188
      %v3417 = vpop.f32.mrf.mxu0
      %v3418 = vadd.f32 %v3154, %v3417
      %v3419 = vpop.f32.mrf.mxu0
      %3420 = vmatprep.mubr.f32.mxu0 0.0
      %3421 = vmatmul.mubr.f32.gmra.mxu0 %v3191
      %v3422 = vpop.f32.mrf.mxu0
      %v3423 = vadd.f32 %v3154, %v3422
      %v3424 = vpop.f32.mrf.mxu0
      %3425 = vmatprep.mubr.f32.mxu0 0.0
      %3426 = vmatmul.mubr.f32.gmra.mxu0 %v3194
      %v3427 = vpop.f32.mrf.mxu0
      %v3428 = vadd.f32 %v3154, %v3427
      %v3429 = vpop.f32.mrf.mxu0
      %3430 = vmatprep.mubr.f32.mxu0 0.0
      %3431 = vmatmul.mubr.f32.gmra.mxu0 %v3197
      %v3432 = vpop.f32.mrf.mxu0
      %v3433 = vadd.f32 %v3154, %v3432
      %v3434 = vpop.f32.mrf.mxu0
      %3435 = vmatprep.mubr.f32.mxu0 0.0
      %3436 = vmatmul.mubr.f32.gmra.mxu0 %v3200
      %v3437 = vpop.f32.mrf.mxu0
      %v3438 = vadd.f32 %v3154, %v3437
      %v3439 = vpop.f32.mrf.mxu0
      %3440 = vmatprep.mubr.f32.mxu0 0.0
      %3441 = vmatmul.mubr.f32.gmra.mxu0 %v3203
      %v3442 = vpop.f32.mrf.mxu0
      %v3443 = vadd.f32 %v3154, %v3442
      %v3444 = vpop.f32.mrf.mxu0
      %3445 = vmatprep.mubr.f32.mxu0 0.0
      %3446 = vmatmul.mubr.f32.gmra.mxu0 %v3206
      %v3447 = vpop.f32.mrf.mxu0
      %v3448 = vadd.f32 %v3154, %v3447
      %v3449 = vpop.f32.mrf.mxu0
      %3450 = vmatprep.mubr.f32.mxu0 0.0
      %3451 = vmatmul.mubr.f32.gmra.mxu0 %v3209
      %v3452 = vpop.f32.mrf.mxu0
      %v3453 = vadd.f32 %v3154, %v3452
      %v3454 = vpop.f32.mrf.mxu0
      %3455 = vmatprep.mubr.f32.mxu0 0.0
      %3456 = vmatmul.mubr.f32.gmra.mxu0 %v3212
      %v3457 = vpop.f32.mrf.mxu0
      %v3458 = vadd.f32 %v3154, %v3457
      %v3459 = vpop.f32.mrf.mxu0
      %3460 = vmatprep.mubr.f32.mxu0 0.0
      %3461 = vmatmul.mubr.f32.gmra.mxu0 %v3215
      %v3462 = vpop.f32.mrf.mxu0
      %v3463 = vadd.f32 %v3154, %v3462
      %v3464 = vpop.f32.mrf.mxu0
      %3465 = vmatprep.mubr.f32.mxu0 0.0
      %3466 = vmatmul.mubr.f32.gmra.mxu0 %v3218
      %v3467 = vpop.f32.mrf.mxu0
      %v3468 = vadd.f32 %v3154, %v3467
      %v3469 = vpop.f32.mrf.mxu0
      %3470 = vmatprep.mubr.f32.mxu0 0.0
      %3471 = vmatmul.mubr.f32.gmra.mxu0 %v3221
      %v3472 = vpop.f32.mrf.mxu0
      %v3473 = vadd.f32 %v3154, %v3472
      %v3474 = vpop.f32.mrf.mxu0
      %3475 = vmatprep.mubr.f32.mxu0 0.0
      %3476 = vmatmul.mubr.f32.gmra.mxu0 %v3224
      %v3477 = vpop.f32.mrf.mxu0
      %v3478 = vadd.f32 %v3154, %v3477
      %v3479 = vpop.f32.mrf.mxu0
      %3480 = vmatprep.mubr.f32.mxu0 0.0
      %3481 = vmatmul.mubr.f32.gmra.mxu0 %v3227
      %v3482 = vpop.f32.mrf.mxu0
      %v3483 = vadd.f32 %v3154, %v3482
      %v3484 = vpop.f32.mrf.mxu0
      %3485 = vmatprep.mubr.f32.mxu0 0.0
      %3486 = vmatmul.mubr.f32.gmra.mxu0 %v3230
      %v3487 = vpop.f32.mrf.mxu0
      %v3488 = vadd.f32 %v3154, %v3487
      %v3489 = vpop.f32.mrf.mxu0
      %3490 = vmatprep.mubr.f32.mxu0 0.0
      %3491 = vmatmul.mubr.f32.gmra.mxu0 %v3233
      %v3492 = vpop.f32.mrf.mxu0
      %v3493 = vadd.f32 %v3154, %v3492
      %v3494 = vpop.f32.mrf.mxu0
      %3495 = vmatprep.mubr.f32.mxu0 0.0
      %3496 = vmatmul.mubr.f32.gmra.mxu0 %v3236
      %v3497 = vpop.f32.mrf.mxu0
      %v3498 = vadd.f32 %v3154, %v3497
      %v3499 = vpop.f32.mrf.mxu0
      %3500 = vmatprep.mubr.f32.mxu0 0.0
      %3501 = vmatmul.mubr.f32.gmra.mxu0 %v3239
      %v3502 = vpop.f32.mrf.mxu0
      %v3503 = vadd.f32 %v3154, %v3502
      %v3504 = vpop.f32.mrf.mxu0
      %3505 = vmatprep.mubr.f32.mxu0 0.0
      %3506 = vmatmul.mubr.f32.gmra.mxu0 %v3242
      %v3507 = vpop.f32.mrf.mxu0
      %v3508 = vadd.f32 %v3154, %v3507
      %v3509 = vpop.f32.mrf.mxu0
      %3510 = vmatprep.mubr.f32.mxu0 0.0
      %3511 = vmatmul.mubr.f32.gmra.mxu0 %v3245
      %v3512 = vpop.f32.mrf.mxu0
      %v3513 = vadd.f32 %v3154, %v3512
      %v3514 = vpop.f32.mrf.mxu0
      %3515 = vmatprep.mubr.f32.mxu0 0.0
      %3516 = vmatmul.mubr.f32.gmra.mxu0 %v3248
      %v3517 = vpop.f32.mrf.mxu0
      %v3518 = vadd.f32 %v3154, %v3517
      %v3519 = vpop.f32.mrf.mxu0
      %3520 = vmatprep.mubr.f32.mxu0 0.0
      %3521 = vmatmul.mubr.f32.gmra.mxu0 %v3251
      %v3522 = vpop.f32.mrf.mxu0
      %v3523 = vadd.f32 %v3154, %v3522
      %v3524 = vpop.f32.mrf.mxu0
      %3525 = vmatprep.mubr.f32.mxu0 0.0
      %3526 = vmatmul.mubr.f32.gmra.mxu0 %v3254
      %v3527 = vpop.f32.mrf.mxu0
      %v3528 = vadd.f32 %v3154, %v3527
      %v3529 = vpop.f32.mrf.mxu0
      %3530 = vmatprep.mubr.f32.mxu0 0.0
      %3531 = vmatmul.mubr.f32.gmra.mxu0 %v3257
      %v3532 = vpop.f32.mrf.mxu0
      %v3533 = vadd.f32 %v3154, %v3532
      %v3534 = vpop.f32.mrf.mxu0
      %3535 = vmatprep.mubr.f32.mxu0 0.0
      %3536 = vmatmul.mubr.f32.gmra.mxu0 %v3260
      %v3537 = vpop.f32.mrf.mxu0
      %v3538 = vadd.f32 %v3154, %v3537
      %v3539 = vpop.f32.mrf.mxu0
      %3540 = vmatprep.mubr.f32.mxu0 0.0
      %3541 = vmatmul.mubr.f32.gmra.mxu0 %v3263
      %v3542 = vpop.f32.mrf.mxu0
      %v3543 = vadd.f32 %v3154, %v3542
      %v3544 = vpop.f32.mrf.mxu0
      %3545 = vmatprep.mubr.f32.mxu0 0.0
      %3546 = vmatmul.mubr.f32.gmra.mxu0 %v3266
      %v3547 = vpop.f32.mrf.mxu0
      %v3548 = vadd.f32 %v3154, %v3547
      %v3549 = vpop.f32.mrf.mxu0
      %3550 = vmatprep.mubr.f32.mxu0 0.0
      %3551 = vmatmul.mubr.f32.gmra.mxu0 %v3269
      %v3552 = vpop.f32.mrf.mxu0
      %v3553 = vadd.f32 %v3154, %v3552
      %v3554 = vpop.f32.mrf.mxu0
      %3555 = vmatprep.mubr.f32.mxu0 0.0
      %3556 = vmatmul.mubr.f32.gmra.mxu0 %v3272
      %v3557 = vpop.f32.mrf.mxu0
      %v3558 = vadd.f32 %v3154, %v3557
      %v3559 = vpop.f32.mrf.mxu0
      %3560 = vmatprep.mubr.f32.mxu0 0.0
      %3561 = vmatmul.mubr.f32.gmra.mxu0 %v3275
      %v3562 = vpop.f32.mrf.mxu0
      %v3563 = vadd.f32 %v3154, %v3562
      %v3564 = vpop.f32.mrf.mxu0
      %3565 = vmatprep.mubr.f32.mxu0 0.0
      %3566 = vmatmul.mubr.f32.gmra.mxu0 %v3278
      %v3567 = vpop.f32.mrf.mxu0
      %v3568 = vadd.f32 %v3154, %v3567
      %v3569 = vpop.f32.mrf.mxu0
      %3570 = vmatprep.mubr.f32.mxu0 0.0
      %3571 = vmatmul.mubr.f32.gmra.mxu0 %v3281
      %v3572 = vpop.f32.mrf.mxu0
      %v3573 = vadd.f32 %v3154, %v3572
      %v3574 = vpop.f32.mrf.mxu0
      %3575 = vmatprep.mubr.f32.mxu0 0.0
      %3576 = vmatmul.mubr.f32.gmra.mxu0 %v3284
      %v3577 = vpop.f32.mrf.mxu0
      %v3578 = vadd.f32 %v3154, %v3577
      %v3579 = vpop.f32.mrf.mxu0
      %3580 = vmatprep.mubr.f32.mxu0 0.0
      %3581 = vmatmul.mubr.f32.gmra.mxu0 %v3287
      %v3582 = vpop.f32.mrf.mxu0
      %v3583 = vadd.f32 %v3154, %v3582
      %v3584 = vpop.f32.mrf.mxu0
      %3585 = vmatprep.mubr.f32.mxu0 0.0
      %3586 = vmatmul.mubr.f32.gmra.mxu0 %v3290
      %v3587 = vpop.f32.mrf.mxu0
      %v3588 = vadd.f32 %v3154, %v3587
      %v3589 = vpop.f32.mrf.mxu0
      %3590 = vmatprep.mubr.f32.mxu0 0.0
      %3591 = vmatmul.mubr.f32.gmra.mxu0 %v3293
      %v3592 = vpop.f32.mrf.mxu0
      %v3593 = vadd.f32 %v3154, %v3592
      %v3594 = vpop.f32.mrf.mxu0
      %3595 = vmatprep.mubr.f32.mxu0 0.0
      %3596 = vmatmul.mubr.f32.gmra.mxu0 %v3296
      %v3597 = vpop.f32.mrf.mxu0
      %v3598 = vadd.f32 %v3154, %v3597
      %v3599 = vpop.f32.mrf.mxu0
      %3600 = vmatprep.mubr.f32.mxu0 0.0
      %3601 = vmatmul.mubr.f32.gmra.mxu0 %v3299
      %v3602 = vpop.f32.mrf.mxu0
      %v3603 = vadd.f32 %v3154, %v3602
      %v3604 = vpop.f32.mrf.mxu0
      %3605 = vdwg.mxu0
      %s3606 = sadd.s32 %s275, 25
      %s3607 = scalar_lea.vmem %s264, %s3606
      %v3608 = vld [vmem:[%s3607] sm:$0xff]
      %v3609 = vld [vmem:[%s3607 + $0x8] sm:$0xff]
      %v3610 = vld [vmem:[%s3607 + $0x10] sm:$0xff]
      %v3611 = vld [vmem:[%s3607 + $0x18] sm:$0xff]
      %v3612 = vld [vmem:[%s3607 + $0x20] sm:$0xff]
      %v3613 = vld [vmem:[%s3607 + $0x28] sm:$0xff]
      %v3614 = vld [vmem:[%s3607 + $0x30] sm:$0xff]
      %v3615 = vld [vmem:[%s3607 + $0x38] sm:$0xff]
      %v3616 = vld [vmem:[%s3607 + $0x40] sm:$0xff]
      %v3617 = vld [vmem:[%s3607 + $0x48] sm:$0xff]
      %v3618 = vld [vmem:[%s3607 + $0x50] sm:$0xff]
      %v3619 = vld [vmem:[%s3607 + $0x58] sm:$0xff]
      %v3620 = vld [vmem:[%s3607 + $0x60] sm:$0xff]
      %v3621 = vld [vmem:[%s3607 + $0x68] sm:$0xff]
      %v3622 = vld [vmem:[%s3607 + $0x70] sm:$0xff]
      %v3623 = vld [vmem:[%s3607 + $0x78] sm:$0xff]
      %v3624 = vld [vmem:[%s3607 + $0x80] sm:$0xff]
      %v3625 = vld [vmem:[%s3607 + $0x88] sm:$0xff]
      %v3626 = vld [vmem:[%s3607 + $0x90] sm:$0xff]
      %v3627 = vld [vmem:[%s3607 + $0x98] sm:$0xff]
      %v3628 = vld [vmem:[%s3607 + $0xa0] sm:$0xff]
      %v3629 = vld [vmem:[%s3607 + $0xa8] sm:$0xff]
      %v3630 = vld [vmem:[%s3607 + $0xb0] sm:$0xff]
      %v3631 = vld [vmem:[%s3607 + $0xb8] sm:$0xff]
      %v3632 = vld [vmem:[%s3607 + $0xc0] sm:$0xff]
      %v3633 = vld [vmem:[%s3607 + $0xc8] sm:$0xff]
      %v3634 = vld [vmem:[%s3607 + $0xd0] sm:$0xff]
      %v3635 = vld [vmem:[%s3607 + $0xd8] sm:$0xff]
      %v3636 = vld [vmem:[%s3607 + $0xe0] sm:$0xff]
      %v3637 = vld [vmem:[%s3607 + $0xe8] sm:$0xff]
      %v3638 = vld [vmem:[%s3607 + $0xf0] sm:$0xff]
      %v3639 = vld [vmem:[%s3607 + $0xf8] sm:$0xff]
      %v3640 = vld [vmem:[%s3607 + $0x100] sm:$0xff]
      %v3641 = vld [vmem:[%s3607 + $0x108] sm:$0xff]
      %v3642 = vld [vmem:[%s3607 + $0x110] sm:$0xff]
      %v3643 = vld [vmem:[%s3607 + $0x118] sm:$0xff]
      %v3644 = vld [vmem:[%s3607 + $0x120] sm:$0xff]
      %v3645 = vld [vmem:[%s3607 + $0x128] sm:$0xff]
      %v3646 = vld [vmem:[%s3607 + $0x130] sm:$0xff]
      %v3647 = vld [vmem:[%s3607 + $0x138] sm:$0xff]
      %v3648 = vld [vmem:[%s3607 + $0x140] sm:$0xff]
      %v3649 = vld [vmem:[%s3607 + $0x148] sm:$0xff]
      %v3650 = vld [vmem:[%s3607 + $0x150] sm:$0xff]
      %v3651 = vld [vmem:[%s3607 + $0x158] sm:$0xff]
      %v3652 = vld [vmem:[%s3607 + $0x160] sm:$0xff]
      %v3653 = vld [vmem:[%s3607 + $0x168] sm:$0xff]
      %v3654 = vld [vmem:[%s3607 + $0x170] sm:$0xff]
      %v3655 = vld [vmem:[%s3607 + $0x178] sm:$0xff]
      %v3656 = vadd.f32 %v3368, %v3608
      %v3657 = vadd.f32 %v3373, %v3609
      %v3658 = vadd.f32 %v3378, %v3610
      %v3659 = vadd.f32 %v3383, %v3611
      %v3660 = vadd.f32 %v3388, %v3612
      %v3661 = vadd.f32 %v3393, %v3613
      %v3662 = vadd.f32 %v3398, %v3614
      %v3663 = vadd.f32 %v3403, %v3615
      %v3664 = vadd.f32 %v3408, %v3616
      %v3665 = vadd.f32 %v3413, %v3617
      %v3666 = vadd.f32 %v3418, %v3618
      %v3667 = vadd.f32 %v3423, %v3619
      %v3668 = vadd.f32 %v3428, %v3620
      %v3669 = vadd.f32 %v3433, %v3621
      %v3670 = vadd.f32 %v3438, %v3622
      %v3671 = vadd.f32 %v3443, %v3623
      %v3672 = vadd.f32 %v3448, %v3624
      %v3673 = vadd.f32 %v3453, %v3625
      %v3674 = vadd.f32 %v3458, %v3626
      %v3675 = vadd.f32 %v3463, %v3627
      %v3676 = vadd.f32 %v3468, %v3628
      %v3677 = vadd.f32 %v3473, %v3629
      %v3678 = vadd.f32 %v3478, %v3630
      %v3679 = vadd.f32 %v3483, %v3631
      %v3680 = vadd.f32 %v3488, %v3632
      %v3681 = vadd.f32 %v3493, %v3633
      %v3682 = vadd.f32 %v3498, %v3634
      %v3683 = vadd.f32 %v3503, %v3635
      %v3684 = vadd.f32 %v3508, %v3636
      %v3685 = vadd.f32 %v3513, %v3637
      %v3686 = vadd.f32 %v3518, %v3638
      %v3687 = vadd.f32 %v3523, %v3639
      %v3688 = vadd.f32 %v3528, %v3640
      %v3689 = vadd.f32 %v3533, %v3641
      %v3690 = vadd.f32 %v3538, %v3642
      %v3691 = vadd.f32 %v3543, %v3643
      %v3692 = vadd.f32 %v3548, %v3644
      %v3693 = vadd.f32 %v3553, %v3645
      %v3694 = vadd.f32 %v3558, %v3646
      %v3695 = vadd.f32 %v3563, %v3647
      %v3696 = vadd.f32 %v3568, %v3648
      %v3697 = vadd.f32 %v3573, %v3649
      %v3698 = vadd.f32 %v3578, %v3650
      %v3699 = vadd.f32 %v3583, %v3651
      %v3700 = vadd.f32 %v3588, %v3652
      %v3701 = vadd.f32 %v3593, %v3653
      %v3702 = vadd.f32 %v3598, %v3654
      %v3703 = vadd.f32 %v3603, %v3655
      %vm3704 = vcmask 31744
      %3705 = vst.msk [vmem:[%s273] sm:$0xff] %vm3704, %v3656
      %3706 = vst.msk [vmem:[%s273 + $0x8] sm:$0xff] %vm3704, %v3657
      %3707 = vst.msk [vmem:[%s273 + $0x10] sm:$0xff] %vm3704, %v3658
      %3708 = vst.msk [vmem:[%s273 + $0x18] sm:$0xff] %vm3704, %v3659
      %3709 = vst.msk [vmem:[%s273 + $0x20] sm:$0xff] %vm3704, %v3660
      %3710 = vst.msk [vmem:[%s273 + $0x28] sm:$0xff] %vm3704, %v3661
      %3711 = vst.msk [vmem:[%s273 + $0x30] sm:$0xff] %vm3704, %v3662
      %3712 = vst.msk [vmem:[%s273 + $0x38] sm:$0xff] %vm3704, %v3663
      %3713 = vst.msk [vmem:[%s273 + $0x40] sm:$0xff] %vm3704, %v3664
      %3714 = vst.msk [vmem:[%s273 + $0x48] sm:$0xff] %vm3704, %v3665
      %3715 = vst.msk [vmem:[%s273 + $0x50] sm:$0xff] %vm3704, %v3666
      %3716 = vst.msk [vmem:[%s273 + $0x58] sm:$0xff] %vm3704, %v3667
      %3717 = vst.msk [vmem:[%s273 + $0x60] sm:$0xff] %vm3704, %v3668
      %3718 = vst.msk [vmem:[%s273 + $0x68] sm:$0xff] %vm3704, %v3669
      %3719 = vst.msk [vmem:[%s273 + $0x70] sm:$0xff] %vm3704, %v3670
      %3720 = vst.msk [vmem:[%s273 + $0x78] sm:$0xff] %vm3704, %v3671
      %3721 = vst.msk [vmem:[%s273 + $0x80] sm:$0xff] %vm3704, %v3672
      %3722 = vst.msk [vmem:[%s273 + $0x88] sm:$0xff] %vm3704, %v3673
      %3723 = vst.msk [vmem:[%s273 + $0x90] sm:$0xff] %vm3704, %v3674
      %3724 = vst.msk [vmem:[%s273 + $0x98] sm:$0xff] %vm3704, %v3675
      %3725 = vst.msk [vmem:[%s273 + $0xa0] sm:$0xff] %vm3704, %v3676
      %3726 = vst.msk [vmem:[%s273 + $0xa8] sm:$0xff] %vm3704, %v3677
      %3727 = vst.msk [vmem:[%s273 + $0xb0] sm:$0xff] %vm3704, %v3678
      %3728 = vst.msk [vmem:[%s273 + $0xb8] sm:$0xff] %vm3704, %v3679
      %3729 = vst.msk [vmem:[%s273 + $0xc0] sm:$0xff] %vm3704, %v3680
      %3730 = vst.msk [vmem:[%s273 + $0xc8] sm:$0xff] %vm3704, %v3681
      %3731 = vst.msk [vmem:[%s273 + $0xd0] sm:$0xff] %vm3704, %v3682
      %3732 = vst.msk [vmem:[%s273 + $0xd8] sm:$0xff] %vm3704, %v3683
      %3733 = vst.msk [vmem:[%s273 + $0xe0] sm:$0xff] %vm3704, %v3684
      %3734 = vst.msk [vmem:[%s273 + $0xe8] sm:$0xff] %vm3704, %v3685
      %3735 = vst.msk [vmem:[%s273 + $0xf0] sm:$0xff] %vm3704, %v3686
      %3736 = vst.msk [vmem:[%s273 + $0xf8] sm:$0xff] %vm3704, %v3687
      %3737 = vst.msk [vmem:[%s273 + $0x100] sm:$0xff] %vm3704, %v3688
      %3738 = vst.msk [vmem:[%s273 + $0x108] sm:$0xff] %vm3704, %v3689
      %3739 = vst.msk [vmem:[%s273 + $0x110] sm:$0xff] %vm3704, %v3690
      %3740 = vst.msk [vmem:[%s273 + $0x118] sm:$0xff] %vm3704, %v3691
      %3741 = vst.msk [vmem:[%s273 + $0x120] sm:$0xff] %vm3704, %v3692
      %3742 = vst.msk [vmem:[%s273 + $0x128] sm:$0xff] %vm3704, %v3693
      %3743 = vst.msk [vmem:[%s273 + $0x130] sm:$0xff] %vm3704, %v3694
      %3744 = vst.msk [vmem:[%s273 + $0x138] sm:$0xff] %vm3704, %v3695
      %3745 = vst.msk [vmem:[%s273 + $0x140] sm:$0xff] %vm3704, %v3696
      %3746 = vst.msk [vmem:[%s273 + $0x148] sm:$0xff] %vm3704, %v3697
      %3747 = vst.msk [vmem:[%s273 + $0x150] sm:$0xff] %vm3704, %v3698
      %3748 = vst.msk [vmem:[%s273 + $0x158] sm:$0xff] %vm3704, %v3699
      %3749 = vst.msk [vmem:[%s273 + $0x160] sm:$0xff] %vm3704, %v3700
      %3750 = vst.msk [vmem:[%s273 + $0x168] sm:$0xff] %vm3704, %v3701
      %3751 = vst.msk [vmem:[%s273 + $0x170] sm:$0xff] %vm3704, %v3702
      %3752 = vst.msk [vmem:[%s273 + $0x178] sm:$0xff] %vm3704, %v3703
      %s3753 = smul.u32 48, %s22
      %p3754 = scmp.lt.s32.totalorder %s21, 1
      %s3755 = scalar_select %p3754, %s21, 1
      %p3756 = scmp.lt.s32.totalorder %s3753, 47
      %s3757 = scalar_select %p3756, %s3753, 47
      %s3758 = smul.addr %s3755, 48
      %s3759 = sadd.s32 %s3757, %s3758
      %s3760 = smul.addr %s3759, 8
      %s3761 = scalar_lea.vmem %s6, %s3760
      // Predicated region
      $region45: #{tpu_custom_call.1} parent=43 // pred_check
        %p3762 = pneg %p180
      $region46: #{tpu_custom_call.1} parent=43 // pred_check_branch
        %3764 = sbr.rel (%p3762) target = $region48
      $region47: #{tpu_custom_call.1} parent=43 // pred_region
        %s3765 = smul.u32 48, %s22
      $region48: #{tpu_custom_call.1} parent=43 // pred_fallthru
        _
    $region44: #{tpu_custom_call.1} parent=5 // pred_fallthru
      _
    %p3766 = scmp.le.s32.totalorder 2, %s12
    // Predicated region
    $region49: #{tpu_custom_call.1} parent=5 // pred_check
      %p3767 = pneg %p3766
    $region50: #{tpu_custom_call.1} parent=5 // pred_check_branch
      %3769 = sbr.rel (%p3767) target = $region52
    $region51: #{tpu_custom_call.1} parent=5 // pred_region
      %s3770 = ssub.s32 %s12, 2
      // Predicated region
      $region53: #{tpu_custom_call.1} parent=51 // pred_check
        %p3771 = pneg %p186
      $region54: #{tpu_custom_call.1} parent=51 // pred_check_branch
        %3773 = sbr.rel (%p3771) target = $region56
      $region55: #{tpu_custom_call.1} parent=51 // pred_region
        %s3774 = smul.u32 48, %s24
        %p3775 = scmp.lt.s32.totalorder %s23, 1
        %s3776 = scalar_select %p3775, %s23, 1
        %p3777 = scmp.lt.s32.totalorder %s3774, 47
        %s3778 = scalar_select %p3777, %s3774, 47
        %s3779 = smul.addr %s3776, 48
        %s3780 = sadd.s32 %s3778, %s3779
        %s3781 = smul.addr %s3780, 8
        %s3782 = scalar_lea.vmem %s6, %s3781
      $region56: #{tpu_custom_call.1} parent=51 // pred_fallthru
        _
    $region52: #{tpu_custom_call.1} parent=5 // pred_fallthru
      _
  $region6: #{tpu_custom_call.1} parent=0 // loop_footer
    %s16 = sadd.s32 1, %s12
  $region7: #{tpu_custom_call.1} parent=0 // loop_footer_branch
    %11 = sbr.rel target = $region3
  $region8: #{tpu_custom_call.1} parent=0 // loop_exit
    _

</llo_original>
